<compile_context>
chip_gen: v6e
topology: v6e:2x2x1
jax: 0.10.0
libtpu: 0.0.40
codegen_flags: <defaults>
</compile_context>

<pallas_src>
import functools

import jax
import jax.numpy as jnp
from jax import lax
from jax.experimental import pallas as pl
from jax.experimental.pallas import tpu as pltpu


def _spatial_attention_kernel(x_ref, w_ref, b_ref, o_ref,
                              mxp_ref, smp_ref, plane_ref, flat_ref, roll_ref,
                              *, H, W, K, TOP):
    """Grid = (batch blocks [parallel], channel blocks [arbitrary]).

    x_ref:     (B, Ct, H*W)  lane-dense input block (VMEM)
    w_ref:     (2*K*K,)      conv taps flat [ci, kh, kw]; mean taps pre-scaled 1/C (SMEM)
    b_ref:     (1,)          conv bias (SMEM)
    o_ref:     (B, 1, H, W)  output block (VMEM), written at the last channel step
    mxp_ref:   (B, 8, H*W)   running per-sublane channel-max partials (VMEM scratch)
    smp_ref:   (B, 8, H*W)   running per-sublane channel-sum partials (VMEM scratch)
    plane_ref: (2, Hs, Wr)   zero-padded (H, W) max/sum planes for the conv (VMEM scratch)
    flat_ref:  (2, H*W)      staging for the combined flat planes (VMEM scratch)
    roll_ref:  (Hs, Wr)      column-rolled padded plane (VMEM scratch)
    """
    B, Ct, HW = x_ref.shape
    _, Hs, Wr = plane_ref.shape
    P = K // 2
    c_idx = pl.program_id(1)
    n_cblk = pl.num_programs(1)

    n_full = Ct // 8            # whole 8-channel (sublane) chunks in this C block
    n_rem = Ct - 8 * n_full     # leftover channels (< 8); nonzero only when Ct == C

    # ---- phase 0: (re)initialize the running reduction partials ---------------
    @pl.when(c_idx == 0)
    def _init():
        mxp_ref[...] = jnp.full(mxp_ref.shape, -jnp.inf, jnp.float32)
        smp_ref[...] = jnp.zeros(smp_ref.shape, jnp.float32)

    # ---- phase 1: lane-dense streaming channel max/sum over this C block ------
    sub0 = (lax.broadcasted_iota(jnp.int32, (8, HW), 0) == 0) if n_rem > 0 else None

    def _reduce_batch(b, carry):
        mx = mxp_ref[b]                                     # (8, HW) f32 partials
        sm = smp_ref[b]
        if n_full > 0:
            def _chunk(i, ms):
                m, s = ms
                c0 = pl.multiple_of(i * 8, 8)
                blk = x_ref[b, pl.ds(c0, 8), :].astype(jnp.float32)
                return jnp.maximum(m, blk), s + blk
            mx, sm = lax.fori_loop(0, n_full, _chunk, (mx, sm),
                                   unroll=min(8, n_full))
        if n_rem > 0:
            t = x_ref[b, 8 * n_full, :].astype(jnp.float32)   # (HW,)
            t_mx, t_sm = t, t
            for j in range(1, n_rem):                         # at most 7 rows
                t = x_ref[b, 8 * n_full + j, :].astype(jnp.float32)
                t_mx = jnp.maximum(t_mx, t)
                t_sm = t_sm + t
            mx = jnp.maximum(mx, jnp.where(sub0, t_mx[None, :], -jnp.inf))
            sm = sm + jnp.where(sub0, t_sm[None, :], 0.0)
        mxp_ref[b] = mx
        smp_ref[b] = sm
        return carry

    lax.fori_loop(0, B, _reduce_batch, 0)

    # ---- phase 2: last channel step -> 7x7 conv + sigmoid per batch element ---
    @pl.when(c_idx == n_cblk - 1)
    def _finalize():
        # Zero only the padding border; the (H, W) interior is fully overwritten
        # per batch element below.  Redone every step => safe under megacore.
        if TOP > 0:
            plane_ref[:, 0:TOP, :] = jnp.zeros((2, TOP, Wr), jnp.float32)
        if Hs > TOP + H:
            plane_ref[:, TOP + H:Hs, :] = jnp.zeros((2, Hs - TOP - H, Wr), jnp.float32)
        if Wr > W:
            plane_ref[:, TOP:TOP + H, W:Wr] = jnp.zeros((2, H, Wr - W), jnp.float32)

        # Hoisted bias broadcast, reused as the conv accumulator initializer.
        bias_plane = jnp.full((H, Wr), b_ref[0], dtype=jnp.float32)

        def _finalize_batch(b, carry):
            # Cross-sublane combine of the running partials -> flat (H*W,) planes.
            flat_ref[0, :] = jnp.max(mxp_ref[b], axis=0)      # channel max
            flat_ref[1, :] = jnp.sum(smp_ref[b], axis=0)      # channel sum (1/C folded in taps)

            # Un-flatten only the 2 reduced planes into the padded conv scratch.
            for ci in range(2):
                for h in range(H):
                    plane_ref[ci, TOP + h, 0:W] = flat_ref[ci, pl.ds(h * W, W)]

            # K x K conv (cross-correlation) as shift-and-accumulate.  The column
            # roll is hoisted out of the kh loop: 2*K whole-plane rolls instead of
            # 2*K*K band rolls.  The circular wrap lands in zeroed columns
            # (Wr >= W + P), i.e. spatial zero padding for free.
            acc = bias_plane
            for ci in range(2):
                for kw in range(K):
                    shift = (P - kw) % Wr
                    if shift == 0:
                        src = plane_ref.at[ci]
                    else:
                        roll_ref[...] = pltpu.roll(plane_ref[ci], shift=shift, axis=1)
                        src = roll_ref
                    for kh in range(K):
                        wv = w_ref[ci * K * K + kh * K + kw]   # SMEM scalar
                        r0 = TOP - P + kh
                        acc = acc + wv * src[r0:r0 + H, :]

            o_ref[b, 0] = jax.nn.sigmoid(acc[:, 0:W]).astype(o_ref.dtype)
            return carry

        lax.fori_loop(0, B, _finalize_batch, 0)


def _pad8(v):
    return ((int(v) + 7) // 8) * 8


def _pad128(v):
    return ((int(v) + 127) // 128) * 128


def _block_bytes(B, Ct, H, W, Hs, Wr, x_itemsize):
    """VMEM footprint of one grid step, including (8,128) layout padding and
    double-buffering of the pipelined input/output blocks."""
    HW = H * W
    x_in = 2 * B * _pad8(Ct) * _pad128(HW) * x_itemsize        # double-buffered x block
    out = 2 * B * 1 * _pad8(H) * _pad128(W) * x_itemsize       # double-buffered out block
    scratch = (2 * B * 8 * _pad128(HW)                         # max/sum partials
               + 2 * _pad8(Hs) * Wr                            # padded conv planes
               + _pad8(Hs) * Wr                                # rolled plane
               + _pad8(2) * _pad128(HW)) * 4                   # flat staging
    return x_in + out + scratch


def _choose_blocks(N, C, H, W, Hs, Wr, x_itemsize, budget_bytes=24 << 20):
    """Pick (batch block B, channel block Ct).

    Preference: fit a 24 MiB budget (v7x-safe), keep >=2 batch grid steps for
    megacore when N > 1, keep the whole C per step when possible (no accumulator
    round-trip through scratch), then the largest batch block.
    """
    n_divs = [d for d in range(1, N + 1) if N % d == 0]
    # Ct must be the full C or a multiple of 8 (layout rule on the block's
    # second-to-last dim) and must divide C.
    c_divs = [d for d in range(1, C + 1) if C % d == 0 and (d == C or d % 8 == 0)]
    best = None
    for B in n_divs:
        for Ct in c_divs:
            if _block_bytes(B, Ct, H, W, Hs, Wr, x_itemsize) > budget_bytes:
                continue
            key = (N == 1 or N // B >= 2, Ct, B)
            if best is None or key > best[0]:
                best = (key, B, Ct)
    if best is None:             # nothing fits: smallest block; vmem_limit handles it
        return 1, min(c_divs)
    return best[1], best[2]


def spatial_attention(x, weight, bias, *, block_batch=None, block_channels=None):
    """x: (N, C, H, W) f32/bf16; weight: (1, 2, K, K); bias: (1,).

    Returns sigmoid(conv2d(concat([max_c x, mean_c x], 1), weight, bias)) of
    shape (N, 1, H, W) in x.dtype, matching PyTorch SpatialAttention.forward.
    """
    N, C, H, W = x.shape
    K = weight.shape[-1]
    P = K // 2
    HW = H * W

    # Conv scratch geometry: plane rows live at [TOP, TOP+H) (TOP 8-aligned so
    # interior stores need no sublane re-layout) and cols [0, W) of a lane-padded
    # width Wr >= W + 2P; every other row/col stays zero (= the conv's padding).
    TOP = _pad8(P)
    Hs = TOP + H + P
    Wr = max(128, pl.cdiv(W + 2 * P, 128) * 128)

    itemsize = jnp.dtype(x.dtype).itemsize
    B, Ct = _choose_blocks(N, C, H, W, Hs, Wr, itemsize)
    if block_batch is not None:
        B = block_batch
    if block_channels is not None:
        Ct = block_channels
    assert N % B == 0 and C % Ct == 0, "blocks must divide N and C"
    assert Ct == C or Ct % 8 == 0, "channel block must be full C or a multiple of 8"

    # Flatten conv taps for SMEM ([ci, kh, kw]) and fold the 1/C mean scale into
    # the second input channel's taps (channel order = [max, mean]).
    w2 = weight.astype(jnp.float32).reshape(2, K * K)
    w2 = w2 * jnp.array([1.0, 1.0 / C], dtype=jnp.float32)[:, None]
    w_flat = w2.reshape(-1)                          # (2*K*K,)
    b_flat = bias.reshape(-1).astype(jnp.float32)    # (1,)

    # Lane-dense layout for the channel reduction (free for contiguous NCHW).
    x_flat = x.reshape(N, C, HW)

    blk_bytes = _block_bytes(B, Ct, H, W, Hs, Wr, itemsize)
    vmem_limit = int(min(max(blk_bytes + (8 << 20), 24 << 20), 48 << 20))

    kern = functools.partial(_spatial_attention_kernel, H=H, W=W, K=K, TOP=TOP)

    return pl.pallas_call(
        kern,
        out_shape=jax.ShapeDtypeStruct((N, 1, H, W), x.dtype),
        grid=(N // B, C // Ct),
        in_specs=[
            pl.BlockSpec((B, Ct, HW), lambda n, c: (n, c, 0)),
            pl.BlockSpec(memory_space=pltpu.MemorySpace.SMEM),
            pl.BlockSpec(memory_space=pltpu.MemorySpace.SMEM),
        ],
        out_specs=pl.BlockSpec((B, 1, H, W), lambda n, c: (n, 0, 0, 0)),
        scratch_shapes=[
            pltpu.VMEM((B, 8, HW), jnp.float32),     # running channel-max partials
            pltpu.VMEM((B, 8, HW), jnp.float32),     # running channel-sum partials
            pltpu.VMEM((2, Hs, Wr), jnp.float32),    # zero-padded max/mean conv planes
            pltpu.VMEM((2, HW), jnp.float32),        # flat staging for combined planes
            pltpu.VMEM((Hs, Wr), jnp.float32),       # column-rolled plane (roll hoist)
        ],
        compiler_params=pltpu.CompilerParams(
            dimension_semantics=("parallel", "arbitrary"),
            vmem_limit_bytes=vmem_limit),
    )(x_flat, w_flat, b_flat)


def _reference(x, weight, bias):
    """Pure-JAX reference of the intended forward pass."""
    max_y = jnp.max(x, axis=1, keepdims=True)
    avg_y = jnp.mean(x, axis=1, keepdims=True)
    y = jnp.concatenate([max_y, avg_y], axis=1)
    P = weight.shape[-1] // 2
    out = jax.lax.conv_general_dilated(
        y, weight, window_strides=(1, 1),
        padding=((P, P), (P, P)),
        dimension_numbers=("NCHW", "OIHW", "NCHW"))
    out = out + bias.reshape(1, -1, 1, 1)
    return jax.nn.sigmoid(out)


if __name__ == "__main__":
    key = jax.random.PRNGKey(0)
    kx, kw, kb = jax.random.split(key, 3)

    K = 7
    fan_in = 2 * K * K
    bound = 1.0 / (fan_in ** 0.5)
    weight = jax.random.uniform(kw, (1, 2, K, K), jnp.float32, -bound, bound)
    bias = jax.random.uniform(kb, (1,), jnp.float32, -bound, bound)

    # f32 checks: tiny C (<8, tail-only path), chunked+tail path, odd spatial size.
    for idx, (N, C, H, W) in enumerate([(2, 4, 16, 16), (2, 20, 16, 16), (2, 9, 7, 7)]):
        x = jax.random.normal(jax.random.fold_in(kx, idx), (N, C, H, W), jnp.float32)
        out = jax.block_until_ready(spatial_attention(x, weight, bias))
        ref = _reference(x, weight, bias)
        assert out.shape == (N, 1, H, W)
        assert jnp.allclose(out, ref, atol=1e-5, rtol=1e-5), f"mismatch at {(N, C, H, W)}"

    # bf16 activations (per perf review): f32 accumulation inside the kernel.
    xb = jax.random.normal(kx, (2, 20, 16, 16), jnp.float32).astype(jnp.bfloat16)
    outb = jax.block_until_ready(spatial_attention(xb, weight, bias))
    refb = _reference(xb.astype(jnp.float32), weight, bias)
    assert outb.shape == (2, 1, 16, 16)
    assert jnp.allclose(outb.astype(jnp.float32), refb, atol=2e-2), "bf16 mismatch"

    print("KERNEL_OK")
</pallas_src>

<mosaic_0001>
module attributes {stable_mosaic.version = 11 : i64} {
  func.func @_spatial_attention_kernel(%arg0: i32, %arg1: i32, %arg2: memref<1x4x256xf32, #tpu.memory_space<vmem>>, %arg3: memref<98xf32, #tpu.memory_space<smem>>, %arg4: memref<1xf32, #tpu.memory_space<smem>>, %arg5: memref<1x1x16x16xf32, #tpu.memory_space<vmem>>, %arg6: memref<1x8x256xf32, #tpu.memory_space<vmem>>, %arg7: memref<1x8x256xf32, #tpu.memory_space<vmem>>, %arg8: memref<2x27x128xf32, #tpu.memory_space<vmem>>, %arg9: memref<2x256xf32, #tpu.memory_space<vmem>>, %arg10: memref<27x128xf32, #tpu.memory_space<vmem>>) attributes {dimension_semantics = [#tpu.dimension_semantics<parallel>, #tpu.dimension_semantics<arbitrary>], iteration_bounds = array<i64: 2, 1>, scalar_prefetch = 0 : i64, scratch_operands = 5 : i64, tpu.core_type = #tpu.core_type<tc>, window_params = [{transform_indices = @transform_0, window_bounds = array<i64: 1, 4, 256>}, {transform_indices = @transform_1, window_bounds = array<i64: 98>}, {transform_indices = @transform_2, window_bounds = array<i64: 1>}, {transform_indices = @transform_3, window_bounds = array<i64: 1, 1, 16, 16>}]} {
    %c0_i32 = arith.constant 0 : i32
    %0 = arith.cmpi eq, %arg1, %c0_i32 : i32
    %1 = arith.extui %0 : i1 to i32
    %c0_i32_0 = arith.constant 0 : i32
    %2 = arith.cmpi ne, %1, %c0_i32_0 : i32
    scf.if %2 {
      %cst_18 = arith.constant 0xFF800000 : f32
      %53 = vector.broadcast %cst_18 : f32 to vector<1x8x256xf32>
      %c0_19 = arith.constant 0 : index
      %c0_20 = arith.constant 0 : index
      %c0_21 = arith.constant 0 : index
      %54 = vector.load %arg6[%c0_19, %c0_20, %c0_21] : memref<1x8x256xf32, #tpu.memory_space<vmem>>, vector<1x8x256xf32>
      tpu.vector_store %arg6[%c0_19, %c0_20, %c0_21], %53 {strides = array<i32>} : memref<1x8x256xf32, #tpu.memory_space<vmem>>, vector<1x8x256xf32>,
      %cst_22 = arith.constant 0.000000e+00 : f32
      %55 = vector.broadcast %cst_22 : f32 to vector<1x8x256xf32>
      %c0_23 = arith.constant 0 : index
      %c0_24 = arith.constant 0 : index
      %c0_25 = arith.constant 0 : index
      %56 = vector.load %arg7[%c0_23, %c0_24, %c0_25] : memref<1x8x256xf32, #tpu.memory_space<vmem>>, vector<1x8x256xf32>
      tpu.vector_store %arg7[%c0_23, %c0_24, %c0_25], %55 {strides = array<i32>} : memref<1x8x256xf32, #tpu.memory_space<vmem>>, vector<1x8x256xf32>,
    } else {
    }
    %3 = tpu.iota {dimensions = array<i32: 0>} : vector<8x256xi32>
    %c0_i32_1 = arith.constant 0 : i32
    %4 = vector.broadcast %c0_i32_1 : i32 to vector<8x256xi32>
    %5 = arith.cmpi eq, %3, %4 : vector<8x256xi32>
    %c0_i32_2 = arith.constant 0 : i32
    %6 = arith.index_cast %c0_i32_2 : i32 to index
    %c0 = arith.constant 0 : index
    %c0_3 = arith.constant 0 : index
    %7 = vector.load %arg6[%6, %c0, %c0_3] : memref<1x8x256xf32, #tpu.memory_space<vmem>>, vector<1x8x256xf32>
    %8 = vector.shape_cast %7 : vector<1x8x256xf32> to vector<8x256xf32>
    %9 = arith.index_cast %c0_i32_2 : i32 to index
    %c0_4 = arith.constant 0 : index
    %c0_5 = arith.constant 0 : index
    %10 = vector.load %arg7[%9, %c0_4, %c0_5] : memref<1x8x256xf32, #tpu.memory_space<vmem>>, vector<1x8x256xf32>
    %11 = vector.shape_cast %10 : vector<1x8x256xf32> to vector<8x256xf32>
    %12 = arith.index_cast %c0_i32_2 : i32 to index
    %c0_6 = arith.constant 0 : index
    %c0_7 = arith.constant 0 : index
    %13 = vector.load %arg2[%12, %c0_6, %c0_7] : memref<1x4x256xf32, #tpu.memory_space<vmem>>, vector<1x1x256xf32>
    %14 = vector.shape_cast %13 : vector<1x1x256xf32> to vector<256xf32>
    %15 = arith.index_cast %c0_i32_2 : i32 to index
    %c1 = arith.constant 1 : index
    %c0_8 = arith.constant 0 : index
    %16 = vector.load %arg2[%15, %c1, %c0_8] : memref<1x4x256xf32, #tpu.memory_space<vmem>>, vector<1x1x256xf32>
    %17 = vector.shape_cast %16 : vector<1x1x256xf32> to vector<256xf32>
    %18 = arith.maximumf %14, %17 : vector<256xf32>
    %19 = arith.addf %14, %17 : vector<256xf32>
    %20 = arith.index_cast %c0_i32_2 : i32 to index
    %c2 = arith.constant 2 : index
    %c0_9 = arith.constant 0 : index
    %21 = vector.load %arg2[%20, %c2, %c0_9] : memref<1x4x256xf32, #tpu.memory_space<vmem>>, vector<1x1x256xf32>
    %22 = vector.shape_cast %21 : vector<1x1x256xf32> to vector<256xf32>
    %23 = arith.maximumf %18, %22 : vector<256xf32>
    %24 = arith.addf %19, %22 : vector<256xf32>
    %25 = arith.index_cast %c0_i32_2 : i32 to index
    %c3 = arith.constant 3 : index
    %c0_10 = arith.constant 0 : index
    %26 = vector.load %arg2[%25, %c3, %c0_10] : memref<1x4x256xf32, #tpu.memory_space<vmem>>, vector<1x1x256xf32>
    %27 = vector.shape_cast %26 : vector<1x1x256xf32> to vector<256xf32>
    %28 = arith.maximumf %23, %27 : vector<256xf32>
    %29 = arith.addf %24, %27 : vector<256xf32>
    %30 = vector.shape_cast %28 : vector<256xf32> to vector<1x256xf32>
    %cst = arith.constant 0xFF800000 : f32
    %31 = vector.shape_cast %30 : vector<1x256xf32> to vector<1x256xf32>
    %32 = vector.broadcast %31 : vector<1x256xf32> to vector<8x256xf32>
    %33 = vector.broadcast %cst : f32 to vector<8x256xf32>
    %34 = arith.select %5, %32, %33 : vector<8x256xi1>, vector<8x256xf32>
    %35 = arith.maximumf %8, %34 : vector<8x256xf32>
    %36 = vector.shape_cast %29 : vector<256xf32> to vector<1x256xf32>
    %cst_11 = arith.constant 0.000000e+00 : f32
    %37 = vector.shape_cast %36 : vector<1x256xf32> to vector<1x256xf32>
    %38 = vector.broadcast %37 : vector<1x256xf32> to vector<8x256xf32>
    %39 = vector.broadcast %cst_11 : f32 to vector<8x256xf32>
    %40 = arith.select %5, %38, %39 : vector<8x256xi1>, vector<8x256xf32>
    %41 = arith.addf %11, %40 : vector<8x256xf32>
    %42 = arith.index_cast %c0_i32_2 : i32 to index
    %c0_12 = arith.constant 0 : index
    %c0_13 = arith.constant 0 : index
    %43 = vector.load %arg6[%42, %c0_12, %c0_13] : memref<1x8x256xf32, #tpu.memory_space<vmem>>, vector<1x8x256xf32>
    %44 = vector.shape_cast %43 : vector<1x8x256xf32> to vector<8x256xf32>
    %45 = vector.shape_cast %35 : vector<8x256xf32> to vector<1x8x256xf32>
    tpu.vector_store %arg6[%42, %c0_12, %c0_13], %45 {strides = array<i32>} : memref<1x8x256xf32, #tpu.memory_space<vmem>>, vector<1x8x256xf32>,
    %46 = arith.index_cast %c0_i32_2 : i32 to index
    %c0_14 = arith.constant 0 : index
    %c0_15 = arith.constant 0 : index
    %47 = vector.load %arg7[%46, %c0_14, %c0_15] : memref<1x8x256xf32, #tpu.memory_space<vmem>>, vector<1x8x256xf32>
    %48 = vector.shape_cast %47 : vector<1x8x256xf32> to vector<8x256xf32>
    %49 = vector.shape_cast %41 : vector<8x256xf32> to vector<1x8x256xf32>
    tpu.vector_store %arg7[%46, %c0_14, %c0_15], %49 {strides = array<i32>} : memref<1x8x256xf32, #tpu.memory_space<vmem>>, vector<1x8x256xf32>,
    %c1_i32 = arith.constant 1 : i32
    %c0_i32_16 = arith.constant 0 : i32
    %50 = arith.cmpi eq, %arg1, %c0_i32_16 : i32
    %51 = arith.extui %50 : i1 to i32
    %c0_i32_17 = arith.constant 0 : i32
    %52 = arith.cmpi ne, %51, %c0_i32_17 : i32
    scf.if %52 {
      %cst_18 = arith.constant 0.000000e+00 : f32
      %53 = vector.broadcast %cst_18 : f32 to vector<2x8x128xf32>
      %c0_19 = arith.constant 0 : index
      %c0_20 = arith.constant 0 : index
      %c0_21 = arith.constant 0 : index
      %54 = vector.load %arg8[%c0_19, %c0_20, %c0_21] : memref<2x27x128xf32, #tpu.memory_space<vmem>>, vector<2x8x128xf32>
      tpu.vector_store %arg8[%c0_19, %c0_20, %c0_21], %53 {strides = array<i32>} : memref<2x27x128xf32, #tpu.memory_space<vmem>>, vector<2x8x128xf32>,
      %cst_22 = arith.constant 0.000000e+00 : f32
      %55 = vector.broadcast %cst_22 : f32 to vector<2x3x128xf32>
      %c0_23 = arith.constant 0 : index
      %c24 = arith.constant 24 : index
      %c0_24 = arith.constant 0 : index
      %56 = vector.load %arg8[%c0_23, %c24, %c0_24] : memref<2x27x128xf32, #tpu.memory_space<vmem>>, vector<2x3x128xf32>
      tpu.vector_store %arg8[%c0_23, %c24, %c0_24], %55 {strides = array<i32>} : memref<2x27x128xf32, #tpu.memory_space<vmem>>, vector<2x3x128xf32>,
      %cst_25 = arith.constant 0.000000e+00 : f32
      %57 = vector.broadcast %cst_25 : f32 to vector<2x16x112xf32>
      %c0_26 = arith.constant 0 : index
      %c8 = arith.constant 8 : index
      %c16 = arith.constant 16 : index
      %58 = vector.load %arg8[%c0_26, %c8, %c16] : memref<2x27x128xf32, #tpu.memory_space<vmem>>, vector<2x16x112xf32>
      tpu.vector_store %arg8[%c0_26, %c8, %c16], %57 {strides = array<i32>} : memref<2x27x128xf32, #tpu.memory_space<vmem>>, vector<2x16x112xf32>,
      %c0_27 = arith.constant 0 : index
      %59 = memref.load %arg4[%c0_27] : memref<1xf32, #tpu.memory_space<smem>>
      %60 = vector.broadcast %59 : f32 to vector<16x128xf32>
      %c0_i32_28 = arith.constant 0 : i32
      %61 = arith.index_cast %c0_i32_28 : i32 to index
      %c0_29 = arith.constant 0 : index
      %c0_30 = arith.constant 0 : index
      %62 = vector.load %arg6[%61, %c0_29, %c0_30] : memref<1x8x256xf32, #tpu.memory_space<vmem>>, vector<1x8x256xf32>
      %63 = vector.shape_cast %62 : vector<1x8x256xf32> to vector<8x256xf32>
      %cst_31 = arith.constant dense<0xFF800000> : vector<256xf32>
      %64 = vector.multi_reduction <maximumf>, %63, %cst_31 [0] : vector<8x256xf32> to vector<256xf32>
      %c0_32 = arith.constant 0 : index
      %c0_33 = arith.constant 0 : index
      %65 = vector.load %arg9[%c0_32, %c0_33] : memref<2x256xf32, #tpu.memory_space<vmem>>, vector<1x256xf32>
      %66 = vector.shape_cast %65 : vector<1x256xf32> to vector<256xf32>
      %67 = vector.shape_cast %64 : vector<256xf32> to vector<1x256xf32>
      tpu.vector_store %arg9[%c0_32, %c0_33], %67 {strides = array<i32>} : memref<2x256xf32, #tpu.memory_space<vmem>>, vector<1x256xf32>,
      %68 = arith.index_cast %c0_i32_28 : i32 to index
      %c0_34 = arith.constant 0 : index
      %c0_35 = arith.constant 0 : index
      %69 = vector.load %arg7[%68, %c0_34, %c0_35] : memref<1x8x256xf32, #tpu.memory_space<vmem>>, vector<1x8x256xf32>
      %70 = vector.shape_cast %69 : vector<1x8x256xf32> to vector<8x256xf32>
      %cst_36 = arith.constant dense<0.000000e+00> : vector<256xf32>
      %71 = vector.multi_reduction <add>, %70, %cst_36 [0] : vector<8x256xf32> to vector<256xf32>
      %c1_37 = arith.constant 1 : index
      %c0_38 = arith.constant 0 : index
      %72 = vector.load %arg9[%c1_37, %c0_38] : memref<2x256xf32, #tpu.memory_space<vmem>>, vector<1x256xf32>
      %73 = vector.shape_cast %72 : vector<1x256xf32> to vector<256xf32>
      %74 = vector.shape_cast %71 : vector<256xf32> to vector<1x256xf32>
      tpu.vector_store %arg9[%c1_37, %c0_38], %74 {strides = array<i32>} : memref<2x256xf32, #tpu.memory_space<vmem>>, vector<1x256xf32>,
      %c0_39 = arith.constant 0 : index
      %c0_40 = arith.constant 0 : index
      %75 = vector.load %arg9[%c0_39, %c0_40] : memref<2x256xf32, #tpu.memory_space<vmem>>, vector<1x16xf32>
      %76 = vector.shape_cast %75 : vector<1x16xf32> to vector<16xf32>
      %c0_41 = arith.constant 0 : index
      %c8_42 = arith.constant 8 : index
      %c0_43 = arith.constant 0 : index
      %77 = vector.load %arg8[%c0_41, %c8_42, %c0_43] : memref<2x27x128xf32, #tpu.memory_space<vmem>>, vector<1x1x16xf32>
      %78 = vector.shape_cast %77 : vector<1x1x16xf32> to vector<16xf32>
      %79 = vector.shape_cast %76 : vector<16xf32> to vector<1x1x16xf32>
      tpu.vector_store %arg8[%c0_41, %c8_42, %c0_43], %79 {strides = array<i32>} : memref<2x27x128xf32, #tpu.memory_space<vmem>>, vector<1x1x16xf32>,
      %c0_44 = arith.constant 0 : index
      %c16_45 = arith.constant 16 : index
      %80 = vector.load %arg9[%c0_44, %c16_45] : memref<2x256xf32, #tpu.memory_space<vmem>>, vector<1x16xf32>
      %81 = vector.shape_cast %80 : vector<1x16xf32> to vector<16xf32>
      %c0_46 = arith.constant 0 : index
      %c9 = arith.constant 9 : index
      %c0_47 = arith.constant 0 : index
      %82 = vector.load %arg8[%c0_46, %c9, %c0_47] : memref<2x27x128xf32, #tpu.memory_space<vmem>>, vector<1x1x16xf32>
      %83 = vector.shape_cast %82 : vector<1x1x16xf32> to vector<16xf32>
      %84 = vector.shape_cast %81 : vector<16xf32> to vector<1x1x16xf32>
      tpu.vector_store %arg8[%c0_46, %c9, %c0_47], %84 {strides = array<i32>} : memref<2x27x128xf32, #tpu.memory_space<vmem>>, vector<1x1x16xf32>,
      %c0_48 = arith.constant 0 : index
      %c32 = arith.constant 32 : index
      %85 = vector.load %arg9[%c0_48, %c32] : memref<2x256xf32, #tpu.memory_space<vmem>>, vector<1x16xf32>
      %86 = vector.shape_cast %85 : vector<1x16xf32> to vector<16xf32>
      %c0_49 = arith.constant 0 : index
      %c10 = arith.constant 10 : index
      %c0_50 = arith.constant 0 : index
      %87 = vector.load %arg8[%c0_49, %c10, %c0_50] : memref<2x27x128xf32, #tpu.memory_space<vmem>>, vector<1x1x16xf32>
      %88 = vector.shape_cast %87 : vector<1x1x16xf32> to vector<16xf32>
      %89 = vector.shape_cast %86 : vector<16xf32> to vector<1x1x16xf32>
      tpu.vector_store %arg8[%c0_49, %c10, %c0_50], %89 {strides = array<i32>} : memref<2x27x128xf32, #tpu.memory_space<vmem>>, vector<1x1x16xf32>,
      %c0_51 = arith.constant 0 : index
      %c48 = arith.constant 48 : index
      %90 = vector.load %arg9[%c0_51, %c48] : memref<2x256xf32, #tpu.memory_space<vmem>>, vector<1x16xf32>
      %91 = vector.shape_cast %90 : vector<1x16xf32> to vector<16xf32>
      %c0_52 = arith.constant 0 : index
      %c11 = arith.constant 11 : index
      %c0_53 = arith.constant 0 : index
      %92 = vector.load %arg8[%c0_52, %c11, %c0_53] : memref<2x27x128xf32, #tpu.memory_space<vmem>>, vector<1x1x16xf32>
      %93 = vector.shape_cast %92 : vector<1x1x16xf32> to vector<16xf32>
      %94 = vector.shape_cast %91 : vector<16xf32> to vector<1x1x16xf32>
      tpu.vector_store %arg8[%c0_52, %c11, %c0_53], %94 {strides = array<i32>} : memref<2x27x128xf32, #tpu.memory_space<vmem>>, vector<1x1x16xf32>,
      %c0_54 = arith.constant 0 : index
      %c64 = arith.constant 64 : index
      %95 = vector.load %arg9[%c0_54, %c64] : memref<2x256xf32, #tpu.memory_space<vmem>>, vector<1x16xf32>
      %96 = vector.shape_cast %95 : vector<1x16xf32> to vector<16xf32>
      %c0_55 = arith.constant 0 : index
      %c12 = arith.constant 12 : index
      %c0_56 = arith.constant 0 : index
      %97 = vector.load %arg8[%c0_55, %c12, %c0_56] : memref<2x27x128xf32, #tpu.memory_space<vmem>>, vector<1x1x16xf32>
      %98 = vector.shape_cast %97 : vector<1x1x16xf32> to vector<16xf32>
      %99 = vector.shape_cast %96 : vector<16xf32> to vector<1x1x16xf32>
      tpu.vector_store %arg8[%c0_55, %c12, %c0_56], %99 {strides = array<i32>} : memref<2x27x128xf32, #tpu.memory_space<vmem>>, vector<1x1x16xf32>,
      %c0_57 = arith.constant 0 : index
      %c80 = arith.constant 80 : index
      %100 = vector.load %arg9[%c0_57, %c80] : memref<2x256xf32, #tpu.memory_space<vmem>>, vector<1x16xf32>
      %101 = vector.shape_cast %100 : vector<1x16xf32> to vector<16xf32>
      %c0_58 = arith.constant 0 : index
      %c13 = arith.constant 13 : index
      %c0_59 = arith.constant 0 : index
      %102 = vector.load %arg8[%c0_58, %c13, %c0_59] : memref<2x27x128xf32, #tpu.memory_space<vmem>>, vector<1x1x16xf32>
      %103 = vector.shape_cast %102 : vector<1x1x16xf32> to vector<16xf32>
      %104 = vector.shape_cast %101 : vector<16xf32> to vector<1x1x16xf32>
      tpu.vector_store %arg8[%c0_58, %c13, %c0_59], %104 {strides = array<i32>} : memref<2x27x128xf32, #tpu.memory_space<vmem>>, vector<1x1x16xf32>,
      %c0_60 = arith.constant 0 : index
      %c96 = arith.constant 96 : index
      %105 = vector.load %arg9[%c0_60, %c96] : memref<2x256xf32, #tpu.memory_space<vmem>>, vector<1x16xf32>
      %106 = vector.shape_cast %105 : vector<1x16xf32> to vector<16xf32>
      %c0_61 = arith.constant 0 : index
      %c14 = arith.constant 14 : index
      %c0_62 = arith.constant 0 : index
      %107 = vector.load %arg8[%c0_61, %c14, %c0_62] : memref<2x27x128xf32, #tpu.memory_space<vmem>>, vector<1x1x16xf32>
      %108 = vector.shape_cast %107 : vector<1x1x16xf32> to vector<16xf32>
      %109 = vector.shape_cast %106 : vector<16xf32> to vector<1x1x16xf32>
      tpu.vector_store %arg8[%c0_61, %c14, %c0_62], %109 {strides = array<i32>} : memref<2x27x128xf32, #tpu.memory_space<vmem>>, vector<1x1x16xf32>,
      %c0_63 = arith.constant 0 : index
      %c112 = arith.constant 112 : index
      %110 = vector.load %arg9[%c0_63, %c112] : memref<2x256xf32, #tpu.memory_space<vmem>>, vector<1x16xf32>
      %111 = vector.shape_cast %110 : vector<1x16xf32> to vector<16xf32>
      %c0_64 = arith.constant 0 : index
      %c15 = arith.constant 15 : index
      %c0_65 = arith.constant 0 : index
      %112 = vector.load %arg8[%c0_64, %c15, %c0_65] : memref<2x27x128xf32, #tpu.memory_space<vmem>>, vector<1x1x16xf32>
      %113 = vector.shape_cast %112 : vector<1x1x16xf32> to vector<16xf32>
      %114 = vector.shape_cast %111 : vector<16xf32> to vector<1x1x16xf32>
      tpu.vector_store %arg8[%c0_64, %c15, %c0_65], %114 {strides = array<i32>} : memref<2x27x128xf32, #tpu.memory_space<vmem>>, vector<1x1x16xf32>,
      %c0_66 = arith.constant 0 : index
      %c128 = arith.constant 128 : index
      %115 = vector.load %arg9[%c0_66, %c128] : memref<2x256xf32, #tpu.memory_space<vmem>>, vector<1x16xf32>
      %116 = vector.shape_cast %115 : vector<1x16xf32> to vector<16xf32>
      %c0_67 = arith.constant 0 : index
      %c16_68 = arith.constant 16 : index
      %c0_69 = arith.constant 0 : index
      %117 = vector.load %arg8[%c0_67, %c16_68, %c0_69] : memref<2x27x128xf32, #tpu.memory_space<vmem>>, vector<1x1x16xf32>
      %118 = vector.shape_cast %117 : vector<1x1x16xf32> to vector<16xf32>
      %119 = vector.shape_cast %116 : vector<16xf32> to vector<1x1x16xf32>
      tpu.vector_store %arg8[%c0_67, %c16_68, %c0_69], %119 {strides = array<i32>} : memref<2x27x128xf32, #tpu.memory_space<vmem>>, vector<1x1x16xf32>,
      %c0_70 = arith.constant 0 : index
      %c144 = arith.constant 144 : index
      %120 = vector.load %arg9[%c0_70, %c144] : memref<2x256xf32, #tpu.memory_space<vmem>>, vector<1x16xf32>
      %121 = vector.shape_cast %120 : vector<1x16xf32> to vector<16xf32>
      %c0_71 = arith.constant 0 : index
      %c17 = arith.constant 17 : index
      %c0_72 = arith.constant 0 : index
      %122 = vector.load %arg8[%c0_71, %c17, %c0_72] : memref<2x27x128xf32, #tpu.memory_space<vmem>>, vector<1x1x16xf32>
      %123 = vector.shape_cast %122 : vector<1x1x16xf32> to vector<16xf32>
      %124 = vector.shape_cast %121 : vector<16xf32> to vector<1x1x16xf32>
      tpu.vector_store %arg8[%c0_71, %c17, %c0_72], %124 {strides = array<i32>} : memref<2x27x128xf32, #tpu.memory_space<vmem>>, vector<1x1x16xf32>,
      %c0_73 = arith.constant 0 : index
      %c160 = arith.constant 160 : index
      %125 = vector.load %arg9[%c0_73, %c160] : memref<2x256xf32, #tpu.memory_space<vmem>>, vector<1x16xf32>
      %126 = vector.shape_cast %125 : vector<1x16xf32> to vector<16xf32>
      %c0_74 = arith.constant 0 : index
      %c18 = arith.constant 18 : index
      %c0_75 = arith.constant 0 : index
      %127 = vector.load %arg8[%c0_74, %c18, %c0_75] : memref<2x27x128xf32, #tpu.memory_space<vmem>>, vector<1x1x16xf32>
      %128 = vector.shape_cast %127 : vector<1x1x16xf32> to vector<16xf32>
      %129 = vector.shape_cast %126 : vector<16xf32> to vector<1x1x16xf32>
      tpu.vector_store %arg8[%c0_74, %c18, %c0_75], %129 {strides = array<i32>} : memref<2x27x128xf32, #tpu.memory_space<vmem>>, vector<1x1x16xf32>,
      %c0_76 = arith.constant 0 : index
      %c176 = arith.constant 176 : index
      %130 = vector.load %arg9[%c0_76, %c176] : memref<2x256xf32, #tpu.memory_space<vmem>>, vector<1x16xf32>
      %131 = vector.shape_cast %130 : vector<1x16xf32> to vector<16xf32>
      %c0_77 = arith.constant 0 : index
      %c19 = arith.constant 19 : index
      %c0_78 = arith.constant 0 : index
      %132 = vector.load %arg8[%c0_77, %c19, %c0_78] : memref<2x27x128xf32, #tpu.memory_space<vmem>>, vector<1x1x16xf32>
      %133 = vector.shape_cast %132 : vector<1x1x16xf32> to vector<16xf32>
      %134 = vector.shape_cast %131 : vector<16xf32> to vector<1x1x16xf32>
      tpu.vector_store %arg8[%c0_77, %c19, %c0_78], %134 {strides = array<i32>} : memref<2x27x128xf32, #tpu.memory_space<vmem>>, vector<1x1x16xf32>,
      %c0_79 = arith.constant 0 : index
      %c192 = arith.constant 192 : index
      %135 = vector.load %arg9[%c0_79, %c192] : memref<2x256xf32, #tpu.memory_space<vmem>>, vector<1x16xf32>
      %136 = vector.shape_cast %135 : vector<1x16xf32> to vector<16xf32>
      %c0_80 = arith.constant 0 : index
      %c20 = arith.constant 20 : index
      %c0_81 = arith.constant 0 : index
      %137 = vector.load %arg8[%c0_80, %c20, %c0_81] : memref<2x27x128xf32, #tpu.memory_space<vmem>>, vector<1x1x16xf32>
      %138 = vector.shape_cast %137 : vector<1x1x16xf32> to vector<16xf32>
      %139 = vector.shape_cast %136 : vector<16xf32> to vector<1x1x16xf32>
      tpu.vector_store %arg8[%c0_80, %c20, %c0_81], %139 {strides = array<i32>} : memref<2x27x128xf32, #tpu.memory_space<vmem>>, vector<1x1x16xf32>,
      %c0_82 = arith.constant 0 : index
      %c208 = arith.constant 208 : index
      %140 = vector.load %arg9[%c0_82, %c208] : memref<2x256xf32, #tpu.memory_space<vmem>>, vector<1x16xf32>
      %141 = vector.shape_cast %140 : vector<1x16xf32> to vector<16xf32>
      %c0_83 = arith.constant 0 : index
      %c21 = arith.constant 21 : index
      %c0_84 = arith.constant 0 : index
      %142 = vector.load %arg8[%c0_83, %c21, %c0_84] : memref<2x27x128xf32, #tpu.memory_space<vmem>>, vector<1x1x16xf32>
      %143 = vector.shape_cast %142 : vector<1x1x16xf32> to vector<16xf32>
      %144 = vector.shape_cast %141 : vector<16xf32> to vector<1x1x16xf32>
      tpu.vector_store %arg8[%c0_83, %c21, %c0_84], %144 {strides = array<i32>} : memref<2x27x128xf32, #tpu.memory_space<vmem>>, vector<1x1x16xf32>,
      %c0_85 = arith.constant 0 : index
      %c224 = arith.constant 224 : index
      %145 = vector.load %arg9[%c0_85, %c224] : memref<2x256xf32, #tpu.memory_space<vmem>>, vector<1x16xf32>
      %146 = vector.shape_cast %145 : vector<1x16xf32> to vector<16xf32>
      %c0_86 = arith.constant 0 : index
      %c22 = arith.constant 22 : index
      %c0_87 = arith.constant 0 : index
      %147 = vector.load %arg8[%c0_86, %c22, %c0_87] : memref<2x27x128xf32, #tpu.memory_space<vmem>>, vector<1x1x16xf32>
      %148 = vector.shape_cast %147 : vector<1x1x16xf32> to vector<16xf32>
      %149 = vector.shape_cast %146 : vector<16xf32> to vector<1x1x16xf32>
      tpu.vector_store %arg8[%c0_86, %c22, %c0_87], %149 {strides = array<i32>} : memref<2x27x128xf32, #tpu.memory_space<vmem>>, vector<1x1x16xf32>,
      %c0_88 = arith.constant 0 : index
      %c240 = arith.constant 240 : index
      %150 = vector.load %arg9[%c0_88, %c240] : memref<2x256xf32, #tpu.memory_space<vmem>>, vector<1x16xf32>
      %151 = vector.shape_cast %150 : vector<1x16xf32> to vector<16xf32>
      %c0_89 = arith.constant 0 : index
      %c23 = arith.constant 23 : index
      %c0_90 = arith.constant 0 : index
      %152 = vector.load %arg8[%c0_89, %c23, %c0_90] : memref<2x27x128xf32, #tpu.memory_space<vmem>>, vector<1x1x16xf32>
      %153 = vector.shape_cast %152 : vector<1x1x16xf32> to vector<16xf32>
      %154 = vector.shape_cast %151 : vector<16xf32> to vector<1x1x16xf32>
      tpu.vector_store %arg8[%c0_89, %c23, %c0_90], %154 {strides = array<i32>} : memref<2x27x128xf32, #tpu.memory_space<vmem>>, vector<1x1x16xf32>,
      %c1_91 = arith.constant 1 : index
      %c0_92 = arith.constant 0 : index
      %155 = vector.load %arg9[%c1_91, %c0_92] : memref<2x256xf32, #tpu.memory_space<vmem>>, vector<1x16xf32>
      %156 = vector.shape_cast %155 : vector<1x16xf32> to vector<16xf32>
      %c1_93 = arith.constant 1 : index
      %c8_94 = arith.constant 8 : index
      %c0_95 = arith.constant 0 : index
      %157 = vector.load %arg8[%c1_93, %c8_94, %c0_95] : memref<2x27x128xf32, #tpu.memory_space<vmem>>, vector<1x1x16xf32>
      %158 = vector.shape_cast %157 : vector<1x1x16xf32> to vector<16xf32>
      %159 = vector.shape_cast %156 : vector<16xf32> to vector<1x1x16xf32>
      tpu.vector_store %arg8[%c1_93, %c8_94, %c0_95], %159 {strides = array<i32>} : memref<2x27x128xf32, #tpu.memory_space<vmem>>, vector<1x1x16xf32>,
      %c1_96 = arith.constant 1 : index
      %c16_97 = arith.constant 16 : index
      %160 = vector.load %arg9[%c1_96, %c16_97] : memref<2x256xf32, #tpu.memory_space<vmem>>, vector<1x16xf32>
      %161 = vector.shape_cast %160 : vector<1x16xf32> to vector<16xf32>
      %c1_98 = arith.constant 1 : index
      %c9_99 = arith.constant 9 : index
      %c0_100 = arith.constant 0 : index
      %162 = vector.load %arg8[%c1_98, %c9_99, %c0_100] : memref<2x27x128xf32, #tpu.memory_space<vmem>>, vector<1x1x16xf32>
      %163 = vector.shape_cast %162 : vector<1x1x16xf32> to vector<16xf32>
      %164 = vector.shape_cast %161 : vector<16xf32> to vector<1x1x16xf32>
      tpu.vector_store %arg8[%c1_98, %c9_99, %c0_100], %164 {strides = array<i32>} : memref<2x27x128xf32, #tpu.memory_space<vmem>>, vector<1x1x16xf32>,
      %c1_101 = arith.constant 1 : index
      %c32_102 = arith.constant 32 : index
      %165 = vector.load %arg9[%c1_101, %c32_102] : memref<2x256xf32, #tpu.memory_space<vmem>>, vector<1x16xf32>
      %166 = vector.shape_cast %165 : vector<1x16xf32> to vector<16xf32>
      %c1_103 = arith.constant 1 : index
      %c10_104 = arith.constant 10 : index
      %c0_105 = arith.constant 0 : index
      %167 = vector.load %arg8[%c1_103, %c10_104, %c0_105] : memref<2x27x128xf32, #tpu.memory_space<vmem>>, vector<1x1x16xf32>
      %168 = vector.shape_cast %167 : vector<1x1x16xf32> to vector<16xf32>
      %169 = vector.shape_cast %166 : vector<16xf32> to vector<1x1x16xf32>
      tpu.vector_store %arg8[%c1_103, %c10_104, %c0_105], %169 {strides = array<i32>} : memref<2x27x128xf32, #tpu.memory_space<vmem>>, vector<1x1x16xf32>,
      %c1_106 = arith.constant 1 : index
      %c48_107 = arith.constant 48 : index
      %170 = vector.load %arg9[%c1_106, %c48_107] : memref<2x256xf32, #tpu.memory_space<vmem>>, vector<1x16xf32>
      %171 = vector.shape_cast %170 : vector<1x16xf32> to vector<16xf32>
      %c1_108 = arith.constant 1 : index
      %c11_109 = arith.constant 11 : index
      %c0_110 = arith.constant 0 : index
      %172 = vector.load %arg8[%c1_108, %c11_109, %c0_110] : memref<2x27x128xf32, #tpu.memory_space<vmem>>, vector<1x1x16xf32>
      %173 = vector.shape_cast %172 : vector<1x1x16xf32> to vector<16xf32>
      %174 = vector.shape_cast %171 : vector<16xf32> to vector<1x1x16xf32>
      tpu.vector_store %arg8[%c1_108, %c11_109, %c0_110], %174 {strides = array<i32>} : memref<2x27x128xf32, #tpu.memory_space<vmem>>, vector<1x1x16xf32>,
      %c1_111 = arith.constant 1 : index
      %c64_112 = arith.constant 64 : index
      %175 = vector.load %arg9[%c1_111, %c64_112] : memref<2x256xf32, #tpu.memory_space<vmem>>, vector<1x16xf32>
      %176 = vector.shape_cast %175 : vector<1x16xf32> to vector<16xf32>
      %c1_113 = arith.constant 1 : index
      %c12_114 = arith.constant 12 : index
      %c0_115 = arith.constant 0 : index
      %177 = vector.load %arg8[%c1_113, %c12_114, %c0_115] : memref<2x27x128xf32, #tpu.memory_space<vmem>>, vector<1x1x16xf32>
      %178 = vector.shape_cast %177 : vector<1x1x16xf32> to vector<16xf32>
      %179 = vector.shape_cast %176 : vector<16xf32> to vector<1x1x16xf32>
      tpu.vector_store %arg8[%c1_113, %c12_114, %c0_115], %179 {strides = array<i32>} : memref<2x27x128xf32, #tpu.memory_space<vmem>>, vector<1x1x16xf32>,
      %c1_116 = arith.constant 1 : index
      %c80_117 = arith.constant 80 : index
      %180 = vector.load %arg9[%c1_116, %c80_117] : memref<2x256xf32, #tpu.memory_space<vmem>>, vector<1x16xf32>
      %181 = vector.shape_cast %180 : vector<1x16xf32> to vector<16xf32>
      %c1_118 = arith.constant 1 : index
      %c13_119 = arith.constant 13 : index
      %c0_120 = arith.constant 0 : index
      %182 = vector.load %arg8[%c1_118, %c13_119, %c0_120] : memref<2x27x128xf32, #tpu.memory_space<vmem>>, vector<1x1x16xf32>
      %183 = vector.shape_cast %182 : vector<1x1x16xf32> to vector<16xf32>
      %184 = vector.shape_cast %181 : vector<16xf32> to vector<1x1x16xf32>
      tpu.vector_store %arg8[%c1_118, %c13_119, %c0_120], %184 {strides = array<i32>} : memref<2x27x128xf32, #tpu.memory_space<vmem>>, vector<1x1x16xf32>,
      %c1_121 = arith.constant 1 : index
      %c96_122 = arith.constant 96 : index
      %185 = vector.load %arg9[%c1_121, %c96_122] : memref<2x256xf32, #tpu.memory_space<vmem>>, vector<1x16xf32>
      %186 = vector.shape_cast %185 : vector<1x16xf32> to vector<16xf32>
      %c1_123 = arith.constant 1 : index
      %c14_124 = arith.constant 14 : index
      %c0_125 = arith.constant 0 : index
      %187 = vector.load %arg8[%c1_123, %c14_124, %c0_125] : memref<2x27x128xf32, #tpu.memory_space<vmem>>, vector<1x1x16xf32>
      %188 = vector.shape_cast %187 : vector<1x1x16xf32> to vector<16xf32>
      %189 = vector.shape_cast %186 : vector<16xf32> to vector<1x1x16xf32>
      tpu.vector_store %arg8[%c1_123, %c14_124, %c0_125], %189 {strides = array<i32>} : memref<2x27x128xf32, #tpu.memory_space<vmem>>, vector<1x1x16xf32>,
      %c1_126 = arith.constant 1 : index
      %c112_127 = arith.constant 112 : index
      %190 = vector.load %arg9[%c1_126, %c112_127] : memref<2x256xf32, #tpu.memory_space<vmem>>, vector<1x16xf32>
      %191 = vector.shape_cast %190 : vector<1x16xf32> to vector<16xf32>
      %c1_128 = arith.constant 1 : index
      %c15_129 = arith.constant 15 : index
      %c0_130 = arith.constant 0 : index
      %192 = vector.load %arg8[%c1_128, %c15_129, %c0_130] : memref<2x27x128xf32, #tpu.memory_space<vmem>>, vector<1x1x16xf32>
      %193 = vector.shape_cast %192 : vector<1x1x16xf32> to vector<16xf32>
      %194 = vector.shape_cast %191 : vector<16xf32> to vector<1x1x16xf32>
      tpu.vector_store %arg8[%c1_128, %c15_129, %c0_130], %194 {strides = array<i32>} : memref<2x27x128xf32, #tpu.memory_space<vmem>>, vector<1x1x16xf32>,
      %c1_131 = arith.constant 1 : index
      %c128_132 = arith.constant 128 : index
      %195 = vector.load %arg9[%c1_131, %c128_132] : memref<2x256xf32, #tpu.memory_space<vmem>>, vector<1x16xf32>
      %196 = vector.shape_cast %195 : vector<1x16xf32> to vector<16xf32>
      %c1_133 = arith.constant 1 : index
      %c16_134 = arith.constant 16 : index
      %c0_135 = arith.constant 0 : index
      %197 = vector.load %arg8[%c1_133, %c16_134, %c0_135] : memref<2x27x128xf32, #tpu.memory_space<vmem>>, vector<1x1x16xf32>
      %198 = vector.shape_cast %197 : vector<1x1x16xf32> to vector<16xf32>
      %199 = vector.shape_cast %196 : vector<16xf32> to vector<1x1x16xf32>
      tpu.vector_store %arg8[%c1_133, %c16_134, %c0_135], %199 {strides = array<i32>} : memref<2x27x128xf32, #tpu.memory_space<vmem>>, vector<1x1x16xf32>,
      %c1_136 = arith.constant 1 : index
      %c144_137 = arith.constant 144 : index
      %200 = vector.load %arg9[%c1_136, %c144_137] : memref<2x256xf32, #tpu.memory_space<vmem>>, vector<1x16xf32>
      %201 = vector.shape_cast %200 : vector<1x16xf32> to vector<16xf32>
      %c1_138 = arith.constant 1 : index
      %c17_139 = arith.constant 17 : index
      %c0_140 = arith.constant 0 : index
      %202 = vector.load %arg8[%c1_138, %c17_139, %c0_140] : memref<2x27x128xf32, #tpu.memory_space<vmem>>, vector<1x1x16xf32>
      %203 = vector.shape_cast %202 : vector<1x1x16xf32> to vector<16xf32>
      %204 = vector.shape_cast %201 : vector<16xf32> to vector<1x1x16xf32>
      tpu.vector_store %arg8[%c1_138, %c17_139, %c0_140], %204 {strides = array<i32>} : memref<2x27x128xf32, #tpu.memory_space<vmem>>, vector<1x1x16xf32>,
      %c1_141 = arith.constant 1 : index
      %c160_142 = arith.constant 160 : index
      %205 = vector.load %arg9[%c1_141, %c160_142] : memref<2x256xf32, #tpu.memory_space<vmem>>, vector<1x16xf32>
      %206 = vector.shape_cast %205 : vector<1x16xf32> to vector<16xf32>
      %c1_143 = arith.constant 1 : index
      %c18_144 = arith.constant 18 : index
      %c0_145 = arith.constant 0 : index
      %207 = vector.load %arg8[%c1_143, %c18_144, %c0_145] : memref<2x27x128xf32, #tpu.memory_space<vmem>>, vector<1x1x16xf32>
      %208 = vector.shape_cast %207 : vector<1x1x16xf32> to vector<16xf32>
      %209 = vector.shape_cast %206 : vector<16xf32> to vector<1x1x16xf32>
      tpu.vector_store %arg8[%c1_143, %c18_144, %c0_145], %209 {strides = array<i32>} : memref<2x27x128xf32, #tpu.memory_space<vmem>>, vector<1x1x16xf32>,
      %c1_146 = arith.constant 1 : index
      %c176_147 = arith.constant 176 : index
      %210 = vector.load %arg9[%c1_146, %c176_147] : memref<2x256xf32, #tpu.memory_space<vmem>>, vector<1x16xf32>
      %211 = vector.shape_cast %210 : vector<1x16xf32> to vector<16xf32>
      %c1_148 = arith.constant 1 : index
      %c19_149 = arith.constant 19 : index
      %c0_150 = arith.constant 0 : index
      %212 = vector.load %arg8[%c1_148, %c19_149, %c0_150] : memref<2x27x128xf32, #tpu.memory_space<vmem>>, vector<1x1x16xf32>
      %213 = vector.shape_cast %212 : vector<1x1x16xf32> to vector<16xf32>
      %214 = vector.shape_cast %211 : vector<16xf32> to vector<1x1x16xf32>
      tpu.vector_store %arg8[%c1_148, %c19_149, %c0_150], %214 {strides = array<i32>} : memref<2x27x128xf32, #tpu.memory_space<vmem>>, vector<1x1x16xf32>,
      %c1_151 = arith.constant 1 : index
      %c192_152 = arith.constant 192 : index
      %215 = vector.load %arg9[%c1_151, %c192_152] : memref<2x256xf32, #tpu.memory_space<vmem>>, vector<1x16xf32>
      %216 = vector.shape_cast %215 : vector<1x16xf32> to vector<16xf32>
      %c1_153 = arith.constant 1 : index
      %c20_154 = arith.constant 20 : index
      %c0_155 = arith.constant 0 : index
      %217 = vector.load %arg8[%c1_153, %c20_154, %c0_155] : memref<2x27x128xf32, #tpu.memory_space<vmem>>, vector<1x1x16xf32>
      %218 = vector.shape_cast %217 : vector<1x1x16xf32> to vector<16xf32>
      %219 = vector.shape_cast %216 : vector<16xf32> to vector<1x1x16xf32>
      tpu.vector_store %arg8[%c1_153, %c20_154, %c0_155], %219 {strides = array<i32>} : memref<2x27x128xf32, #tpu.memory_space<vmem>>, vector<1x1x16xf32>,
      %c1_156 = arith.constant 1 : index
      %c208_157 = arith.constant 208 : index
      %220 = vector.load %arg9[%c1_156, %c208_157] : memref<2x256xf32, #tpu.memory_space<vmem>>, vector<1x16xf32>
      %221 = vector.shape_cast %220 : vector<1x16xf32> to vector<16xf32>
      %c1_158 = arith.constant 1 : index
      %c21_159 = arith.constant 21 : index
      %c0_160 = arith.constant 0 : index
      %222 = vector.load %arg8[%c1_158, %c21_159, %c0_160] : memref<2x27x128xf32, #tpu.memory_space<vmem>>, vector<1x1x16xf32>
      %223 = vector.shape_cast %222 : vector<1x1x16xf32> to vector<16xf32>
      %224 = vector.shape_cast %221 : vector<16xf32> to vector<1x1x16xf32>
      tpu.vector_store %arg8[%c1_158, %c21_159, %c0_160], %224 {strides = array<i32>} : memref<2x27x128xf32, #tpu.memory_space<vmem>>, vector<1x1x16xf32>,
      %c1_161 = arith.constant 1 : index
      %c224_162 = arith.constant 224 : index
      %225 = vector.load %arg9[%c1_161, %c224_162] : memref<2x256xf32, #tpu.memory_space<vmem>>, vector<1x16xf32>
      %226 = vector.shape_cast %225 : vector<1x16xf32> to vector<16xf32>
      %c1_163 = arith.constant 1 : index
      %c22_164 = arith.constant 22 : index
      %c0_165 = arith.constant 0 : index
      %227 = vector.load %arg8[%c1_163, %c22_164, %c0_165] : memref<2x27x128xf32, #tpu.memory_space<vmem>>, vector<1x1x16xf32>
      %228 = vector.shape_cast %227 : vector<1x1x16xf32> to vector<16xf32>
      %229 = vector.shape_cast %226 : vector<16xf32> to vector<1x1x16xf32>
      tpu.vector_store %arg8[%c1_163, %c22_164, %c0_165], %229 {strides = array<i32>} : memref<2x27x128xf32, #tpu.memory_space<vmem>>, vector<1x1x16xf32>,
      %c1_166 = arith.constant 1 : index
      %c240_167 = arith.constant 240 : index
      %230 = vector.load %arg9[%c1_166, %c240_167] : memref<2x256xf32, #tpu.memory_space<vmem>>, vector<1x16xf32>
      %231 = vector.shape_cast %230 : vector<1x16xf32> to vector<16xf32>
      %c1_168 = arith.constant 1 : index
      %c23_169 = arith.constant 23 : index
      %c0_170 = arith.constant 0 : index
      %232 = vector.load %arg8[%c1_168, %c23_169, %c0_170] : memref<2x27x128xf32, #tpu.memory_space<vmem>>, vector<1x1x16xf32>
      %233 = vector.shape_cast %232 : vector<1x1x16xf32> to vector<16xf32>
      %234 = vector.shape_cast %231 : vector<16xf32> to vector<1x1x16xf32>
      tpu.vector_store %arg8[%c1_168, %c23_169, %c0_170], %234 {strides = array<i32>} : memref<2x27x128xf32, #tpu.memory_space<vmem>>, vector<1x1x16xf32>,
      %c0_171 = arith.constant 0 : index
      %c0_172 = arith.constant 0 : index
      %c0_173 = arith.constant 0 : index
      %235 = vector.load %arg8[%c0_171, %c0_172, %c0_173] : memref<2x27x128xf32, #tpu.memory_space<vmem>>, vector<1x27x128xf32>
      %236 = vector.shape_cast %235 : vector<1x27x128xf32> to vector<27x128xf32>
      %c3_i32 = arith.constant 3 : i32
      %237 = tpu.dynamic_rotate %236 by %c3_i32 dim 1 : vector<27x128xf32>, i32 -> vector<27x128xf32>
      %c0_174 = arith.constant 0 : index
      %c0_175 = arith.constant 0 : index
      %238 = vector.load %arg10[%c0_174, %c0_175] : memref<27x128xf32, #tpu.memory_space<vmem>>, vector<27x128xf32>
      tpu.vector_store %arg10[%c0_174, %c0_175], %237 {strides = array<i32>} : memref<27x128xf32, #tpu.memory_space<vmem>>, vector<27x128xf32>,
      %c0_176 = arith.constant 0 : index
      %239 = memref.load %arg3[%c0_176] : memref<98xf32, #tpu.memory_space<smem>>
      %c5 = arith.constant 5 : index
      %c0_177 = arith.constant 0 : index
      %240 = vector.load %arg10[%c5, %c0_177] : memref<27x128xf32, #tpu.memory_space<vmem>>, vector<16x128xf32>
      %241 = vector.broadcast %239 : f32 to vector<16x128xf32>
      %242 = arith.mulf %241, %240 : vector<16x128xf32>
      %243 = arith.addf %60, %242 : vector<16x128xf32>
      %c7 = arith.constant 7 : index
      %244 = memref.load %arg3[%c7] : memref<98xf32, #tpu.memory_space<smem>>
      %c6 = arith.constant 6 : index
      %c0_178 = arith.constant 0 : index
      %245 = vector.load %arg10[%c6, %c0_178] : memref<27x128xf32, #tpu.memory_space<vmem>>, vector<16x128xf32>
      %246 = vector.broadcast %244 : f32 to vector<16x128xf32>
      %247 = arith.mulf %246, %245 : vector<16x128xf32>
      %248 = arith.addf %243, %247 : vector<16x128xf32>
      %c14_179 = arith.constant 14 : index
      %249 = memref.load %arg3[%c14_179] : memref<98xf32, #tpu.memory_space<smem>>
      %c7_180 = arith.constant 7 : index
      %c0_181 = arith.constant 0 : index
      %250 = vector.load %arg10[%c7_180, %c0_181] : memref<27x128xf32, #tpu.memory_space<vmem>>, vector<16x128xf32>
      %251 = vector.broadcast %249 : f32 to vector<16x128xf32>
      %252 = arith.mulf %251, %250 : vector<16x128xf32>
      %253 = arith.addf %248, %252 : vector<16x128xf32>
      %c21_182 = arith.constant 21 : index
      %254 = memref.load %arg3[%c21_182] : memref<98xf32, #tpu.memory_space<smem>>
      %c8_183 = arith.constant 8 : index
      %c0_184 = arith.constant 0 : index
      %255 = vector.load %arg10[%c8_183, %c0_184] : memref<27x128xf32, #tpu.memory_space<vmem>>, vector<16x128xf32>
      %256 = vector.broadcast %254 : f32 to vector<16x128xf32>
      %257 = arith.mulf %256, %255 : vector<16x128xf32>
      %258 = arith.addf %253, %257 : vector<16x128xf32>
      %c28 = arith.constant 28 : index
      %259 = memref.load %arg3[%c28] : memref<98xf32, #tpu.memory_space<smem>>
      %c9_185 = arith.constant 9 : index
      %c0_186 = arith.constant 0 : index
      %260 = vector.load %arg10[%c9_185, %c0_186] : memref<27x128xf32, #tpu.memory_space<vmem>>, vector<16x128xf32>
      %261 = vector.broadcast %259 : f32 to vector<16x128xf32>
      %262 = arith.mulf %261, %260 : vector<16x128xf32>
      %263 = arith.addf %258, %262 : vector<16x128xf32>
      %c35 = arith.constant 35 : index
      %264 = memref.load %arg3[%c35] : memref<98xf32, #tpu.memory_space<smem>>
      %c10_187 = arith.constant 10 : index
      %c0_188 = arith.constant 0 : index
      %265 = vector.load %arg10[%c10_187, %c0_188] : memref<27x128xf32, #tpu.memory_space<vmem>>, vector<16x128xf32>
      %266 = vector.broadcast %264 : f32 to vector<16x128xf32>
      %267 = arith.mulf %266, %265 : vector<16x128xf32>
      %268 = arith.addf %263, %267 : vector<16x128xf32>
      %c42 = arith.constant 42 : index
      %269 = memref.load %arg3[%c42] : memref<98xf32, #tpu.memory_space<smem>>
      %c11_189 = arith.constant 11 : index
      %c0_190 = arith.constant 0 : index
      %270 = vector.load %arg10[%c11_189, %c0_190] : memref<27x128xf32, #tpu.memory_space<vmem>>, vector<16x128xf32>
      %271 = vector.broadcast %269 : f32 to vector<16x128xf32>
      %272 = arith.mulf %271, %270 : vector<16x128xf32>
      %273 = arith.addf %268, %272 : vector<16x128xf32>
      %c0_191 = arith.constant 0 : index
      %c0_192 = arith.constant 0 : index
      %c0_193 = arith.constant 0 : index
      %274 = vector.load %arg8[%c0_191, %c0_192, %c0_193] : memref<2x27x128xf32, #tpu.memory_space<vmem>>, vector<1x27x128xf32>
      %275 = vector.shape_cast %274 : vector<1x27x128xf32> to vector<27x128xf32>
      %c2_i32 = arith.constant 2 : i32
      %276 = tpu.dynamic_rotate %275 by %c2_i32 dim 1 : vector<27x128xf32>, i32 -> vector<27x128xf32>
      %c0_194 = arith.constant 0 : index
      %c0_195 = arith.constant 0 : index
      %277 = vector.load %arg10[%c0_194, %c0_195] : memref<27x128xf32, #tpu.memory_space<vmem>>, vector<27x128xf32>
      tpu.vector_store %arg10[%c0_194, %c0_195], %276 {strides = array<i32>} : memref<27x128xf32, #tpu.memory_space<vmem>>, vector<27x128xf32>,
      %c1_196 = arith.constant 1 : index
      %278 = memref.load %arg3[%c1_196] : memref<98xf32, #tpu.memory_space<smem>>
      %c5_197 = arith.constant 5 : index
      %c0_198 = arith.constant 0 : index
      %279 = vector.load %arg10[%c5_197, %c0_198] : memref<27x128xf32, #tpu.memory_space<vmem>>, vector<16x128xf32>
      %280 = vector.broadcast %278 : f32 to vector<16x128xf32>
      %281 = arith.mulf %280, %279 : vector<16x128xf32>
      %282 = arith.addf %273, %281 : vector<16x128xf32>
      %c8_199 = arith.constant 8 : index
      %283 = memref.load %arg3[%c8_199] : memref<98xf32, #tpu.memory_space<smem>>
      %c6_200 = arith.constant 6 : index
      %c0_201 = arith.constant 0 : index
      %284 = vector.load %arg10[%c6_200, %c0_201] : memref<27x128xf32, #tpu.memory_space<vmem>>, vector<16x128xf32>
      %285 = vector.broadcast %283 : f32 to vector<16x128xf32>
      %286 = arith.mulf %285, %284 : vector<16x128xf32>
      %287 = arith.addf %282, %286 : vector<16x128xf32>
      %c15_202 = arith.constant 15 : index
      %288 = memref.load %arg3[%c15_202] : memref<98xf32, #tpu.memory_space<smem>>
      %c7_203 = arith.constant 7 : index
      %c0_204 = arith.constant 0 : index
      %289 = vector.load %arg10[%c7_203, %c0_204] : memref<27x128xf32, #tpu.memory_space<vmem>>, vector<16x128xf32>
      %290 = vector.broadcast %288 : f32 to vector<16x128xf32>
      %291 = arith.mulf %290, %289 : vector<16x128xf32>
      %292 = arith.addf %287, %291 : vector<16x128xf32>
      %c22_205 = arith.constant 22 : index
      %293 = memref.load %arg3[%c22_205] : memref<98xf32, #tpu.memory_space<smem>>
      %c8_206 = arith.constant 8 : index
      %c0_207 = arith.constant 0 : index
      %294 = vector.load %arg10[%c8_206, %c0_207] : memref<27x128xf32, #tpu.memory_space<vmem>>, vector<16x128xf32>
      %295 = vector.broadcast %293 : f32 to vector<16x128xf32>
      %296 = arith.mulf %295, %294 : vector<16x128xf32>
      %297 = arith.addf %292, %296 : vector<16x128xf32>
      %c29 = arith.constant 29 : index
      %298 = memref.load %arg3[%c29] : memref<98xf32, #tpu.memory_space<smem>>
      %c9_208 = arith.constant 9 : index
      %c0_209 = arith.constant 0 : index
      %299 = vector.load %arg10[%c9_208, %c0_209] : memref<27x128xf32, #tpu.memory_space<vmem>>, vector<16x128xf32>
      %300 = vector.broadcast %298 : f32 to vector<16x128xf32>
      %301 = arith.mulf %300, %299 : vector<16x128xf32>
      %302 = arith.addf %297, %301 : vector<16x128xf32>
      %c36 = arith.constant 36 : index
      %303 = memref.load %arg3[%c36] : memref<98xf32, #tpu.memory_space<smem>>
      %c10_210 = arith.constant 10 : index
      %c0_211 = arith.constant 0 : index
      %304 = vector.load %arg10[%c10_210, %c0_211] : memref<27x128xf32, #tpu.memory_space<vmem>>, vector<16x128xf32>
      %305 = vector.broadcast %303 : f32 to vector<16x128xf32>
      %306 = arith.mulf %305, %304 : vector<16x128xf32>
      %307 = arith.addf %302, %306 : vector<16x128xf32>
      %c43 = arith.constant 43 : index
      %308 = memref.load %arg3[%c43] : memref<98xf32, #tpu.memory_space<smem>>
      %c11_212 = arith.constant 11 : index
      %c0_213 = arith.constant 0 : index
      %309 = vector.load %arg10[%c11_212, %c0_213] : memref<27x128xf32, #tpu.memory_space<vmem>>, vector<16x128xf32>
      %310 = vector.broadcast %308 : f32 to vector<16x128xf32>
      %311 = arith.mulf %310, %309 : vector<16x128xf32>
      %312 = arith.addf %307, %311 : vector<16x128xf32>
      %c0_214 = arith.constant 0 : index
      %c0_215 = arith.constant 0 : index
      %c0_216 = arith.constant 0 : index
      %313 = vector.load %arg8[%c0_214, %c0_215, %c0_216] : memref<2x27x128xf32, #tpu.memory_space<vmem>>, vector<1x27x128xf32>
      %314 = vector.shape_cast %313 : vector<1x27x128xf32> to vector<27x128xf32>
      %c1_i32_217 = arith.constant 1 : i32
      %315 = tpu.dynamic_rotate %314 by %c1_i32_217 dim 1 : vector<27x128xf32>, i32 -> vector<27x128xf32>
      %c0_218 = arith.constant 0 : index
      %c0_219 = arith.constant 0 : index
      %316 = vector.load %arg10[%c0_218, %c0_219] : memref<27x128xf32, #tpu.memory_space<vmem>>, vector<27x128xf32>
      tpu.vector_store %arg10[%c0_218, %c0_219], %315 {strides = array<i32>} : memref<27x128xf32, #tpu.memory_space<vmem>>, vector<27x128xf32>,
      %c2_220 = arith.constant 2 : index
      %317 = memref.load %arg3[%c2_220] : memref<98xf32, #tpu.memory_space<smem>>
      %c5_221 = arith.constant 5 : index
      %c0_222 = arith.constant 0 : index
      %318 = vector.load %arg10[%c5_221, %c0_222] : memref<27x128xf32, #tpu.memory_space<vmem>>, vector<16x128xf32>
      %319 = vector.broadcast %317 : f32 to vector<16x128xf32>
      %320 = arith.mulf %319, %318 : vector<16x128xf32>
      %321 = arith.addf %312, %320 : vector<16x128xf32>
      %c9_223 = arith.constant 9 : index
      %322 = memref.load %arg3[%c9_223] : memref<98xf32, #tpu.memory_space<smem>>
      %c6_224 = arith.constant 6 : index
      %c0_225 = arith.constant 0 : index
      %323 = vector.load %arg10[%c6_224, %c0_225] : memref<27x128xf32, #tpu.memory_space<vmem>>, vector<16x128xf32>
      %324 = vector.broadcast %322 : f32 to vector<16x128xf32>
      %325 = arith.mulf %324, %323 : vector<16x128xf32>
      %326 = arith.addf %321, %325 : vector<16x128xf32>
      %c16_226 = arith.constant 16 : index
      %327 = memref.load %arg3[%c16_226] : memref<98xf32, #tpu.memory_space<smem>>
      %c7_227 = arith.constant 7 : index
      %c0_228 = arith.constant 0 : index
      %328 = vector.load %arg10[%c7_227, %c0_228] : memref<27x128xf32, #tpu.memory_space<vmem>>, vector<16x128xf32>
      %329 = vector.broadcast %327 : f32 to vector<16x128xf32>
      %330 = arith.mulf %329, %328 : vector<16x128xf32>
      %331 = arith.addf %326, %330 : vector<16x128xf32>
      %c23_229 = arith.constant 23 : index
      %332 = memref.load %arg3[%c23_229] : memref<98xf32, #tpu.memory_space<smem>>
      %c8_230 = arith.constant 8 : index
      %c0_231 = arith.constant 0 : index
      %333 = vector.load %arg10[%c8_230, %c0_231] : memref<27x128xf32, #tpu.memory_space<vmem>>, vector<16x128xf32>
      %334 = vector.broadcast %332 : f32 to vector<16x128xf32>
      %335 = arith.mulf %334, %333 : vector<16x128xf32>
      %336 = arith.addf %331, %335 : vector<16x128xf32>
      %c30 = arith.constant 30 : index
      %337 = memref.load %arg3[%c30] : memref<98xf32, #tpu.memory_space<smem>>
      %c9_232 = arith.constant 9 : index
      %c0_233 = arith.constant 0 : index
      %338 = vector.load %arg10[%c9_232, %c0_233] : memref<27x128xf32, #tpu.memory_space<vmem>>, vector<16x128xf32>
      %339 = vector.broadcast %337 : f32 to vector<16x128xf32>
      %340 = arith.mulf %339, %338 : vector<16x128xf32>
      %341 = arith.addf %336, %340 : vector<16x128xf32>
      %c37 = arith.constant 37 : index
      %342 = memref.load %arg3[%c37] : memref<98xf32, #tpu.memory_space<smem>>
      %c10_234 = arith.constant 10 : index
      %c0_235 = arith.constant 0 : index
      %343 = vector.load %arg10[%c10_234, %c0_235] : memref<27x128xf32, #tpu.memory_space<vmem>>, vector<16x128xf32>
      %344 = vector.broadcast %342 : f32 to vector<16x128xf32>
      %345 = arith.mulf %344, %343 : vector<16x128xf32>
      %346 = arith.addf %341, %345 : vector<16x128xf32>
      %c44 = arith.constant 44 : index
      %347 = memref.load %arg3[%c44] : memref<98xf32, #tpu.memory_space<smem>>
      %c11_236 = arith.constant 11 : index
      %c0_237 = arith.constant 0 : index
      %348 = vector.load %arg10[%c11_236, %c0_237] : memref<27x128xf32, #tpu.memory_space<vmem>>, vector<16x128xf32>
      %349 = vector.broadcast %347 : f32 to vector<16x128xf32>
      %350 = arith.mulf %349, %348 : vector<16x128xf32>
      %351 = arith.addf %346, %350 : vector<16x128xf32>
      %c3_238 = arith.constant 3 : index
      %352 = memref.load %arg3[%c3_238] : memref<98xf32, #tpu.memory_space<smem>>
      %c0_i32_239 = arith.constant 0 : i32
      %c0_i32_240 = arith.constant 0 : i32
      %c0_i32_241 = arith.constant 0 : i32
      %353 = tpu.memref_slice %arg8[%c0_i32_239, %c0_i32_240, %c0_i32_241] : memref<2x27x128xf32, #tpu.memory_space<vmem>> -> memref<1x27x128xf32, #tpu.memory_space<vmem>>
      %354 = tpu.memref_squeeze %353 : memref<1x27x128xf32, #tpu.memory_space<vmem>> -> memref<27x128xf32, #tpu.memory_space<vmem>>
      %c5_242 = arith.constant 5 : index
      %c0_243 = arith.constant 0 : index
      %355 = vector.load %354[%c5_242, %c0_243] : memref<27x128xf32, #tpu.memory_space<vmem>>, vector<16x128xf32>
      %356 = vector.broadcast %352 : f32 to vector<16x128xf32>
      %357 = arith.mulf %356, %355 : vector<16x128xf32>
      %358 = arith.addf %351, %357 : vector<16x128xf32>
      %c10_244 = arith.constant 10 : index
      %359 = memref.load %arg3[%c10_244] : memref<98xf32, #tpu.memory_space<smem>>
      %c0_i32_245 = arith.constant 0 : i32
      %c0_i32_246 = arith.constant 0 : i32
      %c0_i32_247 = arith.constant 0 : i32
      %360 = tpu.memref_slice %arg8[%c0_i32_245, %c0_i32_246, %c0_i32_247] : memref<2x27x128xf32, #tpu.memory_space<vmem>> -> memref<1x27x128xf32, #tpu.memory_space<vmem>>
      %361 = tpu.memref_squeeze %360 : memref<1x27x128xf32, #tpu.memory_space<vmem>> -> memref<27x128xf32, #tpu.memory_space<vmem>>
      %c6_248 = arith.constant 6 : index
      %c0_249 = arith.constant 0 : index
      %362 = vector.load %361[%c6_248, %c0_249] : memref<27x128xf32, #tpu.memory_space<vmem>>, vector<16x128xf32>
      %363 = vector.broadcast %359 : f32 to vector<16x128xf32>
      %364 = arith.mulf %363, %362 : vector<16x128xf32>
      %365 = arith.addf %358, %364 : vector<16x128xf32>
      %c17_250 = arith.constant 17 : index
      %366 = memref.load %arg3[%c17_250] : memref<98xf32, #tpu.memory_space<smem>>
      %c0_i32_251 = arith.constant 0 : i32
      %c0_i32_252 = arith.constant 0 : i32
      %c0_i32_253 = arith.constant 0 : i32
      %367 = tpu.memref_slice %arg8[%c0_i32_251, %c0_i32_252, %c0_i32_253] : memref<2x27x128xf32, #tpu.memory_space<vmem>> -> memref<1x27x128xf32, #tpu.memory_space<vmem>>
      %368 = tpu.memref_squeeze %367 : memref<1x27x128xf32, #tpu.memory_space<vmem>> -> memref<27x128xf32, #tpu.memory_space<vmem>>
      %c7_254 = arith.constant 7 : index
      %c0_255 = arith.constant 0 : index
      %369 = vector.load %368[%c7_254, %c0_255] : memref<27x128xf32, #tpu.memory_space<vmem>>, vector<16x128xf32>
      %370 = vector.broadcast %366 : f32 to vector<16x128xf32>
      %371 = arith.mulf %370, %369 : vector<16x128xf32>
      %372 = arith.addf %365, %371 : vector<16x128xf32>
      %c24_256 = arith.constant 24 : index
      %373 = memref.load %arg3[%c24_256] : memref<98xf32, #tpu.memory_space<smem>>
      %c0_i32_257 = arith.constant 0 : i32
      %c0_i32_258 = arith.constant 0 : i32
      %c0_i32_259 = arith.constant 0 : i32
      %374 = tpu.memref_slice %arg8[%c0_i32_257, %c0_i32_258, %c0_i32_259] : memref<2x27x128xf32, #tpu.memory_space<vmem>> -> memref<1x27x128xf32, #tpu.memory_space<vmem>>
      %375 = tpu.memref_squeeze %374 : memref<1x27x128xf32, #tpu.memory_space<vmem>> -> memref<27x128xf32, #tpu.memory_space<vmem>>
      %c8_260 = arith.constant 8 : index
      %c0_261 = arith.constant 0 : index
      %376 = vector.load %375[%c8_260, %c0_261] : memref<27x128xf32, #tpu.memory_space<vmem>>, vector<16x128xf32>
      %377 = vector.broadcast %373 : f32 to vector<16x128xf32>
      %378 = arith.mulf %377, %376 : vector<16x128xf32>
      %379 = arith.addf %372, %378 : vector<16x128xf32>
      %c31 = arith.constant 31 : index
      %380 = memref.load %arg3[%c31] : memref<98xf32, #tpu.memory_space<smem>>
      %c0_i32_262 = arith.constant 0 : i32
      %c0_i32_263 = arith.constant 0 : i32
      %c0_i32_264 = arith.constant 0 : i32
      %381 = tpu.memref_slice %arg8[%c0_i32_262, %c0_i32_263, %c0_i32_264] : memref<2x27x128xf32, #tpu.memory_space<vmem>> -> memref<1x27x128xf32, #tpu.memory_space<vmem>>
      %382 = tpu.memref_squeeze %381 : memref<1x27x128xf32, #tpu.memory_space<vmem>> -> memref<27x128xf32, #tpu.memory_space<vmem>>
      %c9_265 = arith.constant 9 : index
      %c0_266 = arith.constant 0 : index
      %383 = vector.load %382[%c9_265, %c0_266] : memref<27x128xf32, #tpu.memory_space<vmem>>, vector<16x128xf32>
      %384 = vector.broadcast %380 : f32 to vector<16x128xf32>
      %385 = arith.mulf %384, %383 : vector<16x128xf32>
      %386 = arith.addf %379, %385 : vector<16x128xf32>
      %c38 = arith.constant 38 : index
      %387 = memref.load %arg3[%c38] : memref<98xf32, #tpu.memory_space<smem>>
      %c0_i32_267 = arith.constant 0 : i32
      %c0_i32_268 = arith.constant 0 : i32
      %c0_i32_269 = arith.constant 0 : i32
      %388 = tpu.memref_slice %arg8[%c0_i32_267, %c0_i32_268, %c0_i32_269] : memref<2x27x128xf32, #tpu.memory_space<vmem>> -> memref<1x27x128xf32, #tpu.memory_space<vmem>>
      %389 = tpu.memref_squeeze %388 : memref<1x27x128xf32, #tpu.memory_space<vmem>> -> memref<27x128xf32, #tpu.memory_space<vmem>>
      %c10_270 = arith.constant 10 : index
      %c0_271 = arith.constant 0 : index
      %390 = vector.load %389[%c10_270, %c0_271] : memref<27x128xf32, #tpu.memory_space<vmem>>, vector<16x128xf32>
      %391 = vector.broadcast %387 : f32 to vector<16x128xf32>
      %392 = arith.mulf %391, %390 : vector<16x128xf32>
      %393 = arith.addf %386, %392 : vector<16x128xf32>
      %c45 = arith.constant 45 : index
      %394 = memref.load %arg3[%c45] : memref<98xf32, #tpu.memory_space<smem>>
      %c0_i32_272 = arith.constant 0 : i32
      %c0_i32_273 = arith.constant 0 : i32
      %c0_i32_274 = arith.constant 0 : i32
      %395 = tpu.memref_slice %arg8[%c0_i32_272, %c0_i32_273, %c0_i32_274] : memref<2x27x128xf32, #tpu.memory_space<vmem>> -> memref<1x27x128xf32, #tpu.memory_space<vmem>>
      %396 = tpu.memref_squeeze %395 : memref<1x27x128xf32, #tpu.memory_space<vmem>> -> memref<27x128xf32, #tpu.memory_space<vmem>>
      %c11_275 = arith.constant 11 : index
      %c0_276 = arith.constant 0 : index
      %397 = vector.load %396[%c11_275, %c0_276] : memref<27x128xf32, #tpu.memory_space<vmem>>, vector<16x128xf32>
      %398 = vector.broadcast %394 : f32 to vector<16x128xf32>
      %399 = arith.mulf %398, %397 : vector<16x128xf32>
      %400 = arith.addf %393, %399 : vector<16x128xf32>
      %c0_277 = arith.constant 0 : index
      %c0_278 = arith.constant 0 : index
      %c0_279 = arith.constant 0 : index
      %401 = vector.load %arg8[%c0_277, %c0_278, %c0_279] : memref<2x27x128xf32, #tpu.memory_space<vmem>>, vector<1x27x128xf32>
      %402 = vector.shape_cast %401 : vector<1x27x128xf32> to vector<27x128xf32>
      %c127_i32 = arith.constant 127 : i32
      %403 = tpu.dynamic_rotate %402 by %c127_i32 dim 1 : vector<27x128xf32>, i32 -> vector<27x128xf32>
      %c0_280 = arith.constant 0 : index
      %c0_281 = arith.constant 0 : index
      %404 = vector.load %arg10[%c0_280, %c0_281] : memref<27x128xf32, #tpu.memory_space<vmem>>, vector<27x128xf32>
      tpu.vector_store %arg10[%c0_280, %c0_281], %403 {strides = array<i32>} : memref<27x128xf32, #tpu.memory_space<vmem>>, vector<27x128xf32>,
      %c4 = arith.constant 4 : index
      %405 = memref.load %arg3[%c4] : memref<98xf32, #tpu.memory_space<smem>>
      %c5_282 = arith.constant 5 : index
      %c0_283 = arith.constant 0 : index
      %406 = vector.load %arg10[%c5_282, %c0_283] : memref<27x128xf32, #tpu.memory_space<vmem>>, vector<16x128xf32>
      %407 = vector.broadcast %405 : f32 to vector<16x128xf32>
      %408 = arith.mulf %407, %406 : vector<16x128xf32>
      %409 = arith.addf %400, %408 : vector<16x128xf32>
      %c11_284 = arith.constant 11 : index
      %410 = memref.load %arg3[%c11_284] : memref<98xf32, #tpu.memory_space<smem>>
      %c6_285 = arith.constant 6 : index
      %c0_286 = arith.constant 0 : index
      %411 = vector.load %arg10[%c6_285, %c0_286] : memref<27x128xf32, #tpu.memory_space<vmem>>, vector<16x128xf32>
      %412 = vector.broadcast %410 : f32 to vector<16x128xf32>
      %413 = arith.mulf %412, %411 : vector<16x128xf32>
      %414 = arith.addf %409, %413 : vector<16x128xf32>
      %c18_287 = arith.constant 18 : index
      %415 = memref.load %arg3[%c18_287] : memref<98xf32, #tpu.memory_space<smem>>
      %c7_288 = arith.constant 7 : index
      %c0_289 = arith.constant 0 : index
      %416 = vector.load %arg10[%c7_288, %c0_289] : memref<27x128xf32, #tpu.memory_space<vmem>>, vector<16x128xf32>
      %417 = vector.broadcast %415 : f32 to vector<16x128xf32>
      %418 = arith.mulf %417, %416 : vector<16x128xf32>
      %419 = arith.addf %414, %418 : vector<16x128xf32>
      %c25 = arith.constant 25 : index
      %420 = memref.load %arg3[%c25] : memref<98xf32, #tpu.memory_space<smem>>
      %c8_290 = arith.constant 8 : index
      %c0_291 = arith.constant 0 : index
      %421 = vector.load %arg10[%c8_290, %c0_291] : memref<27x128xf32, #tpu.memory_space<vmem>>, vector<16x128xf32>
      %422 = vector.broadcast %420 : f32 to vector<16x128xf32>
      %423 = arith.mulf %422, %421 : vector<16x128xf32>
      %424 = arith.addf %419, %423 : vector<16x128xf32>
      %c32_292 = arith.constant 32 : index
      %425 = memref.load %arg3[%c32_292] : memref<98xf32, #tpu.memory_space<smem>>
      %c9_293 = arith.constant 9 : index
      %c0_294 = arith.constant 0 : index
      %426 = vector.load %arg10[%c9_293, %c0_294] : memref<27x128xf32, #tpu.memory_space<vmem>>, vector<16x128xf32>
      %427 = vector.broadcast %425 : f32 to vector<16x128xf32>
      %428 = arith.mulf %427, %426 : vector<16x128xf32>
      %429 = arith.addf %424, %428 : vector<16x128xf32>
      %c39 = arith.constant 39 : index
      %430 = memref.load %arg3[%c39] : memref<98xf32, #tpu.memory_space<smem>>
      %c10_295 = arith.constant 10 : index
      %c0_296 = arith.constant 0 : index
      %431 = vector.load %arg10[%c10_295, %c0_296] : memref<27x128xf32, #tpu.memory_space<vmem>>, vector<16x128xf32>
      %432 = vector.broadcast %430 : f32 to vector<16x128xf32>
      %433 = arith.mulf %432, %431 : vector<16x128xf32>
      %434 = arith.addf %429, %433 : vector<16x128xf32>
      %c46 = arith.constant 46 : index
      %435 = memref.load %arg3[%c46] : memref<98xf32, #tpu.memory_space<smem>>
      %c11_297 = arith.constant 11 : index
      %c0_298 = arith.constant 0 : index
      %436 = vector.load %arg10[%c11_297, %c0_298] : memref<27x128xf32, #tpu.memory_space<vmem>>, vector<16x128xf32>
      %437 = vector.broadcast %435 : f32 to vector<16x128xf32>
      %438 = arith.mulf %437, %436 : vector<16x128xf32>
      %439 = arith.addf %434, %438 : vector<16x128xf32>
      %c0_299 = arith.constant 0 : index
      %c0_300 = arith.constant 0 : index
      %c0_301 = arith.constant 0 : index
      %440 = vector.load %arg8[%c0_299, %c0_300, %c0_301] : memref<2x27x128xf32, #tpu.memory_space<vmem>>, vector<1x27x128xf32>
      %441 = vector.shape_cast %440 : vector<1x27x128xf32> to vector<27x128xf32>
      %c126_i32 = arith.constant 126 : i32
      %442 = tpu.dynamic_rotate %441 by %c126_i32 dim 1 : vector<27x128xf32>, i32 -> vector<27x128xf32>
      %c0_302 = arith.constant 0 : index
      %c0_303 = arith.constant 0 : index
      %443 = vector.load %arg10[%c0_302, %c0_303] : memref<27x128xf32, #tpu.memory_space<vmem>>, vector<27x128xf32>
      tpu.vector_store %arg10[%c0_302, %c0_303], %442 {strides = array<i32>} : memref<27x128xf32, #tpu.memory_space<vmem>>, vector<27x128xf32>,
      %c5_304 = arith.constant 5 : index
      %444 = memref.load %arg3[%c5_304] : memref<98xf32, #tpu.memory_space<smem>>
      %c5_305 = arith.constant 5 : index
      %c0_306 = arith.constant 0 : index
      %445 = vector.load %arg10[%c5_305, %c0_306] : memref<27x128xf32, #tpu.memory_space<vmem>>, vector<16x128xf32>
      %446 = vector.broadcast %444 : f32 to vector<16x128xf32>
      %447 = arith.mulf %446, %445 : vector<16x128xf32>
      %448 = arith.addf %439, %447 : vector<16x128xf32>
      %c12_307 = arith.constant 12 : index
      %449 = memref.load %arg3[%c12_307] : memref<98xf32, #tpu.memory_space<smem>>
      %c6_308 = arith.constant 6 : index
      %c0_309 = arith.constant 0 : index
      %450 = vector.load %arg10[%c6_308, %c0_309] : memref<27x128xf32, #tpu.memory_space<vmem>>, vector<16x128xf32>
      %451 = vector.broadcast %449 : f32 to vector<16x128xf32>
      %452 = arith.mulf %451, %450 : vector<16x128xf32>
      %453 = arith.addf %448, %452 : vector<16x128xf32>
      %c19_310 = arith.constant 19 : index
      %454 = memref.load %arg3[%c19_310] : memref<98xf32, #tpu.memory_space<smem>>
      %c7_311 = arith.constant 7 : index
      %c0_312 = arith.constant 0 : index
      %455 = vector.load %arg10[%c7_311, %c0_312] : memref<27x128xf32, #tpu.memory_space<vmem>>, vector<16x128xf32>
      %456 = vector.broadcast %454 : f32 to vector<16x128xf32>
      %457 = arith.mulf %456, %455 : vector<16x128xf32>
      %458 = arith.addf %453, %457 : vector<16x128xf32>
      %c26 = arith.constant 26 : index
      %459 = memref.load %arg3[%c26] : memref<98xf32, #tpu.memory_space<smem>>
      %c8_313 = arith.constant 8 : index
      %c0_314 = arith.constant 0 : index
      %460 = vector.load %arg10[%c8_313, %c0_314] : memref<27x128xf32, #tpu.memory_space<vmem>>, vector<16x128xf32>
      %461 = vector.broadcast %459 : f32 to vector<16x128xf32>
      %462 = arith.mulf %461, %460 : vector<16x128xf32>
      %463 = arith.addf %458, %462 : vector<16x128xf32>
      %c33 = arith.constant 33 : index
      %464 = memref.load %arg3[%c33] : memref<98xf32, #tpu.memory_space<smem>>
      %c9_315 = arith.constant 9 : index
      %c0_316 = arith.constant 0 : index
      %465 = vector.load %arg10[%c9_315, %c0_316] : memref<27x128xf32, #tpu.memory_space<vmem>>, vector<16x128xf32>
      %466 = vector.broadcast %464 : f32 to vector<16x128xf32>
      %467 = arith.mulf %466, %465 : vector<16x128xf32>
      %468 = arith.addf %463, %467 : vector<16x128xf32>
      %c40 = arith.constant 40 : index
      %469 = memref.load %arg3[%c40] : memref<98xf32, #tpu.memory_space<smem>>
      %c10_317 = arith.constant 10 : index
      %c0_318 = arith.constant 0 : index
      %470 = vector.load %arg10[%c10_317, %c0_318] : memref<27x128xf32, #tpu.memory_space<vmem>>, vector<16x128xf32>
      %471 = vector.broadcast %469 : f32 to vector<16x128xf32>
      %472 = arith.mulf %471, %470 : vector<16x128xf32>
      %473 = arith.addf %468, %472 : vector<16x128xf32>
      %c47 = arith.constant 47 : index
      %474 = memref.load %arg3[%c47] : memref<98xf32, #tpu.memory_space<smem>>
      %c11_319 = arith.constant 11 : index
      %c0_320 = arith.constant 0 : index
      %475 = vector.load %arg10[%c11_319, %c0_320] : memref<27x128xf32, #tpu.memory_space<vmem>>, vector<16x128xf32>
      %476 = vector.broadcast %474 : f32 to vector<16x128xf32>
      %477 = arith.mulf %476, %475 : vector<16x128xf32>
      %478 = arith.addf %473, %477 : vector<16x128xf32>
      %c0_321 = arith.constant 0 : index
      %c0_322 = arith.constant 0 : index
      %c0_323 = arith.constant 0 : index
      %479 = vector.load %arg8[%c0_321, %c0_322, %c0_323] : memref<2x27x128xf32, #tpu.memory_space<vmem>>, vector<1x27x128xf32>
      %480 = vector.shape_cast %479 : vector<1x27x128xf32> to vector<27x128xf32>
      %c125_i32 = arith.constant 125 : i32
      %481 = tpu.dynamic_rotate %480 by %c125_i32 dim 1 : vector<27x128xf32>, i32 -> vector<27x128xf32>
      %c0_324 = arith.constant 0 : index
      %c0_325 = arith.constant 0 : index
      %482 = vector.load %arg10[%c0_324, %c0_325] : memref<27x128xf32, #tpu.memory_space<vmem>>, vector<27x128xf32>
      tpu.vector_store %arg10[%c0_324, %c0_325], %481 {strides = array<i32>} : memref<27x128xf32, #tpu.memory_space<vmem>>, vector<27x128xf32>,
      %c6_326 = arith.constant 6 : index
      %483 = memref.load %arg3[%c6_326] : memref<98xf32, #tpu.memory_space<smem>>
      %c5_327 = arith.constant 5 : index
      %c0_328 = arith.constant 0 : index
      %484 = vector.load %arg10[%c5_327, %c0_328] : memref<27x128xf32, #tpu.memory_space<vmem>>, vector<16x128xf32>
      %485 = vector.broadcast %483 : f32 to vector<16x128xf32>
      %486 = arith.mulf %485, %484 : vector<16x128xf32>
      %487 = arith.addf %478, %486 : vector<16x128xf32>
      %c13_329 = arith.constant 13 : index
      %488 = memref.load %arg3[%c13_329] : memref<98xf32, #tpu.memory_space<smem>>
      %c6_330 = arith.constant 6 : index
      %c0_331 = arith.constant 0 : index
      %489 = vector.load %arg10[%c6_330, %c0_331] : memref<27x128xf32, #tpu.memory_space<vmem>>, vector<16x128xf32>
      %490 = vector.broadcast %488 : f32 to vector<16x128xf32>
      %491 = arith.mulf %490, %489 : vector<16x128xf32>
      %492 = arith.addf %487, %491 : vector<16x128xf32>
      %c20_332 = arith.constant 20 : index
      %493 = memref.load %arg3[%c20_332] : memref<98xf32, #tpu.memory_space<smem>>
      %c7_333 = arith.constant 7 : index
      %c0_334 = arith.constant 0 : index
      %494 = vector.load %arg10[%c7_333, %c0_334] : memref<27x128xf32, #tpu.memory_space<vmem>>, vector<16x128xf32>
      %495 = vector.broadcast %493 : f32 to vector<16x128xf32>
      %496 = arith.mulf %495, %494 : vector<16x128xf32>
      %497 = arith.addf %492, %496 : vector<16x128xf32>
      %c27 = arith.constant 27 : index
      %498 = memref.load %arg3[%c27] : memref<98xf32, #tpu.memory_space<smem>>
      %c8_335 = arith.constant 8 : index
      %c0_336 = arith.constant 0 : index
      %499 = vector.load %arg10[%c8_335, %c0_336] : memref<27x128xf32, #tpu.memory_space<vmem>>, vector<16x128xf32>
      %500 = vector.broadcast %498 : f32 to vector<16x128xf32>
      %501 = arith.mulf %500, %499 : vector<16x128xf32>
      %502 = arith.addf %497, %501 : vector<16x128xf32>
      %c34 = arith.constant 34 : index
      %503 = memref.load %arg3[%c34] : memref<98xf32, #tpu.memory_space<smem>>
      %c9_337 = arith.constant 9 : index
      %c0_338 = arith.constant 0 : index
      %504 = vector.load %arg10[%c9_337, %c0_338] : memref<27x128xf32, #tpu.memory_space<vmem>>, vector<16x128xf32>
      %505 = vector.broadcast %503 : f32 to vector<16x128xf32>
      %506 = arith.mulf %505, %504 : vector<16x128xf32>
      %507 = arith.addf %502, %506 : vector<16x128xf32>
      %c41 = arith.constant 41 : index
      %508 = memref.load %arg3[%c41] : memref<98xf32, #tpu.memory_space<smem>>
      %c10_339 = arith.constant 10 : index
      %c0_340 = arith.constant 0 : index
      %509 = vector.load %arg10[%c10_339, %c0_340] : memref<27x128xf32, #tpu.memory_space<vmem>>, vector<16x128xf32>
      %510 = vector.broadcast %508 : f32 to vector<16x128xf32>
      %511 = arith.mulf %510, %509 : vector<16x128xf32>
      %512 = arith.addf %507, %511 : vector<16x128xf32>
      %c48_341 = arith.constant 48 : index
      %513 = memref.load %arg3[%c48_341] : memref<98xf32, #tpu.memory_space<smem>>
      %c11_342 = arith.constant 11 : index
      %c0_343 = arith.constant 0 : index
      %514 = vector.load %arg10[%c11_342, %c0_343] : memref<27x128xf32, #tpu.memory_space<vmem>>, vector<16x128xf32>
      %515 = vector.broadcast %513 : f32 to vector<16x128xf32>
      %516 = arith.mulf %515, %514 : vector<16x128xf32>
      %517 = arith.addf %512, %516 : vector<16x128xf32>
      %c1_344 = arith.constant 1 : index
      %c0_345 = arith.constant 0 : index
      %c0_346 = arith.constant 0 : index
      %518 = vector.load %arg8[%c1_344, %c0_345, %c0_346] : memref<2x27x128xf32, #tpu.memory_space<vmem>>, vector<1x27x128xf32>
      %519 = vector.shape_cast %518 : vector<1x27x128xf32> to vector<27x128xf32>
      %c3_i32_347 = arith.constant 3 : i32
      %520 = tpu.dynamic_rotate %519 by %c3_i32_347 dim 1 : vector<27x128xf32>, i32 -> vector<27x128xf32>
      %c0_348 = arith.constant 0 : index
      %c0_349 = arith.constant 0 : index
      %521 = vector.load %arg10[%c0_348, %c0_349] : memref<27x128xf32, #tpu.memory_space<vmem>>, vector<27x128xf32>
      tpu.vector_store %arg10[%c0_348, %c0_349], %520 {strides = array<i32>} : memref<27x128xf32, #tpu.memory_space<vmem>>, vector<27x128xf32>,
      %c49 = arith.constant 49 : index
      %522 = memref.load %arg3[%c49] : memref<98xf32, #tpu.memory_space<smem>>
      %c5_350 = arith.constant 5 : index
      %c0_351 = arith.constant 0 : index
      %523 = vector.load %arg10[%c5_350, %c0_351] : memref<27x128xf32, #tpu.memory_space<vmem>>, vector<16x128xf32>
      %524 = vector.broadcast %522 : f32 to vector<16x128xf32>
      %525 = arith.mulf %524, %523 : vector<16x128xf32>
      %526 = arith.addf %517, %525 : vector<16x128xf32>
      %c56 = arith.constant 56 : index
      %527 = memref.load %arg3[%c56] : memref<98xf32, #tpu.memory_space<smem>>
      %c6_352 = arith.constant 6 : index
      %c0_353 = arith.constant 0 : index
      %528 = vector.load %arg10[%c6_352, %c0_353] : memref<27x128xf32, #tpu.memory_space<vmem>>, vector<16x128xf32>
      %529 = vector.broadcast %527 : f32 to vector<16x128xf32>
      %530 = arith.mulf %529, %528 : vector<16x128xf32>
      %531 = arith.addf %526, %530 : vector<16x128xf32>
      %c63 = arith.constant 63 : index
      %532 = memref.load %arg3[%c63] : memref<98xf32, #tpu.memory_space<smem>>
      %c7_354 = arith.constant 7 : index
      %c0_355 = arith.constant 0 : index
      %533 = vector.load %arg10[%c7_354, %c0_355] : memref<27x128xf32, #tpu.memory_space<vmem>>, vector<16x128xf32>
      %534 = vector.broadcast %532 : f32 to vector<16x128xf32>
      %535 = arith.mulf %534, %533 : vector<16x128xf32>
      %536 = arith.addf %531, %535 : vector<16x128xf32>
      %c70 = arith.constant 70 : index
      %537 = memref.load %arg3[%c70] : memref<98xf32, #tpu.memory_space<smem>>
      %c8_356 = arith.constant 8 : index
      %c0_357 = arith.constant 0 : index
      %538 = vector.load %arg10[%c8_356, %c0_357] : memref<27x128xf32, #tpu.memory_space<vmem>>, vector<16x128xf32>
      %539 = vector.broadcast %537 : f32 to vector<16x128xf32>
      %540 = arith.mulf %539, %538 : vector<16x128xf32>
      %541 = arith.addf %536, %540 : vector<16x128xf32>
      %c77 = arith.constant 77 : index
      %542 = memref.load %arg3[%c77] : memref<98xf32, #tpu.memory_space<smem>>
      %c9_358 = arith.constant 9 : index
      %c0_359 = arith.constant 0 : index
      %543 = vector.load %arg10[%c9_358, %c0_359] : memref<27x128xf32, #tpu.memory_space<vmem>>, vector<16x128xf32>
      %544 = vector.broadcast %542 : f32 to vector<16x128xf32>
      %545 = arith.mulf %544, %543 : vector<16x128xf32>
      %546 = arith.addf %541, %545 : vector<16x128xf32>
      %c84 = arith.constant 84 : index
      %547 = memref.load %arg3[%c84] : memref<98xf32, #tpu.memory_space<smem>>
      %c10_360 = arith.constant 10 : index
      %c0_361 = arith.constant 0 : index
      %548 = vector.load %arg10[%c10_360, %c0_361] : memref<27x128xf32, #tpu.memory_space<vmem>>, vector<16x128xf32>
      %549 = vector.broadcast %547 : f32 to vector<16x128xf32>
      %550 = arith.mulf %549, %548 : vector<16x128xf32>
      %551 = arith.addf %546, %550 : vector<16x128xf32>
      %c91 = arith.constant 91 : index
      %552 = memref.load %arg3[%c91] : memref<98xf32, #tpu.memory_space<smem>>
      %c11_362 = arith.constant 11 : index
      %c0_363 = arith.constant 0 : index
      %553 = vector.load %arg10[%c11_362, %c0_363] : memref<27x128xf32, #tpu.memory_space<vmem>>, vector<16x128xf32>
      %554 = vector.broadcast %552 : f32 to vector<16x128xf32>
      %555 = arith.mulf %554, %553 : vector<16x128xf32>
      %556 = arith.addf %551, %555 : vector<16x128xf32>
      %c1_364 = arith.constant 1 : index
      %c0_365 = arith.constant 0 : index
      %c0_366 = arith.constant 0 : index
      %557 = vector.load %arg8[%c1_364, %c0_365, %c0_366] : memref<2x27x128xf32, #tpu.memory_space<vmem>>, vector<1x27x128xf32>
      %558 = vector.shape_cast %557 : vector<1x27x128xf32> to vector<27x128xf32>
      %c2_i32_367 = arith.constant 2 : i32
      %559 = tpu.dynamic_rotate %558 by %c2_i32_367 dim 1 : vector<27x128xf32>, i32 -> vector<27x128xf32>
      %c0_368 = arith.constant 0 : index
      %c0_369 = arith.constant 0 : index
      %560 = vector.load %arg10[%c0_368, %c0_369] : memref<27x128xf32, #tpu.memory_space<vmem>>, vector<27x128xf32>
      tpu.vector_store %arg10[%c0_368, %c0_369], %559 {strides = array<i32>} : memref<27x128xf32, #tpu.memory_space<vmem>>, vector<27x128xf32>,
      %c50 = arith.constant 50 : index
      %561 = memref.load %arg3[%c50] : memref<98xf32, #tpu.memory_space<smem>>
      %c5_370 = arith.constant 5 : index
      %c0_371 = arith.constant 0 : index
      %562 = vector.load %arg10[%c5_370, %c0_371] : memref<27x128xf32, #tpu.memory_space<vmem>>, vector<16x128xf32>
      %563 = vector.broadcast %561 : f32 to vector<16x128xf32>
      %564 = arith.mulf %563, %562 : vector<16x128xf32>
      %565 = arith.addf %556, %564 : vector<16x128xf32>
      %c57 = arith.constant 57 : index
      %566 = memref.load %arg3[%c57] : memref<98xf32, #tpu.memory_space<smem>>
      %c6_372 = arith.constant 6 : index
      %c0_373 = arith.constant 0 : index
      %567 = vector.load %arg10[%c6_372, %c0_373] : memref<27x128xf32, #tpu.memory_space<vmem>>, vector<16x128xf32>
      %568 = vector.broadcast %566 : f32 to vector<16x128xf32>
      %569 = arith.mulf %568, %567 : vector<16x128xf32>
      %570 = arith.addf %565, %569 : vector<16x128xf32>
      %c64_374 = arith.constant 64 : index
      %571 = memref.load %arg3[%c64_374] : memref<98xf32, #tpu.memory_space<smem>>
      %c7_375 = arith.constant 7 : index
      %c0_376 = arith.constant 0 : index
      %572 = vector.load %arg10[%c7_375, %c0_376] : memref<27x128xf32, #tpu.memory_space<vmem>>, vector<16x128xf32>
      %573 = vector.broadcast %571 : f32 to vector<16x128xf32>
      %574 = arith.mulf %573, %572 : vector<16x128xf32>
      %575 = arith.addf %570, %574 : vector<16x128xf32>
      %c71 = arith.constant 71 : index
      %576 = memref.load %arg3[%c71] : memref<98xf32, #tpu.memory_space<smem>>
      %c8_377 = arith.constant 8 : index
      %c0_378 = arith.constant 0 : index
      %577 = vector.load %arg10[%c8_377, %c0_378] : memref<27x128xf32, #tpu.memory_space<vmem>>, vector<16x128xf32>
      %578 = vector.broadcast %576 : f32 to vector<16x128xf32>
      %579 = arith.mulf %578, %577 : vector<16x128xf32>
      %580 = arith.addf %575, %579 : vector<16x128xf32>
      %c78 = arith.constant 78 : index
      %581 = memref.load %arg3[%c78] : memref<98xf32, #tpu.memory_space<smem>>
      %c9_379 = arith.constant 9 : index
      %c0_380 = arith.constant 0 : index
      %582 = vector.load %arg10[%c9_379, %c0_380] : memref<27x128xf32, #tpu.memory_space<vmem>>, vector<16x128xf32>
      %583 = vector.broadcast %581 : f32 to vector<16x128xf32>
      %584 = arith.mulf %583, %582 : vector<16x128xf32>
      %585 = arith.addf %580, %584 : vector<16x128xf32>
      %c85 = arith.constant 85 : index
      %586 = memref.load %arg3[%c85] : memref<98xf32, #tpu.memory_space<smem>>
      %c10_381 = arith.constant 10 : index
      %c0_382 = arith.constant 0 : index
      %587 = vector.load %arg10[%c10_381, %c0_382] : memref<27x128xf32, #tpu.memory_space<vmem>>, vector<16x128xf32>
      %588 = vector.broadcast %586 : f32 to vector<16x128xf32>
      %589 = arith.mulf %588, %587 : vector<16x128xf32>
      %590 = arith.addf %585, %589 : vector<16x128xf32>
      %c92 = arith.constant 92 : index
      %591 = memref.load %arg3[%c92] : memref<98xf32, #tpu.memory_space<smem>>
      %c11_383 = arith.constant 11 : index
      %c0_384 = arith.constant 0 : index
      %592 = vector.load %arg10[%c11_383, %c0_384] : memref<27x128xf32, #tpu.memory_space<vmem>>, vector<16x128xf32>
      %593 = vector.broadcast %591 : f32 to vector<16x128xf32>
      %594 = arith.mulf %593, %592 : vector<16x128xf32>
      %595 = arith.addf %590, %594 : vector<16x128xf32>
      %c1_385 = arith.constant 1 : index
      %c0_386 = arith.constant 0 : index
      %c0_387 = arith.constant 0 : index
      %596 = vector.load %arg8[%c1_385, %c0_386, %c0_387] : memref<2x27x128xf32, #tpu.memory_space<vmem>>, vector<1x27x128xf32>
      %597 = vector.shape_cast %596 : vector<1x27x128xf32> to vector<27x128xf32>
      %c1_i32_388 = arith.constant 1 : i32
      %598 = tpu.dynamic_rotate %597 by %c1_i32_388 dim 1 : vector<27x128xf32>, i32 -> vector<27x128xf32>
      %c0_389 = arith.constant 0 : index
      %c0_390 = arith.constant 0 : index
      %599 = vector.load %arg10[%c0_389, %c0_390] : memref<27x128xf32, #tpu.memory_space<vmem>>, vector<27x128xf32>
      tpu.vector_store %arg10[%c0_389, %c0_390], %598 {strides = array<i32>} : memref<27x128xf32, #tpu.memory_space<vmem>>, vector<27x128xf32>,
      %c51 = arith.constant 51 : index
      %600 = memref.load %arg3[%c51] : memref<98xf32, #tpu.memory_space<smem>>
      %c5_391 = arith.constant 5 : index
      %c0_392 = arith.constant 0 : index
      %601 = vector.load %arg10[%c5_391, %c0_392] : memref<27x128xf32, #tpu.memory_space<vmem>>, vector<16x128xf32>
      %602 = vector.broadcast %600 : f32 to vector<16x128xf32>
      %603 = arith.mulf %602, %601 : vector<16x128xf32>
      %604 = arith.addf %595, %603 : vector<16x128xf32>
      %c58 = arith.constant 58 : index
      %605 = memref.load %arg3[%c58] : memref<98xf32, #tpu.memory_space<smem>>
      %c6_393 = arith.constant 6 : index
      %c0_394 = arith.constant 0 : index
      %606 = vector.load %arg10[%c6_393, %c0_394] : memref<27x128xf32, #tpu.memory_space<vmem>>, vector<16x128xf32>
      %607 = vector.broadcast %605 : f32 to vector<16x128xf32>
      %608 = arith.mulf %607, %606 : vector<16x128xf32>
      %609 = arith.addf %604, %608 : vector<16x128xf32>
      %c65 = arith.constant 65 : index
      %610 = memref.load %arg3[%c65] : memref<98xf32, #tpu.memory_space<smem>>
      %c7_395 = arith.constant 7 : index
      %c0_396 = arith.constant 0 : index
      %611 = vector.load %arg10[%c7_395, %c0_396] : memref<27x128xf32, #tpu.memory_space<vmem>>, vector<16x128xf32>
      %612 = vector.broadcast %610 : f32 to vector<16x128xf32>
      %613 = arith.mulf %612, %611 : vector<16x128xf32>
      %614 = arith.addf %609, %613 : vector<16x128xf32>
      %c72 = arith.constant 72 : index
      %615 = memref.load %arg3[%c72] : memref<98xf32, #tpu.memory_space<smem>>
      %c8_397 = arith.constant 8 : index
      %c0_398 = arith.constant 0 : index
      %616 = vector.load %arg10[%c8_397, %c0_398] : memref<27x128xf32, #tpu.memory_space<vmem>>, vector<16x128xf32>
      %617 = vector.broadcast %615 : f32 to vector<16x128xf32>
      %618 = arith.mulf %617, %616 : vector<16x128xf32>
      %619 = arith.addf %614, %618 : vector<16x128xf32>
      %c79 = arith.constant 79 : index
      %620 = memref.load %arg3[%c79] : memref<98xf32, #tpu.memory_space<smem>>
      %c9_399 = arith.constant 9 : index
      %c0_400 = arith.constant 0 : index
      %621 = vector.load %arg10[%c9_399, %c0_400] : memref<27x128xf32, #tpu.memory_space<vmem>>, vector<16x128xf32>
      %622 = vector.broadcast %620 : f32 to vector<16x128xf32>
      %623 = arith.mulf %622, %621 : vector<16x128xf32>
      %624 = arith.addf %619, %623 : vector<16x128xf32>
      %c86 = arith.constant 86 : index
      %625 = memref.load %arg3[%c86] : memref<98xf32, #tpu.memory_space<smem>>
      %c10_401 = arith.constant 10 : index
      %c0_402 = arith.constant 0 : index
      %626 = vector.load %arg10[%c10_401, %c0_402] : memref<27x128xf32, #tpu.memory_space<vmem>>, vector<16x128xf32>
      %627 = vector.broadcast %625 : f32 to vector<16x128xf32>
      %628 = arith.mulf %627, %626 : vector<16x128xf32>
      %629 = arith.addf %624, %628 : vector<16x128xf32>
      %c93 = arith.constant 93 : index
      %630 = memref.load %arg3[%c93] : memref<98xf32, #tpu.memory_space<smem>>
      %c11_403 = arith.constant 11 : index
      %c0_404 = arith.constant 0 : index
      %631 = vector.load %arg10[%c11_403, %c0_404] : memref<27x128xf32, #tpu.memory_space<vmem>>, vector<16x128xf32>
      %632 = vector.broadcast %630 : f32 to vector<16x128xf32>
      %633 = arith.mulf %632, %631 : vector<16x128xf32>
      %634 = arith.addf %629, %633 : vector<16x128xf32>
      %c52 = arith.constant 52 : index
      %635 = memref.load %arg3[%c52] : memref<98xf32, #tpu.memory_space<smem>>
      %c1_i32_405 = arith.constant 1 : i32
      %c0_i32_406 = arith.constant 0 : i32
      %c0_i32_407 = arith.constant 0 : i32
      %636 = tpu.memref_slice %arg8[%c1_i32_405, %c0_i32_406, %c0_i32_407] : memref<2x27x128xf32, #tpu.memory_space<vmem>> -> memref<1x27x128xf32, #tpu.memory_space<vmem>>
      %637 = tpu.memref_squeeze %636 : memref<1x27x128xf32, #tpu.memory_space<vmem>> -> memref<27x128xf32, #tpu.memory_space<vmem>>
      %c5_408 = arith.constant 5 : index
      %c0_409 = arith.constant 0 : index
      %638 = vector.load %637[%c5_408, %c0_409] : memref<27x128xf32, #tpu.memory_space<vmem>>, vector<16x128xf32>
      %639 = vector.broadcast %635 : f32 to vector<16x128xf32>
      %640 = arith.mulf %639, %638 : vector<16x128xf32>
      %641 = arith.addf %634, %640 : vector<16x128xf32>
      %c59 = arith.constant 59 : index
      %642 = memref.load %arg3[%c59] : memref<98xf32, #tpu.memory_space<smem>>
      %c1_i32_410 = arith.constant 1 : i32
      %c0_i32_411 = arith.constant 0 : i32
      %c0_i32_412 = arith.constant 0 : i32
      %643 = tpu.memref_slice %arg8[%c1_i32_410, %c0_i32_411, %c0_i32_412] : memref<2x27x128xf32, #tpu.memory_space<vmem>> -> memref<1x27x128xf32, #tpu.memory_space<vmem>>
      %644 = tpu.memref_squeeze %643 : memref<1x27x128xf32, #tpu.memory_space<vmem>> -> memref<27x128xf32, #tpu.memory_space<vmem>>
      %c6_413 = arith.constant 6 : index
      %c0_414 = arith.constant 0 : index
      %645 = vector.load %644[%c6_413, %c0_414] : memref<27x128xf32, #tpu.memory_space<vmem>>, vector<16x128xf32>
      %646 = vector.broadcast %642 : f32 to vector<16x128xf32>
      %647 = arith.mulf %646, %645 : vector<16x128xf32>
      %648 = arith.addf %641, %647 : vector<16x128xf32>
      %c66 = arith.constant 66 : index
      %649 = memref.load %arg3[%c66] : memref<98xf32, #tpu.memory_space<smem>>
      %c1_i32_415 = arith.constant 1 : i32
      %c0_i32_416 = arith.constant 0 : i32
      %c0_i32_417 = arith.constant 0 : i32
      %650 = tpu.memref_slice %arg8[%c1_i32_415, %c0_i32_416, %c0_i32_417] : memref<2x27x128xf32, #tpu.memory_space<vmem>> -> memref<1x27x128xf32, #tpu.memory_space<vmem>>
      %651 = tpu.memref_squeeze %650 : memref<1x27x128xf32, #tpu.memory_space<vmem>> -> memref<27x128xf32, #tpu.memory_space<vmem>>
      %c7_418 = arith.constant 7 : index
      %c0_419 = arith.constant 0 : index
      %652 = vector.load %651[%c7_418, %c0_419] : memref<27x128xf32, #tpu.memory_space<vmem>>, vector<16x128xf32>
      %653 = vector.broadcast %649 : f32 to vector<16x128xf32>
      %654 = arith.mulf %653, %652 : vector<16x128xf32>
      %655 = arith.addf %648, %654 : vector<16x128xf32>
      %c73 = arith.constant 73 : index
      %656 = memref.load %arg3[%c73] : memref<98xf32, #tpu.memory_space<smem>>
      %c1_i32_420 = arith.constant 1 : i32
      %c0_i32_421 = arith.constant 0 : i32
      %c0_i32_422 = arith.constant 0 : i32
      %657 = tpu.memref_slice %arg8[%c1_i32_420, %c0_i32_421, %c0_i32_422] : memref<2x27x128xf32, #tpu.memory_space<vmem>> -> memref<1x27x128xf32, #tpu.memory_space<vmem>>
      %658 = tpu.memref_squeeze %657 : memref<1x27x128xf32, #tpu.memory_space<vmem>> -> memref<27x128xf32, #tpu.memory_space<vmem>>
      %c8_423 = arith.constant 8 : index
      %c0_424 = arith.constant 0 : index
      %659 = vector.load %658[%c8_423, %c0_424] : memref<27x128xf32, #tpu.memory_space<vmem>>, vector<16x128xf32>
      %660 = vector.broadcast %656 : f32 to vector<16x128xf32>
      %661 = arith.mulf %660, %659 : vector<16x128xf32>
      %662 = arith.addf %655, %661 : vector<16x128xf32>
      %c80_425 = arith.constant 80 : index
      %663 = memref.load %arg3[%c80_425] : memref<98xf32, #tpu.memory_space<smem>>
      %c1_i32_426 = arith.constant 1 : i32
      %c0_i32_427 = arith.constant 0 : i32
      %c0_i32_428 = arith.constant 0 : i32
      %664 = tpu.memref_slice %arg8[%c1_i32_426, %c0_i32_427, %c0_i32_428] : memref<2x27x128xf32, #tpu.memory_space<vmem>> -> memref<1x27x128xf32, #tpu.memory_space<vmem>>
      %665 = tpu.memref_squeeze %664 : memref<1x27x128xf32, #tpu.memory_space<vmem>> -> memref<27x128xf32, #tpu.memory_space<vmem>>
      %c9_429 = arith.constant 9 : index
      %c0_430 = arith.constant 0 : index
      %666 = vector.load %665[%c9_429, %c0_430] : memref<27x128xf32, #tpu.memory_space<vmem>>, vector<16x128xf32>
      %667 = vector.broadcast %663 : f32 to vector<16x128xf32>
      %668 = arith.mulf %667, %666 : vector<16x128xf32>
      %669 = arith.addf %662, %668 : vector<16x128xf32>
      %c87 = arith.constant 87 : index
      %670 = memref.load %arg3[%c87] : memref<98xf32, #tpu.memory_space<smem>>
      %c1_i32_431 = arith.constant 1 : i32
      %c0_i32_432 = arith.constant 0 : i32
      %c0_i32_433 = arith.constant 0 : i32
      %671 = tpu.memref_slice %arg8[%c1_i32_431, %c0_i32_432, %c0_i32_433] : memref<2x27x128xf32, #tpu.memory_space<vmem>> -> memref<1x27x128xf32, #tpu.memory_space<vmem>>
      %672 = tpu.memref_squeeze %671 : memref<1x27x128xf32, #tpu.memory_space<vmem>> -> memref<27x128xf32, #tpu.memory_space<vmem>>
      %c10_434 = arith.constant 10 : index
      %c0_435 = arith.constant 0 : index
      %673 = vector.load %672[%c10_434, %c0_435] : memref<27x128xf32, #tpu.memory_space<vmem>>, vector<16x128xf32>
      %674 = vector.broadcast %670 : f32 to vector<16x128xf32>
      %675 = arith.mulf %674, %673 : vector<16x128xf32>
      %676 = arith.addf %669, %675 : vector<16x128xf32>
      %c94 = arith.constant 94 : index
      %677 = memref.load %arg3[%c94] : memref<98xf32, #tpu.memory_space<smem>>
      %c1_i32_436 = arith.constant 1 : i32
      %c0_i32_437 = arith.constant 0 : i32
      %c0_i32_438 = arith.constant 0 : i32
      %678 = tpu.memref_slice %arg8[%c1_i32_436, %c0_i32_437, %c0_i32_438] : memref<2x27x128xf32, #tpu.memory_space<vmem>> -> memref<1x27x128xf32, #tpu.memory_space<vmem>>
      %679 = tpu.memref_squeeze %678 : memref<1x27x128xf32, #tpu.memory_space<vmem>> -> memref<27x128xf32, #tpu.memory_space<vmem>>
      %c11_439 = arith.constant 11 : index
      %c0_440 = arith.constant 0 : index
      %680 = vector.load %679[%c11_439, %c0_440] : memref<27x128xf32, #tpu.memory_space<vmem>>, vector<16x128xf32>
      %681 = vector.broadcast %677 : f32 to vector<16x128xf32>
      %682 = arith.mulf %681, %680 : vector<16x128xf32>
      %683 = arith.addf %676, %682 : vector<16x128xf32>
      %c1_441 = arith.constant 1 : index
      %c0_442 = arith.constant 0 : index
      %c0_443 = arith.constant 0 : index
      %684 = vector.load %arg8[%c1_441, %c0_442, %c0_443] : memref<2x27x128xf32, #tpu.memory_space<vmem>>, vector<1x27x128xf32>
      %685 = vector.shape_cast %684 : vector<1x27x128xf32> to vector<27x128xf32>
      %c127_i32_444 = arith.constant 127 : i32
      %686 = tpu.dynamic_rotate %685 by %c127_i32_444 dim 1 : vector<27x128xf32>, i32 -> vector<27x128xf32>
      %c0_445 = arith.constant 0 : index
      %c0_446 = arith.constant 0 : index
      %687 = vector.load %arg10[%c0_445, %c0_446] : memref<27x128xf32, #tpu.memory_space<vmem>>, vector<27x128xf32>
      tpu.vector_store %arg10[%c0_445, %c0_446], %686 {strides = array<i32>} : memref<27x128xf32, #tpu.memory_space<vmem>>, vector<27x128xf32>,
      %c53 = arith.constant 53 : index
      %688 = memref.load %arg3[%c53] : memref<98xf32, #tpu.memory_space<smem>>
      %c5_447 = arith.constant 5 : index
      %c0_448 = arith.constant 0 : index
      %689 = vector.load %arg10[%c5_447, %c0_448] : memref<27x128xf32, #tpu.memory_space<vmem>>, vector<16x128xf32>
      %690 = vector.broadcast %688 : f32 to vector<16x128xf32>
      %691 = arith.mulf %690, %689 : vector<16x128xf32>
      %692 = arith.addf %683, %691 : vector<16x128xf32>
      %c60 = arith.constant 60 : index
      %693 = memref.load %arg3[%c60] : memref<98xf32, #tpu.memory_space<smem>>
      %c6_449 = arith.constant 6 : index
      %c0_450 = arith.constant 0 : index
      %694 = vector.load %arg10[%c6_449, %c0_450] : memref<27x128xf32, #tpu.memory_space<vmem>>, vector<16x128xf32>
      %695 = vector.broadcast %693 : f32 to vector<16x128xf32>
      %696 = arith.mulf %695, %694 : vector<16x128xf32>
      %697 = arith.addf %692, %696 : vector<16x128xf32>
      %c67 = arith.constant 67 : index
      %698 = memref.load %arg3[%c67] : memref<98xf32, #tpu.memory_space<smem>>
      %c7_451 = arith.constant 7 : index
      %c0_452 = arith.constant 0 : index
      %699 = vector.load %arg10[%c7_451, %c0_452] : memref<27x128xf32, #tpu.memory_space<vmem>>, vector<16x128xf32>
      %700 = vector.broadcast %698 : f32 to vector<16x128xf32>
      %701 = arith.mulf %700, %699 : vector<16x128xf32>
      %702 = arith.addf %697, %701 : vector<16x128xf32>
      %c74 = arith.constant 74 : index
      %703 = memref.load %arg3[%c74] : memref<98xf32, #tpu.memory_space<smem>>
      %c8_453 = arith.constant 8 : index
      %c0_454 = arith.constant 0 : index
      %704 = vector.load %arg10[%c8_453, %c0_454] : memref<27x128xf32, #tpu.memory_space<vmem>>, vector<16x128xf32>
      %705 = vector.broadcast %703 : f32 to vector<16x128xf32>
      %706 = arith.mulf %705, %704 : vector<16x128xf32>
      %707 = arith.addf %702, %706 : vector<16x128xf32>
      %c81 = arith.constant 81 : index
      %708 = memref.load %arg3[%c81] : memref<98xf32, #tpu.memory_space<smem>>
      %c9_455 = arith.constant 9 : index
      %c0_456 = arith.constant 0 : index
      %709 = vector.load %arg10[%c9_455, %c0_456] : memref<27x128xf32, #tpu.memory_space<vmem>>, vector<16x128xf32>
      %710 = vector.broadcast %708 : f32 to vector<16x128xf32>
      %711 = arith.mulf %710, %709 : vector<16x128xf32>
      %712 = arith.addf %707, %711 : vector<16x128xf32>
      %c88 = arith.constant 88 : index
      %713 = memref.load %arg3[%c88] : memref<98xf32, #tpu.memory_space<smem>>
      %c10_457 = arith.constant 10 : index
      %c0_458 = arith.constant 0 : index
      %714 = vector.load %arg10[%c10_457, %c0_458] : memref<27x128xf32, #tpu.memory_space<vmem>>, vector<16x128xf32>
      %715 = vector.broadcast %713 : f32 to vector<16x128xf32>
      %716 = arith.mulf %715, %714 : vector<16x128xf32>
      %717 = arith.addf %712, %716 : vector<16x128xf32>
      %c95 = arith.constant 95 : index
      %718 = memref.load %arg3[%c95] : memref<98xf32, #tpu.memory_space<smem>>
      %c11_459 = arith.constant 11 : index
      %c0_460 = arith.constant 0 : index
      %719 = vector.load %arg10[%c11_459, %c0_460] : memref<27x128xf32, #tpu.memory_space<vmem>>, vector<16x128xf32>
      %720 = vector.broadcast %718 : f32 to vector<16x128xf32>
      %721 = arith.mulf %720, %719 : vector<16x128xf32>
      %722 = arith.addf %717, %721 : vector<16x128xf32>
      %c1_461 = arith.constant 1 : index
      %c0_462 = arith.constant 0 : index
      %c0_463 = arith.constant 0 : index
      %723 = vector.load %arg8[%c1_461, %c0_462, %c0_463] : memref<2x27x128xf32, #tpu.memory_space<vmem>>, vector<1x27x128xf32>
      %724 = vector.shape_cast %723 : vector<1x27x128xf32> to vector<27x128xf32>
      %c126_i32_464 = arith.constant 126 : i32
      %725 = tpu.dynamic_rotate %724 by %c126_i32_464 dim 1 : vector<27x128xf32>, i32 -> vector<27x128xf32>
      %c0_465 = arith.constant 0 : index
      %c0_466 = arith.constant 0 : index
      %726 = vector.load %arg10[%c0_465, %c0_466] : memref<27x128xf32, #tpu.memory_space<vmem>>, vector<27x128xf32>
      tpu.vector_store %arg10[%c0_465, %c0_466], %725 {strides = array<i32>} : memref<27x128xf32, #tpu.memory_space<vmem>>, vector<27x128xf32>,
      %c54 = arith.constant 54 : index
      %727 = memref.load %arg3[%c54] : memref<98xf32, #tpu.memory_space<smem>>
      %c5_467 = arith.constant 5 : index
      %c0_468 = arith.constant 0 : index
      %728 = vector.load %arg10[%c5_467, %c0_468] : memref<27x128xf32, #tpu.memory_space<vmem>>, vector<16x128xf32>
      %729 = vector.broadcast %727 : f32 to vector<16x128xf32>
      %730 = arith.mulf %729, %728 : vector<16x128xf32>
      %731 = arith.addf %722, %730 : vector<16x128xf32>
      %c61 = arith.constant 61 : index
      %732 = memref.load %arg3[%c61] : memref<98xf32, #tpu.memory_space<smem>>
      %c6_469 = arith.constant 6 : index
      %c0_470 = arith.constant 0 : index
      %733 = vector.load %arg10[%c6_469, %c0_470] : memref<27x128xf32, #tpu.memory_space<vmem>>, vector<16x128xf32>
      %734 = vector.broadcast %732 : f32 to vector<16x128xf32>
      %735 = arith.mulf %734, %733 : vector<16x128xf32>
      %736 = arith.addf %731, %735 : vector<16x128xf32>
      %c68 = arith.constant 68 : index
      %737 = memref.load %arg3[%c68] : memref<98xf32, #tpu.memory_space<smem>>
      %c7_471 = arith.constant 7 : index
      %c0_472 = arith.constant 0 : index
      %738 = vector.load %arg10[%c7_471, %c0_472] : memref<27x128xf32, #tpu.memory_space<vmem>>, vector<16x128xf32>
      %739 = vector.broadcast %737 : f32 to vector<16x128xf32>
      %740 = arith.mulf %739, %738 : vector<16x128xf32>
      %741 = arith.addf %736, %740 : vector<16x128xf32>
      %c75 = arith.constant 75 : index
      %742 = memref.load %arg3[%c75] : memref<98xf32, #tpu.memory_space<smem>>
      %c8_473 = arith.constant 8 : index
      %c0_474 = arith.constant 0 : index
      %743 = vector.load %arg10[%c8_473, %c0_474] : memref<27x128xf32, #tpu.memory_space<vmem>>, vector<16x128xf32>
      %744 = vector.broadcast %742 : f32 to vector<16x128xf32>
      %745 = arith.mulf %744, %743 : vector<16x128xf32>
      %746 = arith.addf %741, %745 : vector<16x128xf32>
      %c82 = arith.constant 82 : index
      %747 = memref.load %arg3[%c82] : memref<98xf32, #tpu.memory_space<smem>>
      %c9_475 = arith.constant 9 : index
      %c0_476 = arith.constant 0 : index
      %748 = vector.load %arg10[%c9_475, %c0_476] : memref<27x128xf32, #tpu.memory_space<vmem>>, vector<16x128xf32>
      %749 = vector.broadcast %747 : f32 to vector<16x128xf32>
      %750 = arith.mulf %749, %748 : vector<16x128xf32>
      %751 = arith.addf %746, %750 : vector<16x128xf32>
      %c89 = arith.constant 89 : index
      %752 = memref.load %arg3[%c89] : memref<98xf32, #tpu.memory_space<smem>>
      %c10_477 = arith.constant 10 : index
      %c0_478 = arith.constant 0 : index
      %753 = vector.load %arg10[%c10_477, %c0_478] : memref<27x128xf32, #tpu.memory_space<vmem>>, vector<16x128xf32>
      %754 = vector.broadcast %752 : f32 to vector<16x128xf32>
      %755 = arith.mulf %754, %753 : vector<16x128xf32>
      %756 = arith.addf %751, %755 : vector<16x128xf32>
      %c96_479 = arith.constant 96 : index
      %757 = memref.load %arg3[%c96_479] : memref<98xf32, #tpu.memory_space<smem>>
      %c11_480 = arith.constant 11 : index
      %c0_481 = arith.constant 0 : index
      %758 = vector.load %arg10[%c11_480, %c0_481] : memref<27x128xf32, #tpu.memory_space<vmem>>, vector<16x128xf32>
      %759 = vector.broadcast %757 : f32 to vector<16x128xf32>
      %760 = arith.mulf %759, %758 : vector<16x128xf32>
      %761 = arith.addf %756, %760 : vector<16x128xf32>
      %c1_482 = arith.constant 1 : index
      %c0_483 = arith.constant 0 : index
      %c0_484 = arith.constant 0 : index
      %762 = vector.load %arg8[%c1_482, %c0_483, %c0_484] : memref<2x27x128xf32, #tpu.memory_space<vmem>>, vector<1x27x128xf32>
      %763 = vector.shape_cast %762 : vector<1x27x128xf32> to vector<27x128xf32>
      %c125_i32_485 = arith.constant 125 : i32
      %764 = tpu.dynamic_rotate %763 by %c125_i32_485 dim 1 : vector<27x128xf32>, i32 -> vector<27x128xf32>
      %c0_486 = arith.constant 0 : index
      %c0_487 = arith.constant 0 : index
      %765 = vector.load %arg10[%c0_486, %c0_487] : memref<27x128xf32, #tpu.memory_space<vmem>>, vector<27x128xf32>
      tpu.vector_store %arg10[%c0_486, %c0_487], %764 {strides = array<i32>} : memref<27x128xf32, #tpu.memory_space<vmem>>, vector<27x128xf32>,
      %c55 = arith.constant 55 : index
      %766 = memref.load %arg3[%c55] : memref<98xf32, #tpu.memory_space<smem>>
      %c5_488 = arith.constant 5 : index
      %c0_489 = arith.constant 0 : index
      %767 = vector.load %arg10[%c5_488, %c0_489] : memref<27x128xf32, #tpu.memory_space<vmem>>, vector<16x128xf32>
      %768 = vector.broadcast %766 : f32 to vector<16x128xf32>
      %769 = arith.mulf %768, %767 : vector<16x128xf32>
      %770 = arith.addf %761, %769 : vector<16x128xf32>
      %c62 = arith.constant 62 : index
      %771 = memref.load %arg3[%c62] : memref<98xf32, #tpu.memory_space<smem>>
      %c6_490 = arith.constant 6 : index
      %c0_491 = arith.constant 0 : index
      %772 = vector.load %arg10[%c6_490, %c0_491] : memref<27x128xf32, #tpu.memory_space<vmem>>, vector<16x128xf32>
      %773 = vector.broadcast %771 : f32 to vector<16x128xf32>
      %774 = arith.mulf %773, %772 : vector<16x128xf32>
      %775 = arith.addf %770, %774 : vector<16x128xf32>
      %c69 = arith.constant 69 : index
      %776 = memref.load %arg3[%c69] : memref<98xf32, #tpu.memory_space<smem>>
      %c7_492 = arith.constant 7 : index
      %c0_493 = arith.constant 0 : index
      %777 = vector.load %arg10[%c7_492, %c0_493] : memref<27x128xf32, #tpu.memory_space<vmem>>, vector<16x128xf32>
      %778 = vector.broadcast %776 : f32 to vector<16x128xf32>
      %779 = arith.mulf %778, %777 : vector<16x128xf32>
      %780 = arith.addf %775, %779 : vector<16x128xf32>
      %c76 = arith.constant 76 : index
      %781 = memref.load %arg3[%c76] : memref<98xf32, #tpu.memory_space<smem>>
      %c8_494 = arith.constant 8 : index
      %c0_495 = arith.constant 0 : index
      %782 = vector.load %arg10[%c8_494, %c0_495] : memref<27x128xf32, #tpu.memory_space<vmem>>, vector<16x128xf32>
      %783 = vector.broadcast %781 : f32 to vector<16x128xf32>
      %784 = arith.mulf %783, %782 : vector<16x128xf32>
      %785 = arith.addf %780, %784 : vector<16x128xf32>
      %c83 = arith.constant 83 : index
      %786 = memref.load %arg3[%c83] : memref<98xf32, #tpu.memory_space<smem>>
      %c9_496 = arith.constant 9 : index
      %c0_497 = arith.constant 0 : index
      %787 = vector.load %arg10[%c9_496, %c0_497] : memref<27x128xf32, #tpu.memory_space<vmem>>, vector<16x128xf32>
      %788 = vector.broadcast %786 : f32 to vector<16x128xf32>
      %789 = arith.mulf %788, %787 : vector<16x128xf32>
      %790 = arith.addf %785, %789 : vector<16x128xf32>
      %c90 = arith.constant 90 : index
      %791 = memref.load %arg3[%c90] : memref<98xf32, #tpu.memory_space<smem>>
      %c10_498 = arith.constant 10 : index
      %c0_499 = arith.constant 0 : index
      %792 = vector.load %arg10[%c10_498, %c0_499] : memref<27x128xf32, #tpu.memory_space<vmem>>, vector<16x128xf32>
      %793 = vector.broadcast %791 : f32 to vector<16x128xf32>
      %794 = arith.mulf %793, %792 : vector<16x128xf32>
      %795 = arith.addf %790, %794 : vector<16x128xf32>
      %c97 = arith.constant 97 : index
      %796 = memref.load %arg3[%c97] : memref<98xf32, #tpu.memory_space<smem>>
      %c11_500 = arith.constant 11 : index
      %c0_501 = arith.constant 0 : index
      %797 = vector.load %arg10[%c11_500, %c0_501] : memref<27x128xf32, #tpu.memory_space<vmem>>, vector<16x128xf32>
      %798 = vector.broadcast %796 : f32 to vector<16x128xf32>
      %799 = arith.mulf %798, %797 : vector<16x128xf32>
      %800 = arith.addf %795, %799 : vector<16x128xf32>
      %801 = vector.extract_strided_slice %800 {offsets = [0, 0], sizes = [16, 16], strides = [1, 1]} : vector<16x128xf32> to vector<16x16xf32>
      %802 = arith.negf %801 : vector<16x16xf32>
      %803 = math.exp %802 : vector<16x16xf32>
      %cst_502 = arith.constant 1.000000e+00 : f32
      %804 = vector.broadcast %cst_502 : f32 to vector<16x16xf32>
      %805 = arith.addf %804, %803 : vector<16x16xf32>
      %806 = arith.divf %804, %805 : vector<16x16xf32>
      %807 = arith.index_cast %c0_i32_28 : i32 to index
      %c0_503 = arith.constant 0 : index
      %c0_504 = arith.constant 0 : index
      %c0_505 = arith.constant 0 : index
      %808 = vector.load %arg5[%807, %c0_503, %c0_504, %c0_505] : memref<1x1x16x16xf32, #tpu.memory_space<vmem>>, vector<1x1x16x16xf32>
      %809 = vector.shape_cast %808 : vector<1x1x16x16xf32> to vector<16x16xf32>
      %810 = vector.shape_cast %806 : vector<16x16xf32> to vector<1x1x16x16xf32>
      tpu.vector_store %arg5[%807, %c0_503, %c0_504, %c0_505], %810 {strides = array<i32>} : memref<1x1x16x16xf32, #tpu.memory_space<vmem>>, vector<1x1x16x16xf32>,
      %c1_i32_506 = arith.constant 1 : i32
    } else {
    }
    return
  }
  func.func @transform_0(%arg0: i32, %arg1: i32) -> (i32, i32, i32) {
    %c0_i32 = arith.constant 0 : i32
    %c0_i32_0 = arith.constant 0 : i32
    return %arg0, %arg1, %c0_i32 : i32, i32, i32
  }
  func.func @transform_1(%arg0: i32, %arg1: i32) -> i32 {
    %c0_i32 = arith.constant 0 : i32
    %c0_i32_0 = arith.constant 0 : i32
    return %c0_i32 : i32
  }
  func.func @transform_2(%arg0: i32, %arg1: i32) -> i32 {
    %c0_i32 = arith.constant 0 : i32
    %c0_i32_0 = arith.constant 0 : i32
    return %c0_i32 : i32
  }
  func.func @transform_3(%arg0: i32, %arg1: i32) -> (i32, i32, i32, i32) {
    %c0_i32 = arith.constant 0 : i32
    %c0_i32_0 = arith.constant 0 : i32
    %c0_i32_1 = arith.constant 0 : i32
    %c0_i32_2 = arith.constant 0 : i32
    return %arg0, %c0_i32, %c0_i32_0, %c0_i32_1 : i32, i32, i32, i32
  }
}

</mosaic_0001>

<llo_original>
// kernel: tpu_custom_call.1
$region0: #{tpu_custom_call.1}
  #allocation0 [shape = 'u32[]', space=smem, size = 0x4, offset = 0x4, fixed_abs, tag = 'smem constant byte address 0x4 - core index']
  #allocation1 [shape = 'u32[144,128]{1,0:T(1,128)}', space=vmem, size = 0x12000, scoped, tag = 'internal scratch']
  #allocation2 [shape = 'f32[1,8,256]{2,1,0:T(8,128)}', space=vmem, size = 0x2000, scoped, tag = 'scratch operand']
  #allocation3 [shape = 'f32[1,8,256]{2,1,0:T(8,128)}', space=vmem, size = 0x2000, scoped, tag = 'scratch operand']
  #allocation4 [shape = 'f32[2,27,128]{2,1,0:T(8,128)}', space=vmem, size = 0x8000, scoped, tag = 'scratch operand']
  #allocation5 [shape = 'f32[2,256]{1,0:T(2,128)}', space=vmem, size = 0x800, scoped, tag = 'scratch operand']
  #allocation6 [shape = 'f32[27,128]{1,0:T(8,128)}', space=vmem, size = 0x4000, scoped, tag = 'scratch operand']
  #allocation7 [shape = 'f32[1]{0:T(128)S(6)}', space=smem, size = 0x200, scoped, tag = 'scoped memory for tpu_custom_call.1']
  %s0 = inlined_call_operand.hbm [shape: f32[2,4,256], index: 0, kind: input, shape index: {}]
  %s1 = inlined_call_operand.vmem [shape: f32[98], index: 1, kind: input, shape index: {}]
  %s2 = inlined_call_operand.<no memory space> [shape: f32[1], index: 2, kind: input, shape index: {}]
  %s3 = inlined_call_operand.hbm [shape: f32[2,1,16,16], index: 3, kind: output, shape index: {}]
  %s4 = sld [smem:[#allocation0]]
  $region61: #{tpu_custom_call.1} parent=0
    _
  %s6 = ssub.s32 1, %s4
  %s7 = scalar_select 0, %s6, %s4
  %8 = sst [smem:[#allocation7]] %s2
  $region1: #{tpu_custom_call.1} parent=0
    #allocation8 [shape = 'u8[8192]{0}', space=vmem, size = 0x2000, scoped, tag = 'input window, operand 0']
    #allocation9 [shape = 's32[2]{0}', space=sflag, size = 0x8, scoped, tag = 'scoped memory for tpu_custom_call.1']
    #allocation10 [shape = 's32[2]{0}', space=sflag, size = 0x8, scoped, tag = 'scoped memory for tpu_custom_call.1']
    #allocation11 [shape = 's32[2]{0}', space=sflag, size = 0x8, scoped, tag = 'scoped memory for tpu_custom_call.1']
    #allocation12 [shape = 'u8[512]{0}', space=smem, size = 0x200, scoped, tag = 'input window, operand 1, single buffered']
    #allocation13 [shape = 'u8[16384]{0}', space=vmem, size = 0x4000, scoped, tag = 'output window, operand 0']
    %9 = vsyncpa [#allocation9], 0
    %s10 = scalar_lea.sflag [#allocation9], 1
    %11 = vsyncpa %s10, 0
    %12 = vsyncpa [#allocation11], 0
    %13 = vsyncpa [#allocation10], 0
    %s14 = scalar_lea.sflag [#allocation10], 1
    %15 = vsyncpa %s14, 0
    loop: start=0, step=1, limit=4
    $region2: #{tpu_custom_call.1} parent=1 // loop_pre_header
      _
    $region3: #{tpu_custom_call.1} parent=1 // loop_header
      %s17 = sphi 0, %s21
      %p18 = scmp.ge.s32.totalorder %s17, 4
      %s24 = sphi 0, %s36
      %s25 = sphi 0, %s32
      %s26 = sphi 0, %s24
      %s27 = sphi 0, %s25
      %s28 = sphi 0, %s26
      %s29 = sphi 0, %s27
      %s41 = sphi 0, %s43
      %s44 = sphi 0, %s41
      %s45 = sphi 0, %s44
      %s61 = sphi 0, %s45
      %s65 = sphi 0, %s65
      %s67 = sphi 0, %s65
      %s68 = sphi 0, %s67
      %s82 = sphi 0, %s68
      %s86 = sphi 0, %s86
      %s88 = sphi 0, %s86
      %s89 = sphi 0, %s88
      %s103 = sphi 0, %s89
      %s109 = sphi 0, %s111
      %s112 = sphi 0, %s109
      %s113 = sphi 0, %s112
      %s129 = sphi 0, %s113
    $region4: #{tpu_custom_call.1} parent=1 // loop_header_branch
      %20 = sbr.rel (%p18) target = $region8
    $region5: #{tpu_custom_call.1} parent=1 // loop_body
      %s22 = ssub.s32 %s17, 1
      %s23 = ssub.s32 %s17, 2
      %s30 = sadd.s32 1, %s25
      %p31 = scmp.ge.s32.totalorder %s30, 1
      %s32 = scalar_select %p31, 0, %s30
      %s33 = sadd.s32 1, %s24
      %s34 = scalar_select %p31, %s33, %s24
      %p35 = scmp.ge.s32.totalorder %s34, 2
      %s36 = scalar_select %p35, 0, %s34
      %s37 = ssub.s32 %s24, %s36
      %s38 = ssub.s32 %s25, %s32
      %s39 = sor.u32 %s37, %s38
      %p40 = scmp.eq.s32.totalorder %s39, 0
      %s42 = sadd.s32 %s41, 1
      %s43 = scalar_select %p40, %s41, %s42
      %p46 = pneg %p40
      %p47 = scmp.eq.s32.totalorder %s17, 1
      %p48 = por %p46, %p47
      %p49 = scmp.ne.s32.totalorder %s41, %s44
      %p50 = scmp.eq.s32.totalorder %s17, 0
      %p51 = por %p49, %p50
      %p52 = scmp.ne.s32.totalorder %s41, %s44
      %p53 = scmp.eq.s32.totalorder %s22, 1
      %p54 = por %p52, %p53
      %p55 = scmp.ne.s32.totalorder %s44, %s45
      %p56 = scmp.eq.s32.totalorder %s22, 0
      %p57 = por %p55, %p56
      %p58 = scmp.ne.s32.totalorder %s44, %s45
      %p59 = scmp.eq.s32.totalorder %s23, 1
      %p60 = por %p58, %p59
      %p62 = scmp.ne.s32.totalorder %s45, %s61
      %p63 = scmp.eq.s32.totalorder %s23, 0
      %p64 = por %p62, %p63
      %s66 = sadd.s32 %s65, 1
      %p69 = scmp.eq.s32.totalorder %s17, 1
      %p70 = scmp.ne.s32.totalorder %s65, %s67
      %p71 = scmp.eq.s32.totalorder %s17, 0
      %p72 = por %p70, %p71
      %p73 = scmp.ne.s32.totalorder %s65, %s67
      %p74 = scmp.eq.s32.totalorder %s22, 1
      %p75 = por %p73, %p74
      %p76 = scmp.ne.s32.totalorder %s67, %s68
      %p77 = scmp.eq.s32.totalorder %s22, 0
      %p78 = por %p76, %p77
      %p79 = scmp.ne.s32.totalorder %s67, %s68
      %p80 = scmp.eq.s32.totalorder %s23, 1
      %p81 = por %p79, %p80
      %p83 = scmp.ne.s32.totalorder %s68, %s82
      %p84 = scmp.eq.s32.totalorder %s23, 0
      %p85 = por %p83, %p84
      %s87 = sadd.s32 %s86, 1
      %p90 = scmp.eq.s32.totalorder %s17, 1
      %p91 = scmp.ne.s32.totalorder %s86, %s88
      %p92 = scmp.eq.s32.totalorder %s17, 0
      %p93 = por %p91, %p92
      %p94 = scmp.ne.s32.totalorder %s86, %s88
      %p95 = scmp.eq.s32.totalorder %s22, 1
      %p96 = por %p94, %p95
      %p97 = scmp.ne.s32.totalorder %s88, %s89
      %p98 = scmp.eq.s32.totalorder %s22, 0
      %p99 = por %p97, %p98
      %p100 = scmp.ne.s32.totalorder %s88, %s89
      %p101 = scmp.eq.s32.totalorder %s23, 1
      %p102 = por %p100, %p101
      %p104 = scmp.ne.s32.totalorder %s89, %s103
      %p105 = scmp.eq.s32.totalorder %s23, 0
      %p106 = por %p104, %p105
      %s107 = ssub.s32 %s24, %s36
      %p108 = scmp.eq.s32.totalorder %s107, 0
      %s110 = sadd.s32 %s109, 1
      %s111 = scalar_select %p108, %s109, %s110
      %p114 = pneg %p108
      %p115 = scmp.eq.s32.totalorder %s17, 1
      %p116 = por %p114, %p115
      %p117 = scmp.ne.s32.totalorder %s109, %s112
      %p118 = scmp.eq.s32.totalorder %s17, 0
      %p119 = por %p117, %p118
      %p120 = scmp.ne.s32.totalorder %s109, %s112
      %p121 = scmp.eq.s32.totalorder %s22, 1
      %p122 = por %p120, %p121
      %p123 = scmp.ne.s32.totalorder %s112, %s113
      %p124 = scmp.eq.s32.totalorder %s22, 0
      %p125 = por %p123, %p124
      %p126 = scmp.ne.s32.totalorder %s112, %s113
      %p127 = scmp.eq.s32.totalorder %s23, 1
      %p128 = por %p126, %p127
      %p130 = scmp.ne.s32.totalorder %s113, %s129
      %p131 = scmp.eq.s32.totalorder %s23, 0
      %p132 = por %p130, %p131
      %p133 = scmp.le.s32.totalorder 1, %s17
      %p134 = scmp.lt.s32.totalorder %s17, 3
      %p135 = pnand %p133, %p134
      %p136 = pneg %p135
      // Predicated region
      $region9: #{tpu_custom_call.1} parent=5 // pred_check
        _
      $region10: #{tpu_custom_call.1} parent=5 // pred_check_branch
        %138 = sbr.rel (%p135) target = $region12
      $region11: #{tpu_custom_call.1} parent=5 // pred_region
        %s139 = ssub.s32 %s17, 1
        // Predicated region
        $region13: #{tpu_custom_call.1} parent=11 // pred_check
          %p140 = pneg %p78
        $region14: #{tpu_custom_call.1} parent=11 // pred_check_branch
          %142 = sbr.rel (%p140) target = $region16
        $region15: #{tpu_custom_call.1} parent=11 // pred_region
          %s144 = ssub.s32 16, 16
          %145 = vsyncadd [#allocation11], %s144
          %s147 = sshll.u32 %s1, 4
          %s148 = int_to_ptr.vmem [resolvable:$true] %s147
          %150 = dma.vmem_to_smem %s148, 16, [#allocation12], [#allocation11]
        $region16: #{tpu_custom_call.1} parent=11 // pred_fallthru
          _
        // Predicated region
        $region17: #{tpu_custom_call.1} parent=11 // pred_check
          %p151 = pneg %p99
        $region18: #{tpu_custom_call.1} parent=11 // pred_check_branch
          %153 = sbr.rel (%p151) target = $region20
        $region19: #{tpu_custom_call.1} parent=11 // pred_region
          _
        $region20: #{tpu_custom_call.1} parent=11 // pred_fallthru
          _
      $region12: #{tpu_custom_call.1} parent=5 // pred_fallthru
        _
      %p154 = scmp.lt.s32.totalorder %s17, 2
      // Predicated region
      $region21: #{tpu_custom_call.1} parent=5 // pred_check
        %p155 = pneg %p154
      $region22: #{tpu_custom_call.1} parent=5 // pred_check_branch
        %157 = sbr.rel (%p155) target = $region24
      $region23: #{tpu_custom_call.1} parent=5 // pred_region
        // Predicated region
        $region25: #{tpu_custom_call.1} parent=23 // pred_check
          %p158 = pneg %p51
        $region26: #{tpu_custom_call.1} parent=23 // pred_check_branch
          %160 = sbr.rel (%p158) target = $region28
        $region27: #{tpu_custom_call.1} parent=23 // pred_region
          %s161 = sand.u32 %s41, 1
          %s162 = scalar_lea.sflag [#allocation9], %s161
          %s163 = sand.u32 %s41, 1
          %s164 = smul.addr %s163, 8
          %s165 = scalar_lea.vmem [#allocation8], %s164
          %s167 = ssub.s32 128, 128
          %168 = vsyncadd %s162, %s167
          %s169 = smul.addr %s25, 2
          %s170 = smul.addr %s24, 2
          %s171 = sadd.s32 %s169, %s170
          %s172 = smul.addr %s171, 64
          %s173 = scalar_lea.hbm %s0, %s172
          %s175 = sshll.u32 %s165, 4
          %s176 = int_to_ptr.vmem [resolvable:$true] %s175
          %178 = dma.hbm_to_vmem [thread:$0]  %s173, 128, %s176, %s162
        $region28: #{tpu_custom_call.1} parent=23 // pred_fallthru
          _
      $region24: #{tpu_custom_call.1} parent=5 // pred_fallthru
        _
      %p179 = scmp.le.s32.totalorder 1, %s17
      %p180 = scmp.lt.s32.totalorder %s17, 3
      %p181 = pnand %p179, %p180
      %p182 = pneg %p181
      // Predicated region
      $region29: #{tpu_custom_call.1} parent=5 // pred_check
        _
      $region30: #{tpu_custom_call.1} parent=5 // pred_check_branch
        %184 = sbr.rel (%p181) target = $region32
      $region31: #{tpu_custom_call.1} parent=5 // pred_region
        %s185 = ssub.s32 %s17, 1
        %s186 = sand.u32 %s44, 1
        %s187 = scalar_lea.sflag [#allocation9], %s186
        %s188 = sand.u32 %s44, 1
        %s189 = smul.addr %s188, 8
        %s190 = scalar_lea.vmem [#allocation8], %s189
        // Predicated region
        $region33: #{tpu_custom_call.1} parent=31 // pred_check
          %p191 = pneg %p57
        $region34: #{tpu_custom_call.1} parent=31 // pred_check_branch
          %193 = sbr.rel (%p191) target = $region36
        $region35: #{tpu_custom_call.1} parent=31 // pred_region
          %194 = dma.done %s187, 128
        $region36: #{tpu_custom_call.1} parent=31 // pred_fallthru
          _
        // Predicated region
        $region37: #{tpu_custom_call.1} parent=31 // pred_check
          %p195 = pneg %p78
        $region38: #{tpu_custom_call.1} parent=31 // pred_check_branch
          %197 = sbr.rel (%p195) target = $region40
        $region39: #{tpu_custom_call.1} parent=31 // pred_region
          %198 = dma.done [#allocation11], 16
        $region40: #{tpu_custom_call.1} parent=31 // pred_fallthru
          _
        %199 = sfence
        %s200 = sand.u32 %s44, 1
        %s201 = scalar_lea.sflag [#allocation9], %s200
        %s202 = sand.u32 %s44, 1
        %s203 = smul.addr %s202, 8
        %s204 = scalar_lea.vmem [#allocation8], %s203
        %p205 = pneg %p57
        %p206 = pneg %p54
        %p207 = pneg %p78
        %p208 = pneg %p75
        %p209 = pneg %p99
        %p210 = pneg %p96
        %p211 = pneg %p125
        %p212 = pneg %p122
        %s213 = sand.u32 %s112, 1
        %s214 = scalar_lea.sflag [#allocation10], %s213
        %s215 = sand.u32 %s112, 1
        %s216 = smul.addr %s215, 16
        %s217 = scalar_lea.vmem [#allocation13], %s216
        %p218 = scmp.eq.s32.totalorder %s27, 0
        // Predicated region
        $region41: #{tpu_custom_call.1} parent=31 // pred_check
          %p219 = pneg %p218
        $region42: #{tpu_custom_call.1} parent=31 // pred_check_branch
          %221 = sbr.rel (%p219) target = $region44
        $region43: #{tpu_custom_call.1} parent=31 // pred_region
          %222 = vst [vmem:[#allocation2] sm:$0xff] -inf
          %223 = vst [vmem:[#allocation2 + $0x8] sm:$0xff] -inf
          %224 = vst [vmem:[#allocation3] sm:$0xff] 0.0
          %225 = vst [vmem:[#allocation3 + $0x8] sm:$0xff] 0.0
        $region44: #{tpu_custom_call.1} parent=31 // pred_fallthru
          _
        %v226 = vlaneseq
        %v227 = vshrl.u32 %v226, 7
        %vm228 = vcmp.eq.s32.totalorder %v227, 0
        %v229 = vld [vmem:[#allocation2] sm:$0xff]
        %v230 = vld [vmem:[#allocation2 + $0x8] sm:$0xff]
        %v231 = vld [vmem:[#allocation3] sm:$0xff]
        %v232 = vld [vmem:[#allocation3 + $0x8] sm:$0xff]
        %v233 = vld [vmem:[%s190] ss:$4 sm:$0x3]
        %s234 = scalar_lea.vmem %s190, 1 [#allocation8]
        %v235 = vld [vmem:[%s234] ss:$4 sm:$0x3]
        %v236 = vmax.f32 %v233, %v235
        %v237 = vadd.f32 %v233, %v235
        %s238 = scalar_lea.vmem %s190, 2 [#allocation8]
        %v239 = vld [vmem:[%s238] ss:$4 sm:$0x3]
        %v240 = vmax.f32 %v236, %v239
        %v241 = vadd.f32 %v237, %v239
        %s242 = scalar_lea.vmem %s190, 3 [#allocation8]
        %v243 = vld [vmem:[%s242] ss:$4 sm:$0x3]
        %v244 = vmax.f32 %v240, %v243
        %v245 = vadd.f32 %v241, %v243
        %v247 = vlaneseq
        %v248 = vshrl.u32 %v247, 7
        %v249 = vsub.s32 0, %v248
        %v250 = vrot.slane %v244, %v249
        %v251 = vlaneseq
        %v252 = vshrl.u32 %v251, 7
        %v253 = vsub.s32 1, %v252
        %v254 = vrot.slane %v244, %v253
        %v257 = vsel %vm228, %v250, -inf
        %v258 = vsel %vm228, %v254, -inf
        %v259 = vmax.f32 %v229, %v257
        %v260 = vmax.f32 %v230, %v258
        %v262 = vlaneseq
        %v263 = vshrl.u32 %v262, 7
        %v264 = vsub.s32 0, %v263
        %v265 = vrot.slane %v245, %v264
        %v266 = vlaneseq
        %v267 = vshrl.u32 %v266, 7
        %v268 = vsub.s32 1, %v267
        %v269 = vrot.slane %v245, %v268
        %v272 = vsel %vm228, %v265, 0.0
        %v273 = vsel %vm228, %v269, 0.0
        %v274 = vadd.f32 %v231, %v272
        %v275 = vadd.f32 %v232, %v273
        %276 = vst [vmem:[#allocation2] sm:$0xff] %v259
        %277 = vst [vmem:[#allocation2 + $0x8] sm:$0xff] %v260
        %278 = vst [vmem:[#allocation3] sm:$0xff] %v274
        %279 = vst [vmem:[#allocation3 + $0x8] sm:$0xff] %v275
        // Predicated region
        $region45: #{tpu_custom_call.1} parent=31 // pred_check
          %p280 = pneg %p218
        $region46: #{tpu_custom_call.1} parent=31 // pred_check_branch
          %282 = sbr.rel (%p280) target = $region48
        $region47: #{tpu_custom_call.1} parent=31 // pred_region
          %283 = vst [vmem:[#allocation4] sm:$0xff] 0.0
          %284 = vst [vmem:[#allocation4 + $0x20] sm:$0xff] 0.0
          %285 = vst [vmem:[#allocation4 + $0x18] sm:$0x7] 0.0
          %286 = vst [vmem:[#allocation4 + $0x38] sm:$0x7] 0.0
          %vm287 = vcmask 1047680
          %288 = vst.msk [vmem:[#allocation4 + $0x8] sm:$0xff] %vm287, 0.0
          %289 = vst.msk [vmem:[#allocation4 + $0x10] sm:$0xff] %vm287, 0.0
          %290 = vst.msk [vmem:[#allocation4 + $0x28] sm:$0xff] %vm287, 0.0
          %291 = vst.msk [vmem:[#allocation4 + $0x30] sm:$0xff] %vm287, 0.0
          %s292 = sld [smem:[#allocation7]]
          %v293 = vstv %s292
          %v294 = vld [vmem:[#allocation2] sm:$0xff]
          %v295 = vld [vmem:[#allocation2 + $0x8] sm:$0xff]
          %v296 = vrot.slane %v294, 4
          %v297 = vmax.f32 %v294, %v296
          %v298 = vrot.slane %v297, 2
          %v299 = vmax.f32 %v297, %v298
          %v300 = vrot.slane %v299, 1
          %v301 = vmax.f32 %v299, %v300
          %v302 = vrot.slane %v295, 4
          %v303 = vmax.f32 %v295, %v302
          %v304 = vrot.slane %v303, 2
          %v305 = vmax.f32 %v303, %v304
          %v306 = vrot.slane %v305, 1
          %v307 = vmax.f32 %v305, %v306
          %v310 = vcombine.low %v301, %v307
          %v312 = vunpack.c.l.s4 1966171168
          %v313 = vunpack.c.0.s8 %v312
          %v314 = vlaneseq
          %v315 = vshrl.u32 %v314, 7
          %v316 = vsub.s32 %v313, %v315
          %v317 = vrot.slane %v310, %v316
          %v319 = vunpack.c.l.s4 1966171168
          %v320 = vunpack.c.0.s8 %v319
          %v321 = vlaneseq
          %v322 = vshrl.u32 %v321, 7
          %v323 = vsub.s32 %v320, %v322
          %v324 = vrot.slane %v317, %v323
          %v326 = vlaneseq
          %vm327 = vcmp.ge.s32.totalorder %v326, 0
          %vm328 = vcmp.lt.s32.totalorder %v326, 256
          %vm329 = vmand %vm327, %vm328
          %330 = vst.msk [vmem:[#allocation5] ss:$2 sm:$0x3] %vm329, %v324
          %v331 = vld [vmem:[#allocation3] sm:$0xff]
          %v332 = vld [vmem:[#allocation3 + $0x8] sm:$0xff]
          %v333 = vrot.slane %v331, 4
          %v334 = vadd.f32 %v331, %v333
          %v335 = vrot.slane %v334, 2
          %v336 = vadd.f32 %v334, %v335
          %v337 = vrot.slane %v336, 1
          %v338 = vadd.f32 %v336, %v337
          %v339 = vrot.slane %v332, 4
          %v340 = vadd.f32 %v332, %v339
          %v341 = vrot.slane %v340, 2
          %v342 = vadd.f32 %v340, %v341
          %v343 = vrot.slane %v342, 1
          %v344 = vadd.f32 %v342, %v343
          %v347 = vcombine.low %v338, %v344
          %v349 = vunpack.c.l.s4 1966171168
          %v350 = vunpack.c.0.s8 %v349
          %v351 = vlaneseq
          %v352 = vshrl.u32 %v351, 7
          %v353 = vsub.s32 %v350, %v352
          %v354 = vrot.slane %v347, %v353
          %v356 = vunpack.c.l.s4 1966171168
          %v357 = vunpack.c.0.s8 %v356
          %v358 = vlaneseq
          %v359 = vshrl.u32 %v358, 7
          %v360 = vsub.s32 %v357, %v359
          %v361 = vrot.slane %v354, %v360
          %s363 = scalar_lea.vmem [#allocation5], 1
          %364 = vst.msk [vmem:[%s363] ss:$2 sm:$0x3] %vm329, %v361
          %v365 = vld [vmem:[#allocation5] sm:$0x1]
          %vm366 = vcmask 122880
          %367 = vst.msk [vmem:[#allocation4 + $0x8] sm:$0x1] %vm366, %v365
          %v368 = vld [vmem:[#allocation5] sm:$0x1]
          %v370 = vlaneseq
          %v371 = vshrl.u32 %v370, 7
          %v372 = vsub.s32 0, %v371
          %v373 = vrot.slane %v368, %v372
          %374 = vrot.lane.b32.xlu0 %v373, 112
          %v375 = vpop.permute.xlu0 %374
          %377 = vst.msk [vmem:[#allocation4 + $0x9] sm:$0x1] %vm366, %v375
          %v378 = vld [vmem:[#allocation5] sm:$0x1]
          %v380 = vlaneseq
          %v381 = vshrl.u32 %v380, 7
          %v382 = vsub.s32 0, %v381
          %v383 = vrot.slane %v378, %v382
          %384 = vrot.lane.b32.xlu0 %v383, 96
          %v385 = vpop.permute.xlu0 %384
          %387 = vst.msk [vmem:[#allocation4 + $0xa] sm:$0x1] %vm366, %v385
          %v388 = vld [vmem:[#allocation5] sm:$0x1]
          %v390 = vlaneseq
          %v391 = vshrl.u32 %v390, 7
          %v392 = vsub.s32 0, %v391
          %v393 = vrot.slane %v388, %v392
          %394 = vrot.lane.b32.xlu0 %v393, 80
          %v395 = vpop.permute.xlu0 %394
          %397 = vst.msk [vmem:[#allocation4 + $0xb] sm:$0x1] %vm366, %v395
          %v398 = vld [vmem:[#allocation5] sm:$0x1]
          %v400 = vlaneseq
          %v401 = vshrl.u32 %v400, 7
          %v402 = vsub.s32 0, %v401
          %v403 = vrot.slane %v398, %v402
          %404 = vrot.lane.b32.xlu0 %v403, 64
          %v405 = vpop.permute.xlu0 %404
          %407 = vst.msk [vmem:[#allocation4 + $0xc] sm:$0x1] %vm366, %v405
          %v408 = vld [vmem:[#allocation5] sm:$0x1]
          %v410 = vlaneseq
          %v411 = vshrl.u32 %v410, 7
          %v412 = vsub.s32 0, %v411
          %v413 = vrot.slane %v408, %v412
          %414 = vrot.lane.b32.xlu0 %v413, 48
          %v415 = vpop.permute.xlu0 %414
          %417 = vst.msk [vmem:[#allocation4 + $0xd] sm:$0x1] %vm366, %v415
          %v418 = vld [vmem:[#allocation5] sm:$0x1]
          %v420 = vlaneseq
          %v421 = vshrl.u32 %v420, 7
          %v422 = vsub.s32 0, %v421
          %v423 = vrot.slane %v418, %v422
          %424 = vrot.lane.b32.xlu0 %v423, 32
          %v425 = vpop.permute.xlu0 %424
          %427 = vst.msk [vmem:[#allocation4 + $0xe] sm:$0x1] %vm366, %v425
          %v428 = vld [vmem:[#allocation5] sm:$0x1]
          %v430 = vlaneseq
          %v431 = vshrl.u32 %v430, 7
          %v432 = vsub.s32 0, %v431
          %v433 = vrot.slane %v428, %v432
          %434 = vrot.lane.b32.xlu0 %v433, 16
          %v435 = vpop.permute.xlu0 %434
          %437 = vst.msk [vmem:[#allocation4 + $0xf] sm:$0x1] %vm366, %v435
          %v438 = vld [vmem:[#allocation5 + $0x2] sm:$0x1]
          %439 = vst.msk [vmem:[#allocation4 + $0x10] sm:$0x1] %vm366, %v438
          %v440 = vld [vmem:[#allocation5 + $0x2] sm:$0x1]
          %v442 = vlaneseq
          %v443 = vshrl.u32 %v442, 7
          %v444 = vsub.s32 0, %v443
          %v445 = vrot.slane %v440, %v444
          %446 = vrot.lane.b32.xlu0 %v445, 112
          %v447 = vpop.permute.xlu0 %446
          %449 = vst.msk [vmem:[#allocation4 + $0x11] sm:$0x1] %vm366, %v447
          %v450 = vld [vmem:[#allocation5 + $0x2] sm:$0x1]
          %v452 = vlaneseq
          %v453 = vshrl.u32 %v452, 7
          %v454 = vsub.s32 0, %v453
          %v455 = vrot.slane %v450, %v454
          %456 = vrot.lane.b32.xlu0 %v455, 96
          %v457 = vpop.permute.xlu0 %456
          %459 = vst.msk [vmem:[#allocation4 + $0x12] sm:$0x1] %vm366, %v457
          %v460 = vld [vmem:[#allocation5 + $0x2] sm:$0x1]
          %v462 = vlaneseq
          %v463 = vshrl.u32 %v462, 7
          %v464 = vsub.s32 0, %v463
          %v465 = vrot.slane %v460, %v464
          %466 = vrot.lane.b32.xlu0 %v465, 80
          %v467 = vpop.permute.xlu0 %466
          %469 = vst.msk [vmem:[#allocation4 + $0x13] sm:$0x1] %vm366, %v467
          %v470 = vld [vmem:[#allocation5 + $0x2] sm:$0x1]
          %v472 = vlaneseq
          %v473 = vshrl.u32 %v472, 7
          %v474 = vsub.s32 0, %v473
          %v475 = vrot.slane %v470, %v474
          %476 = vrot.lane.b32.xlu0 %v475, 64
          %v477 = vpop.permute.xlu0 %476
          %479 = vst.msk [vmem:[#allocation4 + $0x14] sm:$0x1] %vm366, %v477
          %v480 = vld [vmem:[#allocation5 + $0x2] sm:$0x1]
          %v482 = vlaneseq
          %v483 = vshrl.u32 %v482, 7
          %v484 = vsub.s32 0, %v483
          %v485 = vrot.slane %v480, %v484
          %486 = vrot.lane.b32.xlu0 %v485, 48
          %v487 = vpop.permute.xlu0 %486
          %489 = vst.msk [vmem:[#allocation4 + $0x15] sm:$0x1] %vm366, %v487
          %v490 = vld [vmem:[#allocation5 + $0x2] sm:$0x1]
          %v492 = vlaneseq
          %v493 = vshrl.u32 %v492, 7
          %v494 = vsub.s32 0, %v493
          %v495 = vrot.slane %v490, %v494
          %496 = vrot.lane.b32.xlu0 %v495, 32
          %v497 = vpop.permute.xlu0 %496
          %499 = vst.msk [vmem:[#allocation4 + $0x16] sm:$0x1] %vm366, %v497
          %v500 = vld [vmem:[#allocation5 + $0x2] sm:$0x1]
          %v502 = vlaneseq
          %v503 = vshrl.u32 %v502, 7
          %v504 = vsub.s32 0, %v503
          %v505 = vrot.slane %v500, %v504
          %506 = vrot.lane.b32.xlu0 %v505, 16
          %v507 = vpop.permute.xlu0 %506
          %509 = vst.msk [vmem:[#allocation4 + $0x17] sm:$0x1] %vm366, %v507
          %v510 = vld [vmem:[#allocation5 + $0x1] sm:$0x1]
          %s511 = scalar_lea.vmem [#allocation4], 32
          %512 = vst.msk [vmem:[%s511 + $0x8] sm:$0x1] %vm366, %v510
          %v513 = vld [vmem:[#allocation5 + $0x1] sm:$0x1]
          %v515 = vlaneseq
          %v516 = vshrl.u32 %v515, 7
          %v517 = vsub.s32 0, %v516
          %v518 = vrot.slane %v513, %v517
          %519 = vrot.lane.b32.xlu0 %v518, 112
          %v520 = vpop.permute.xlu0 %519
          %522 = vst.msk [vmem:[%s511 + $0x9] sm:$0x1] %vm366, %v520
          %v523 = vld [vmem:[#allocation5 + $0x1] sm:$0x1]
          %v525 = vlaneseq
          %v526 = vshrl.u32 %v525, 7
          %v527 = vsub.s32 0, %v526
          %v528 = vrot.slane %v523, %v527
          %529 = vrot.lane.b32.xlu0 %v528, 96
          %v530 = vpop.permute.xlu0 %529
          %532 = vst.msk [vmem:[%s511 + $0xa] sm:$0x1] %vm366, %v530
          %v533 = vld [vmem:[#allocation5 + $0x1] sm:$0x1]
          %v535 = vlaneseq
          %v536 = vshrl.u32 %v535, 7
          %v537 = vsub.s32 0, %v536
          %v538 = vrot.slane %v533, %v537
          %539 = vrot.lane.b32.xlu0 %v538, 80
          %v540 = vpop.permute.xlu0 %539
          %542 = vst.msk [vmem:[%s511 + $0xb] sm:$0x1] %vm366, %v540
          %v543 = vld [vmem:[#allocation5 + $0x1] sm:$0x1]
          %v545 = vlaneseq
          %v546 = vshrl.u32 %v545, 7
          %v547 = vsub.s32 0, %v546
          %v548 = vrot.slane %v543, %v547
          %549 = vrot.lane.b32.xlu0 %v548, 64
          %v550 = vpop.permute.xlu0 %549
          %552 = vst.msk [vmem:[%s511 + $0xc] sm:$0x1] %vm366, %v550
          %v553 = vld [vmem:[#allocation5 + $0x1] sm:$0x1]
          %v555 = vlaneseq
          %v556 = vshrl.u32 %v555, 7
          %v557 = vsub.s32 0, %v556
          %v558 = vrot.slane %v553, %v557
          %559 = vrot.lane.b32.xlu0 %v558, 48
          %v560 = vpop.permute.xlu0 %559
          %562 = vst.msk [vmem:[%s511 + $0xd] sm:$0x1] %vm366, %v560
          %v563 = vld [vmem:[#allocation5 + $0x1] sm:$0x1]
          %v565 = vlaneseq
          %v566 = vshrl.u32 %v565, 7
          %v567 = vsub.s32 0, %v566
          %v568 = vrot.slane %v563, %v567
          %569 = vrot.lane.b32.xlu0 %v568, 32
          %v570 = vpop.permute.xlu0 %569
          %572 = vst.msk [vmem:[%s511 + $0xe] sm:$0x1] %vm366, %v570
          %v573 = vld [vmem:[#allocation5 + $0x1] sm:$0x1]
          %v575 = vlaneseq
          %v576 = vshrl.u32 %v575, 7
          %v577 = vsub.s32 0, %v576
          %v578 = vrot.slane %v573, %v577
          %579 = vrot.lane.b32.xlu0 %v578, 16
          %v580 = vpop.permute.xlu0 %579
          %582 = vst.msk [vmem:[%s511 + $0xf] sm:$0x1] %vm366, %v580
          %v583 = vld [vmem:[#allocation5 + $0x3] sm:$0x1]
          %584 = vst.msk [vmem:[%s511 + $0x10] sm:$0x1] %vm366, %v583
          %v585 = vld [vmem:[#allocation5 + $0x3] sm:$0x1]
          %v587 = vlaneseq
          %v588 = vshrl.u32 %v587, 7
          %v589 = vsub.s32 0, %v588
          %v590 = vrot.slane %v585, %v589
          %591 = vrot.lane.b32.xlu0 %v590, 112
          %v592 = vpop.permute.xlu0 %591
          %594 = vst.msk [vmem:[%s511 + $0x11] sm:$0x1] %vm366, %v592
          %v595 = vld [vmem:[#allocation5 + $0x3] sm:$0x1]
          %v597 = vlaneseq
          %v598 = vshrl.u32 %v597, 7
          %v599 = vsub.s32 0, %v598
          %v600 = vrot.slane %v595, %v599
          %601 = vrot.lane.b32.xlu0 %v600, 96
          %v602 = vpop.permute.xlu0 %601
          %604 = vst.msk [vmem:[%s511 + $0x12] sm:$0x1] %vm366, %v602
          %v605 = vld [vmem:[#allocation5 + $0x3] sm:$0x1]
          %v607 = vlaneseq
          %v608 = vshrl.u32 %v607, 7
          %v609 = vsub.s32 0, %v608
          %v610 = vrot.slane %v605, %v609
          %611 = vrot.lane.b32.xlu0 %v610, 80
          %v612 = vpop.permute.xlu0 %611
          %614 = vst.msk [vmem:[%s511 + $0x13] sm:$0x1] %vm366, %v612
          %v615 = vld [vmem:[#allocation5 + $0x3] sm:$0x1]
          %v617 = vlaneseq
          %v618 = vshrl.u32 %v617, 7
          %v619 = vsub.s32 0, %v618
          %v620 = vrot.slane %v615, %v619
          %621 = vrot.lane.b32.xlu0 %v620, 64
          %v622 = vpop.permute.xlu0 %621
          %624 = vst.msk [vmem:[%s511 + $0x14] sm:$0x1] %vm366, %v622
          %v625 = vld [vmem:[#allocation5 + $0x3] sm:$0x1]
          %v627 = vlaneseq
          %v628 = vshrl.u32 %v627, 7
          %v629 = vsub.s32 0, %v628
          %v630 = vrot.slane %v625, %v629
          %631 = vrot.lane.b32.xlu0 %v630, 48
          %v632 = vpop.permute.xlu0 %631
          %634 = vst.msk [vmem:[%s511 + $0x15] sm:$0x1] %vm366, %v632
          %v635 = vld [vmem:[#allocation5 + $0x3] sm:$0x1]
          %v637 = vlaneseq
          %v638 = vshrl.u32 %v637, 7
          %v639 = vsub.s32 0, %v638
          %v640 = vrot.slane %v635, %v639
          %641 = vrot.lane.b32.xlu0 %v640, 32
          %v642 = vpop.permute.xlu0 %641
          %644 = vst.msk [vmem:[%s511 + $0x16] sm:$0x1] %vm366, %v642
          %v645 = vld [vmem:[#allocation5 + $0x3] sm:$0x1]
          %v647 = vlaneseq
          %v648 = vshrl.u32 %v647, 7
          %v649 = vsub.s32 0, %v648
          %v650 = vrot.slane %v645, %v649
          %651 = vrot.lane.b32.xlu0 %v650, 16
          %v652 = vpop.permute.xlu0 %651
          %654 = vst.msk [vmem:[%s511 + $0x17] sm:$0x1] %vm366, %v652
          %v655 = vld [vmem:[#allocation4] sm:$0xff]
          %v656 = vld [vmem:[#allocation4 + $0x8] sm:$0xff]
          %v657 = vld [vmem:[#allocation4 + $0x10] sm:$0xff]
          %v658 = vld [vmem:[#allocation4 + $0x18] sm:$0x7]
          %659 = vrot.lane.b32.xlu0 %v655, 3
          %v660 = vpop.permute.xlu0 %659
          %661 = vrot.lane.b32.xlu0 %v656, 3
          %v662 = vpop.permute.xlu0 %661
          %663 = vrot.lane.b32.xlu0 %v657, 3
          %v664 = vpop.permute.xlu0 %663
          %665 = vrot.lane.b32.xlu0 %v658, 3
          %v666 = vpop.permute.xlu0 %665
          %667 = vst [vmem:[#allocation6] sm:$0xff] %v660
          %668 = vst [vmem:[#allocation6 + $0x8] sm:$0xff] %v662
          %669 = vst [vmem:[#allocation6 + $0x10] sm:$0xff] %v664
          %670 = vst [vmem:[#allocation6 + $0x18] sm:$0x7] %v666
          %s671 = sld [smem:[#allocation12]]
          %v672 = vld [vmem:[#allocation6 + $0x5] sm:$0xff]
          %v673 = vld [vmem:[#allocation6 + $0xd] sm:$0xff]
          %v674 = vstv %s671
          %v675 = vmul.f32 %v674, %v672
          %v676 = vmul.f32 %v674, %v673
          %v677 = vadd.f32 %v293, %v675
          %v678 = vadd.f32 %v293, %v676
          %s679 = sld [smem:[#allocation12 + $0x7]]
          %v680 = vld [vmem:[#allocation6 + $0x6] sm:$0xff]
          %v681 = vld [vmem:[#allocation6 + $0xe] sm:$0xff]
          %v682 = vstv %s679
          %v683 = vmul.f32 %v682, %v680
          %v684 = vmul.f32 %v682, %v681
          %v685 = vadd.f32 %v677, %v683
          %v686 = vadd.f32 %v678, %v684
          %s687 = sld [smem:[#allocation12 + $0xe]]
          %v688 = vld [vmem:[#allocation6 + $0x7] sm:$0xff]
          %v689 = vld [vmem:[#allocation6 + $0xf] sm:$0xff]
          %v690 = vstv %s687
          %v691 = vmul.f32 %v690, %v688
          %v692 = vmul.f32 %v690, %v689
          %v693 = vadd.f32 %v685, %v691
          %v694 = vadd.f32 %v686, %v692
          %s695 = sld [smem:[#allocation12 + $0x15]]
          %v696 = vld [vmem:[#allocation6 + $0x8] sm:$0xff]
          %v697 = vld [vmem:[#allocation6 + $0x10] sm:$0xff]
          %v698 = vstv %s695
          %v699 = vmul.f32 %v698, %v696
          %v700 = vmul.f32 %v698, %v697
          %v701 = vadd.f32 %v693, %v699
          %v702 = vadd.f32 %v694, %v700
          %s703 = sld [smem:[#allocation12 + $0x1c]]
          %v704 = vld [vmem:[#allocation6 + $0x9] sm:$0xff]
          %v705 = vld [vmem:[#allocation6 + $0x11] sm:$0xff]
          %v706 = vstv %s703
          %v707 = vmul.f32 %v706, %v704
          %v708 = vmul.f32 %v706, %v705
          %v709 = vadd.f32 %v701, %v707
          %v710 = vadd.f32 %v702, %v708
          %s711 = sld [smem:[#allocation12 + $0x23]]
          %v712 = vld [vmem:[#allocation6 + $0xa] sm:$0xff]
          %v713 = vld [vmem:[#allocation6 + $0x12] sm:$0xff]
          %v714 = vstv %s711
          %v715 = vmul.f32 %v714, %v712
          %v716 = vmul.f32 %v714, %v713
          %v717 = vadd.f32 %v709, %v715
          %v718 = vadd.f32 %v710, %v716
          %s719 = sld [smem:[#allocation12 + $0x2a]]
          %v720 = vld [vmem:[#allocation6 + $0xb] sm:$0xff]
          %v721 = vld [vmem:[#allocation6 + $0x13] sm:$0xff]
          %v722 = vstv %s719
          %v723 = vmul.f32 %v722, %v720
          %v724 = vmul.f32 %v722, %v721
          %v725 = vadd.f32 %v717, %v723
          %v726 = vadd.f32 %v718, %v724
          %v727 = vld [vmem:[#allocation4] sm:$0xff]
          %v728 = vld [vmem:[#allocation4 + $0x8] sm:$0xff]
          %v729 = vld [vmem:[#allocation4 + $0x10] sm:$0xff]
          %v730 = vld [vmem:[#allocation4 + $0x18] sm:$0x7]
          %731 = vrot.lane.b32.xlu0 %v727, 2
          %v732 = vpop.permute.xlu0 %731
          %733 = vrot.lane.b32.xlu0 %v728, 2
          %v734 = vpop.permute.xlu0 %733
          %735 = vrot.lane.b32.xlu0 %v729, 2
          %v736 = vpop.permute.xlu0 %735
          %737 = vrot.lane.b32.xlu0 %v730, 2
          %v738 = vpop.permute.xlu0 %737
          %739 = vst [vmem:[#allocation6] sm:$0xff] %v732
          %740 = vst [vmem:[#allocation6 + $0x8] sm:$0xff] %v734
          %741 = vst [vmem:[#allocation6 + $0x10] sm:$0xff] %v736
          %742 = vst [vmem:[#allocation6 + $0x18] sm:$0x7] %v738
          %s743 = sld [smem:[#allocation12 + $0x1]]
          %v744 = vld [vmem:[#allocation6 + $0x5] sm:$0xff]
          %v745 = vld [vmem:[#allocation6 + $0xd] sm:$0xff]
          %v746 = vstv %s743
          %v747 = vmul.f32 %v746, %v744
          %v748 = vmul.f32 %v746, %v745
          %v749 = vadd.f32 %v725, %v747
          %v750 = vadd.f32 %v726, %v748
          %s751 = sld [smem:[#allocation12 + $0x8]]
          %v752 = vld [vmem:[#allocation6 + $0x6] sm:$0xff]
          %v753 = vld [vmem:[#allocation6 + $0xe] sm:$0xff]
          %v754 = vstv %s751
          %v755 = vmul.f32 %v754, %v752
          %v756 = vmul.f32 %v754, %v753
          %v757 = vadd.f32 %v749, %v755
          %v758 = vadd.f32 %v750, %v756
          %s759 = sld [smem:[#allocation12 + $0xf]]
          %v760 = vld [vmem:[#allocation6 + $0x7] sm:$0xff]
          %v761 = vld [vmem:[#allocation6 + $0xf] sm:$0xff]
          %v762 = vstv %s759
          %v763 = vmul.f32 %v762, %v760
          %v764 = vmul.f32 %v762, %v761
          %v765 = vadd.f32 %v757, %v763
          %v766 = vadd.f32 %v758, %v764
          %s767 = sld [smem:[#allocation12 + $0x16]]
          %v768 = vld [vmem:[#allocation6 + $0x8] sm:$0xff]
          %v769 = vld [vmem:[#allocation6 + $0x10] sm:$0xff]
          %v770 = vstv %s767
          %v771 = vmul.f32 %v770, %v768
          %v772 = vmul.f32 %v770, %v769
          %v773 = vadd.f32 %v765, %v771
          %v774 = vadd.f32 %v766, %v772
          %s775 = sld [smem:[#allocation12 + $0x1d]]
          %v776 = vld [vmem:[#allocation6 + $0x9] sm:$0xff]
          %v777 = vld [vmem:[#allocation6 + $0x11] sm:$0xff]
          %v778 = vstv %s775
          %v779 = vmul.f32 %v778, %v776
          %v780 = vmul.f32 %v778, %v777
          %v781 = vadd.f32 %v773, %v779
          %v782 = vadd.f32 %v774, %v780
          %s783 = sld [smem:[#allocation12 + $0x24]]
          %v784 = vld [vmem:[#allocation6 + $0xa] sm:$0xff]
          %v785 = vld [vmem:[#allocation6 + $0x12] sm:$0xff]
          %v786 = vstv %s783
          %v787 = vmul.f32 %v786, %v784
          %v788 = vmul.f32 %v786, %v785
          %v789 = vadd.f32 %v781, %v787
          %v790 = vadd.f32 %v782, %v788
          %s791 = sld [smem:[#allocation12 + $0x2b]]
          %v792 = vld [vmem:[#allocation6 + $0xb] sm:$0xff]
          %v793 = vld [vmem:[#allocation6 + $0x13] sm:$0xff]
          %v794 = vstv %s791
          %v795 = vmul.f32 %v794, %v792
          %v796 = vmul.f32 %v794, %v793
          %v797 = vadd.f32 %v789, %v795
          %v798 = vadd.f32 %v790, %v796
          %v799 = vld [vmem:[#allocation4] sm:$0xff]
          %v800 = vld [vmem:[#allocation4 + $0x8] sm:$0xff]
          %v801 = vld [vmem:[#allocation4 + $0x10] sm:$0xff]
          %v802 = vld [vmem:[#allocation4 + $0x18] sm:$0x7]
          %803 = vrot.lane.b32.xlu0 %v799, 1
          %v804 = vpop.permute.xlu0 %803
          %805 = vrot.lane.b32.xlu0 %v800, 1
          %v806 = vpop.permute.xlu0 %805
          %807 = vrot.lane.b32.xlu0 %v801, 1
          %v808 = vpop.permute.xlu0 %807
          %809 = vrot.lane.b32.xlu0 %v802, 1
          %v810 = vpop.permute.xlu0 %809
          %811 = vst [vmem:[#allocation6] sm:$0xff] %v804
          %812 = vst [vmem:[#allocation6 + $0x8] sm:$0xff] %v806
          %813 = vst [vmem:[#allocation6 + $0x10] sm:$0xff] %v808
          %814 = vst [vmem:[#allocation6 + $0x18] sm:$0x7] %v810
          %s815 = sld [smem:[#allocation12 + $0x2]]
          %v816 = vld [vmem:[#allocation6 + $0x5] sm:$0xff]
          %v817 = vld [vmem:[#allocation6 + $0xd] sm:$0xff]
          %v818 = vstv %s815
          %v819 = vmul.f32 %v818, %v816
          %v820 = vmul.f32 %v818, %v817
          %v821 = vadd.f32 %v797, %v819
          %v822 = vadd.f32 %v798, %v820
          %s823 = sld [smem:[#allocation12 + $0x9]]
          %v824 = vld [vmem:[#allocation6 + $0x6] sm:$0xff]
          %v825 = vld [vmem:[#allocation6 + $0xe] sm:$0xff]
          %v826 = vstv %s823
          %v827 = vmul.f32 %v826, %v824
          %v828 = vmul.f32 %v826, %v825
          %v829 = vadd.f32 %v821, %v827
          %v830 = vadd.f32 %v822, %v828
          %s831 = sld [smem:[#allocation12 + $0x10]]
          %v832 = vld [vmem:[#allocation6 + $0x7] sm:$0xff]
          %v833 = vld [vmem:[#allocation6 + $0xf] sm:$0xff]
          %v834 = vstv %s831
          %v835 = vmul.f32 %v834, %v832
          %v836 = vmul.f32 %v834, %v833
          %v837 = vadd.f32 %v829, %v835
          %v838 = vadd.f32 %v830, %v836
          %s839 = sld [smem:[#allocation12 + $0x17]]
          %v840 = vld [vmem:[#allocation6 + $0x8] sm:$0xff]
          %v841 = vld [vmem:[#allocation6 + $0x10] sm:$0xff]
          %v842 = vstv %s839
          %v843 = vmul.f32 %v842, %v840
          %v844 = vmul.f32 %v842, %v841
          %v845 = vadd.f32 %v837, %v843
          %v846 = vadd.f32 %v838, %v844
          %s847 = sld [smem:[#allocation12 + $0x1e]]
          %v848 = vld [vmem:[#allocation6 + $0x9] sm:$0xff]
          %v849 = vld [vmem:[#allocation6 + $0x11] sm:$0xff]
          %v850 = vstv %s847
          %v851 = vmul.f32 %v850, %v848
          %v852 = vmul.f32 %v850, %v849
          %v853 = vadd.f32 %v845, %v851
          %v854 = vadd.f32 %v846, %v852
          %s855 = sld [smem:[#allocation12 + $0x25]]
          %v856 = vld [vmem:[#allocation6 + $0xa] sm:$0xff]
          %v857 = vld [vmem:[#allocation6 + $0x12] sm:$0xff]
          %v858 = vstv %s855
          %v859 = vmul.f32 %v858, %v856
          %v860 = vmul.f32 %v858, %v857
          %v861 = vadd.f32 %v853, %v859
          %v862 = vadd.f32 %v854, %v860
          %s863 = sld [smem:[#allocation12 + $0x2c]]
          %v864 = vld [vmem:[#allocation6 + $0xb] sm:$0xff]
          %v865 = vld [vmem:[#allocation6 + $0x13] sm:$0xff]
          %v866 = vstv %s863
          %v867 = vmul.f32 %v866, %v864
          %v868 = vmul.f32 %v866, %v865
          %v869 = vadd.f32 %v861, %v867
          %v870 = vadd.f32 %v862, %v868
          %s871 = sld [smem:[#allocation12 + $0x3]]
          %v872 = vld [vmem:[#allocation4 + $0x5] sm:$0xff]
          %v873 = vld [vmem:[#allocation4 + $0xd] sm:$0xff]
          %v874 = vstv %s871
          %v875 = vmul.f32 %v874, %v872
          %v876 = vmul.f32 %v874, %v873
          %v877 = vadd.f32 %v869, %v875
          %v878 = vadd.f32 %v870, %v876
          %s879 = sld [smem:[#allocation12 + $0xa]]
          %v880 = vld [vmem:[#allocation4 + $0x6] sm:$0xff]
          %v881 = vld [vmem:[#allocation4 + $0xe] sm:$0xff]
          %v882 = vstv %s879
          %v883 = vmul.f32 %v882, %v880
          %v884 = vmul.f32 %v882, %v881
          %v885 = vadd.f32 %v877, %v883
          %v886 = vadd.f32 %v878, %v884
          %s887 = sld [smem:[#allocation12 + $0x11]]
          %v888 = vld [vmem:[#allocation4 + $0x7] sm:$0xff]
          %v889 = vld [vmem:[#allocation4 + $0xf] sm:$0xff]
          %v890 = vstv %s887
          %v891 = vmul.f32 %v890, %v888
          %v892 = vmul.f32 %v890, %v889
          %v893 = vadd.f32 %v885, %v891
          %v894 = vadd.f32 %v886, %v892
          %s895 = sld [smem:[#allocation12 + $0x18]]
          %v896 = vld [vmem:[#allocation4 + $0x8] sm:$0xff]
          %v897 = vld [vmem:[#allocation4 + $0x10] sm:$0xff]
          %v898 = vstv %s895
          %v899 = vmul.f32 %v898, %v896
          %v900 = vmul.f32 %v898, %v897
          %v901 = vadd.f32 %v893, %v899
          %v902 = vadd.f32 %v894, %v900
          %s903 = sld [smem:[#allocation12 + $0x1f]]
          %v904 = vld [vmem:[#allocation4 + $0x9] sm:$0xff]
          %v905 = vld [vmem:[#allocation4 + $0x11] sm:$0xff]
          %v906 = vstv %s903
          %v907 = vmul.f32 %v906, %v904
          %v908 = vmul.f32 %v906, %v905
          %v909 = vadd.f32 %v901, %v907
          %v910 = vadd.f32 %v902, %v908
          %s911 = sld [smem:[#allocation12 + $0x26]]
          %v912 = vld [vmem:[#allocation4 + $0xa] sm:$0xff]
          %v913 = vld [vmem:[#allocation4 + $0x12] sm:$0xff]
          %v914 = vstv %s911
          %v915 = vmul.f32 %v914, %v912
          %v916 = vmul.f32 %v914, %v913
          %v917 = vadd.f32 %v909, %v915
          %v918 = vadd.f32 %v910, %v916
          %s919 = sld [smem:[#allocation12 + $0x2d]]
          %v920 = vld [vmem:[#allocation4 + $0xb] sm:$0xff]
          %v921 = vld [vmem:[#allocation4 + $0x13] sm:$0xff]
          %v922 = vstv %s919
          %v923 = vmul.f32 %v922, %v920
          %v924 = vmul.f32 %v922, %v921
          %v925 = vadd.f32 %v917, %v923
          %v926 = vadd.f32 %v918, %v924
          %v927 = vld [vmem:[#allocation4] sm:$0xff]
          %v928 = vld [vmem:[#allocation4 + $0x8] sm:$0xff]
          %v929 = vld [vmem:[#allocation4 + $0x10] sm:$0xff]
          %v930 = vld [vmem:[#allocation4 + $0x18] sm:$0x7]
          %931 = vrot.lane.b32.xlu0 %v927, 127
          %v932 = vpop.permute.xlu0 %931
          %933 = vrot.lane.b32.xlu0 %v928, 127
          %v934 = vpop.permute.xlu0 %933
          %935 = vrot.lane.b32.xlu0 %v929, 127
          %v936 = vpop.permute.xlu0 %935
          %937 = vrot.lane.b32.xlu0 %v930, 127
          %v938 = vpop.permute.xlu0 %937
          %939 = vst [vmem:[#allocation6] sm:$0xff] %v932
          %940 = vst [vmem:[#allocation6 + $0x8] sm:$0xff] %v934
          %941 = vst [vmem:[#allocation6 + $0x10] sm:$0xff] %v936
          %942 = vst [vmem:[#allocation6 + $0x18] sm:$0x7] %v938
          %s943 = sld [smem:[#allocation12 + $0x4]]
          %v944 = vld [vmem:[#allocation6 + $0x5] sm:$0xff]
          %v945 = vld [vmem:[#allocation6 + $0xd] sm:$0xff]
          %v946 = vstv %s943
          %v947 = vmul.f32 %v946, %v944
          %v948 = vmul.f32 %v946, %v945
          %v949 = vadd.f32 %v925, %v947
          %v950 = vadd.f32 %v926, %v948
          %s951 = sld [smem:[#allocation12 + $0xb]]
          %v952 = vld [vmem:[#allocation6 + $0x6] sm:$0xff]
          %v953 = vld [vmem:[#allocation6 + $0xe] sm:$0xff]
          %v954 = vstv %s951
          %v955 = vmul.f32 %v954, %v952
          %v956 = vmul.f32 %v954, %v953
          %v957 = vadd.f32 %v949, %v955
          %v958 = vadd.f32 %v950, %v956
          %s959 = sld [smem:[#allocation12 + $0x12]]
          %v960 = vld [vmem:[#allocation6 + $0x7] sm:$0xff]
          %v961 = vld [vmem:[#allocation6 + $0xf] sm:$0xff]
          %v962 = vstv %s959
          %v963 = vmul.f32 %v962, %v960
          %v964 = vmul.f32 %v962, %v961
          %v965 = vadd.f32 %v957, %v963
          %v966 = vadd.f32 %v958, %v964
          %s967 = sld [smem:[#allocation12 + $0x19]]
          %v968 = vld [vmem:[#allocation6 + $0x8] sm:$0xff]
          %v969 = vld [vmem:[#allocation6 + $0x10] sm:$0xff]
          %v970 = vstv %s967
          %v971 = vmul.f32 %v970, %v968
          %v972 = vmul.f32 %v970, %v969
          %v973 = vadd.f32 %v965, %v971
          %v974 = vadd.f32 %v966, %v972
          %s975 = sld [smem:[#allocation12 + $0x20]]
          %v976 = vld [vmem:[#allocation6 + $0x9] sm:$0xff]
          %v977 = vld [vmem:[#allocation6 + $0x11] sm:$0xff]
          %v978 = vstv %s975
          %v979 = vmul.f32 %v978, %v976
          %v980 = vmul.f32 %v978, %v977
          %v981 = vadd.f32 %v973, %v979
          %v982 = vadd.f32 %v974, %v980
          %s983 = sld [smem:[#allocation12 + $0x27]]
          %v984 = vld [vmem:[#allocation6 + $0xa] sm:$0xff]
          %v985 = vld [vmem:[#allocation6 + $0x12] sm:$0xff]
          %v986 = vstv %s983
          %v987 = vmul.f32 %v986, %v984
          %v988 = vmul.f32 %v986, %v985
          %v989 = vadd.f32 %v981, %v987
          %v990 = vadd.f32 %v982, %v988
          %s991 = sld [smem:[#allocation12 + $0x2e]]
          %v992 = vld [vmem:[#allocation6 + $0xb] sm:$0xff]
          %v993 = vld [vmem:[#allocation6 + $0x13] sm:$0xff]
          %v994 = vstv %s991
          %v995 = vmul.f32 %v994, %v992
          %v996 = vmul.f32 %v994, %v993
          %v997 = vadd.f32 %v989, %v995
          %v998 = vadd.f32 %v990, %v996
          %v999 = vld [vmem:[#allocation4] sm:$0xff]
          %v1000 = vld [vmem:[#allocation4 + $0x8] sm:$0xff]
          %v1001 = vld [vmem:[#allocation4 + $0x10] sm:$0xff]
          %v1002 = vld [vmem:[#allocation4 + $0x18] sm:$0x7]
          %1003 = vrot.lane.b32.xlu0 %v999, 126
          %v1004 = vpop.permute.xlu0 %1003
          %1005 = vrot.lane.b32.xlu0 %v1000, 126
          %v1006 = vpop.permute.xlu0 %1005
          %1007 = vrot.lane.b32.xlu0 %v1001, 126
          %v1008 = vpop.permute.xlu0 %1007
          %1009 = vrot.lane.b32.xlu0 %v1002, 126
          %v1010 = vpop.permute.xlu0 %1009
          %1011 = vst [vmem:[#allocation6] sm:$0xff] %v1004
          %1012 = vst [vmem:[#allocation6 + $0x8] sm:$0xff] %v1006
          %1013 = vst [vmem:[#allocation6 + $0x10] sm:$0xff] %v1008
          %1014 = vst [vmem:[#allocation6 + $0x18] sm:$0x7] %v1010
          %s1015 = sld [smem:[#allocation12 + $0x5]]
          %v1016 = vld [vmem:[#allocation6 + $0x5] sm:$0xff]
          %v1017 = vld [vmem:[#allocation6 + $0xd] sm:$0xff]
          %v1018 = vstv %s1015
          %v1019 = vmul.f32 %v1018, %v1016
          %v1020 = vmul.f32 %v1018, %v1017
          %v1021 = vadd.f32 %v997, %v1019
          %v1022 = vadd.f32 %v998, %v1020
          %s1023 = sld [smem:[#allocation12 + $0xc]]
          %v1024 = vld [vmem:[#allocation6 + $0x6] sm:$0xff]
          %v1025 = vld [vmem:[#allocation6 + $0xe] sm:$0xff]
          %v1026 = vstv %s1023
          %v1027 = vmul.f32 %v1026, %v1024
          %v1028 = vmul.f32 %v1026, %v1025
          %v1029 = vadd.f32 %v1021, %v1027
          %v1030 = vadd.f32 %v1022, %v1028
          %s1031 = sld [smem:[#allocation12 + $0x13]]
          %v1032 = vld [vmem:[#allocation6 + $0x7] sm:$0xff]
          %v1033 = vld [vmem:[#allocation6 + $0xf] sm:$0xff]
          %v1034 = vstv %s1031
          %v1035 = vmul.f32 %v1034, %v1032
          %v1036 = vmul.f32 %v1034, %v1033
          %v1037 = vadd.f32 %v1029, %v1035
          %v1038 = vadd.f32 %v1030, %v1036
          %s1039 = sld [smem:[#allocation12 + $0x1a]]
          %v1040 = vld [vmem:[#allocation6 + $0x8] sm:$0xff]
          %v1041 = vld [vmem:[#allocation6 + $0x10] sm:$0xff]
          %v1042 = vstv %s1039
          %v1043 = vmul.f32 %v1042, %v1040
          %v1044 = vmul.f32 %v1042, %v1041
          %v1045 = vadd.f32 %v1037, %v1043
          %v1046 = vadd.f32 %v1038, %v1044
          %s1047 = sld [smem:[#allocation12 + $0x21]]
          %v1048 = vld [vmem:[#allocation6 + $0x9] sm:$0xff]
          %v1049 = vld [vmem:[#allocation6 + $0x11] sm:$0xff]
          %v1050 = vstv %s1047
          %v1051 = vmul.f32 %v1050, %v1048
          %v1052 = vmul.f32 %v1050, %v1049
          %v1053 = vadd.f32 %v1045, %v1051
          %v1054 = vadd.f32 %v1046, %v1052
          %s1055 = sld [smem:[#allocation12 + $0x28]]
          %v1056 = vld [vmem:[#allocation6 + $0xa] sm:$0xff]
          %v1057 = vld [vmem:[#allocation6 + $0x12] sm:$0xff]
          %v1058 = vstv %s1055
          %v1059 = vmul.f32 %v1058, %v1056
          %v1060 = vmul.f32 %v1058, %v1057
          %v1061 = vadd.f32 %v1053, %v1059
          %v1062 = vadd.f32 %v1054, %v1060
          %s1063 = sld [smem:[#allocation12 + $0x2f]]
          %v1064 = vld [vmem:[#allocation6 + $0xb] sm:$0xff]
          %v1065 = vld [vmem:[#allocation6 + $0x13] sm:$0xff]
          %v1066 = vstv %s1063
          %v1067 = vmul.f32 %v1066, %v1064
          %v1068 = vmul.f32 %v1066, %v1065
          %v1069 = vadd.f32 %v1061, %v1067
          %v1070 = vadd.f32 %v1062, %v1068
          %v1071 = vld [vmem:[#allocation4] sm:$0xff]
          %v1072 = vld [vmem:[#allocation4 + $0x8] sm:$0xff]
          %v1073 = vld [vmem:[#allocation4 + $0x10] sm:$0xff]
          %v1074 = vld [vmem:[#allocation4 + $0x18] sm:$0x7]
          %1075 = vrot.lane.b32.xlu0 %v1071, 125
          %v1076 = vpop.permute.xlu0 %1075
          %1077 = vrot.lane.b32.xlu0 %v1072, 125
          %v1078 = vpop.permute.xlu0 %1077
          %1079 = vrot.lane.b32.xlu0 %v1073, 125
          %v1080 = vpop.permute.xlu0 %1079
          %1081 = vrot.lane.b32.xlu0 %v1074, 125
          %v1082 = vpop.permute.xlu0 %1081
          %1083 = vst [vmem:[#allocation6] sm:$0xff] %v1076
          %1084 = vst [vmem:[#allocation6 + $0x8] sm:$0xff] %v1078
          %1085 = vst [vmem:[#allocation6 + $0x10] sm:$0xff] %v1080
          %1086 = vst [vmem:[#allocation6 + $0x18] sm:$0x7] %v1082
          %s1087 = sld [smem:[#allocation12 + $0x6]]
          %v1088 = vld [vmem:[#allocation6 + $0x5] sm:$0xff]
          %v1089 = vld [vmem:[#allocation6 + $0xd] sm:$0xff]
          %v1090 = vstv %s1087
          %v1091 = vmul.f32 %v1090, %v1088
          %v1092 = vmul.f32 %v1090, %v1089
          %v1093 = vadd.f32 %v1069, %v1091
          %v1094 = vadd.f32 %v1070, %v1092
          %s1095 = sld [smem:[#allocation12 + $0xd]]
          %v1096 = vld [vmem:[#allocation6 + $0x6] sm:$0xff]
          %v1097 = vld [vmem:[#allocation6 + $0xe] sm:$0xff]
          %v1098 = vstv %s1095
          %v1099 = vmul.f32 %v1098, %v1096
          %v1100 = vmul.f32 %v1098, %v1097
          %v1101 = vadd.f32 %v1093, %v1099
          %v1102 = vadd.f32 %v1094, %v1100
          %s1103 = sld [smem:[#allocation12 + $0x14]]
          %v1104 = vld [vmem:[#allocation6 + $0x7] sm:$0xff]
          %v1105 = vld [vmem:[#allocation6 + $0xf] sm:$0xff]
          %v1106 = vstv %s1103
          %v1107 = vmul.f32 %v1106, %v1104
          %v1108 = vmul.f32 %v1106, %v1105
          %v1109 = vadd.f32 %v1101, %v1107
          %v1110 = vadd.f32 %v1102, %v1108
          %s1111 = sld [smem:[#allocation12 + $0x1b]]
          %v1112 = vld [vmem:[#allocation6 + $0x8] sm:$0xff]
          %v1113 = vld [vmem:[#allocation6 + $0x10] sm:$0xff]
          %v1114 = vstv %s1111
          %v1115 = vmul.f32 %v1114, %v1112
          %v1116 = vmul.f32 %v1114, %v1113
          %v1117 = vadd.f32 %v1109, %v1115
          %v1118 = vadd.f32 %v1110, %v1116
          %s1119 = sld [smem:[#allocation12 + $0x22]]
          %v1120 = vld [vmem:[#allocation6 + $0x9] sm:$0xff]
          %v1121 = vld [vmem:[#allocation6 + $0x11] sm:$0xff]
          %v1122 = vstv %s1119
          %v1123 = vmul.f32 %v1122, %v1120
          %v1124 = vmul.f32 %v1122, %v1121
          %v1125 = vadd.f32 %v1117, %v1123
          %v1126 = vadd.f32 %v1118, %v1124
          %s1127 = sld [smem:[#allocation12 + $0x29]]
          %v1128 = vld [vmem:[#allocation6 + $0xa] sm:$0xff]
          %v1129 = vld [vmem:[#allocation6 + $0x12] sm:$0xff]
          %v1130 = vstv %s1127
          %v1131 = vmul.f32 %v1130, %v1128
          %v1132 = vmul.f32 %v1130, %v1129
          %v1133 = vadd.f32 %v1125, %v1131
          %v1134 = vadd.f32 %v1126, %v1132
          %s1135 = sld [smem:[#allocation12 + $0x30]]
          %v1136 = vld [vmem:[#allocation6 + $0xb] sm:$0xff]
          %v1137 = vld [vmem:[#allocation6 + $0x13] sm:$0xff]
          %v1138 = vstv %s1135
          %v1139 = vmul.f32 %v1138, %v1136
          %v1140 = vmul.f32 %v1138, %v1137
          %v1141 = vadd.f32 %v1133, %v1139
          %v1142 = vadd.f32 %v1134, %v1140
          %v1143 = vld [vmem:[%s511] sm:$0xff]
          %v1144 = vld [vmem:[%s511 + $0x8] sm:$0xff]
          %v1145 = vld [vmem:[%s511 + $0x10] sm:$0xff]
          %v1146 = vld [vmem:[%s511 + $0x18] sm:$0x7]
          %1147 = vrot.lane.b32.xlu0 %v1143, 3
          %v1148 = vpop.permute.xlu0 %1147
          %1149 = vrot.lane.b32.xlu0 %v1144, 3
          %v1150 = vpop.permute.xlu0 %1149
          %1151 = vrot.lane.b32.xlu0 %v1145, 3
          %v1152 = vpop.permute.xlu0 %1151
          %1153 = vrot.lane.b32.xlu0 %v1146, 3
          %v1154 = vpop.permute.xlu0 %1153
          %1155 = vst [vmem:[#allocation6] sm:$0xff] %v1148
          %1156 = vst [vmem:[#allocation6 + $0x8] sm:$0xff] %v1150
          %1157 = vst [vmem:[#allocation6 + $0x10] sm:$0xff] %v1152
          %1158 = vst [vmem:[#allocation6 + $0x18] sm:$0x7] %v1154
          %s1159 = sld [smem:[#allocation12 + $0x31]]
          %v1160 = vld [vmem:[#allocation6 + $0x5] sm:$0xff]
          %v1161 = vld [vmem:[#allocation6 + $0xd] sm:$0xff]
          %v1162 = vstv %s1159
          %v1163 = vmul.f32 %v1162, %v1160
          %v1164 = vmul.f32 %v1162, %v1161
          %v1165 = vadd.f32 %v1141, %v1163
          %v1166 = vadd.f32 %v1142, %v1164
          %s1167 = sld [smem:[#allocation12 + $0x38]]
          %v1168 = vld [vmem:[#allocation6 + $0x6] sm:$0xff]
          %v1169 = vld [vmem:[#allocation6 + $0xe] sm:$0xff]
          %v1170 = vstv %s1167
          %v1171 = vmul.f32 %v1170, %v1168
          %v1172 = vmul.f32 %v1170, %v1169
          %v1173 = vadd.f32 %v1165, %v1171
          %v1174 = vadd.f32 %v1166, %v1172
          %s1175 = sld [smem:[#allocation12 + $0x3f]]
          %v1176 = vld [vmem:[#allocation6 + $0x7] sm:$0xff]
          %v1177 = vld [vmem:[#allocation6 + $0xf] sm:$0xff]
          %v1178 = vstv %s1175
          %v1179 = vmul.f32 %v1178, %v1176
          %v1180 = vmul.f32 %v1178, %v1177
          %v1181 = vadd.f32 %v1173, %v1179
          %v1182 = vadd.f32 %v1174, %v1180
          %s1183 = sld [smem:[#allocation12 + $0x46]]
          %v1184 = vld [vmem:[#allocation6 + $0x8] sm:$0xff]
          %v1185 = vld [vmem:[#allocation6 + $0x10] sm:$0xff]
          %v1186 = vstv %s1183
          %v1187 = vmul.f32 %v1186, %v1184
          %v1188 = vmul.f32 %v1186, %v1185
          %v1189 = vadd.f32 %v1181, %v1187
          %v1190 = vadd.f32 %v1182, %v1188
          %s1191 = sld [smem:[#allocation12 + $0x4d]]
          %v1192 = vld [vmem:[#allocation6 + $0x9] sm:$0xff]
          %v1193 = vld [vmem:[#allocation6 + $0x11] sm:$0xff]
          %v1194 = vstv %s1191
          %v1195 = vmul.f32 %v1194, %v1192
          %v1196 = vmul.f32 %v1194, %v1193
          %v1197 = vadd.f32 %v1189, %v1195
          %v1198 = vadd.f32 %v1190, %v1196
          %s1199 = sld [smem:[#allocation12 + $0x54]]
          %v1200 = vld [vmem:[#allocation6 + $0xa] sm:$0xff]
          %v1201 = vld [vmem:[#allocation6 + $0x12] sm:$0xff]
          %v1202 = vstv %s1199
          %v1203 = vmul.f32 %v1202, %v1200
          %v1204 = vmul.f32 %v1202, %v1201
          %v1205 = vadd.f32 %v1197, %v1203
          %v1206 = vadd.f32 %v1198, %v1204
          %s1207 = sld [smem:[#allocation12 + $0x5b]]
          %v1208 = vld [vmem:[#allocation6 + $0xb] sm:$0xff]
          %v1209 = vld [vmem:[#allocation6 + $0x13] sm:$0xff]
          %v1210 = vstv %s1207
          %v1211 = vmul.f32 %v1210, %v1208
          %v1212 = vmul.f32 %v1210, %v1209
          %v1213 = vadd.f32 %v1205, %v1211
          %v1214 = vadd.f32 %v1206, %v1212
          %v1215 = vld [vmem:[%s511] sm:$0xff]
          %v1216 = vld [vmem:[%s511 + $0x8] sm:$0xff]
          %v1217 = vld [vmem:[%s511 + $0x10] sm:$0xff]
          %v1218 = vld [vmem:[%s511 + $0x18] sm:$0x7]
          %1219 = vrot.lane.b32.xlu0 %v1215, 2
          %v1220 = vpop.permute.xlu0 %1219
          %1221 = vrot.lane.b32.xlu0 %v1216, 2
          %v1222 = vpop.permute.xlu0 %1221
          %1223 = vrot.lane.b32.xlu0 %v1217, 2
          %v1224 = vpop.permute.xlu0 %1223
          %1225 = vrot.lane.b32.xlu0 %v1218, 2
          %v1226 = vpop.permute.xlu0 %1225
          %1227 = vst [vmem:[#allocation6] sm:$0xff] %v1220
          %1228 = vst [vmem:[#allocation6 + $0x8] sm:$0xff] %v1222
          %1229 = vst [vmem:[#allocation6 + $0x10] sm:$0xff] %v1224
          %1230 = vst [vmem:[#allocation6 + $0x18] sm:$0x7] %v1226
          %s1231 = sld [smem:[#allocation12 + $0x32]]
          %v1232 = vld [vmem:[#allocation6 + $0x5] sm:$0xff]
          %v1233 = vld [vmem:[#allocation6 + $0xd] sm:$0xff]
          %v1234 = vstv %s1231
          %v1235 = vmul.f32 %v1234, %v1232
          %v1236 = vmul.f32 %v1234, %v1233
          %v1237 = vadd.f32 %v1213, %v1235
          %v1238 = vadd.f32 %v1214, %v1236
          %s1239 = sld [smem:[#allocation12 + $0x39]]
          %v1240 = vld [vmem:[#allocation6 + $0x6] sm:$0xff]
          %v1241 = vld [vmem:[#allocation6 + $0xe] sm:$0xff]
          %v1242 = vstv %s1239
          %v1243 = vmul.f32 %v1242, %v1240
          %v1244 = vmul.f32 %v1242, %v1241
          %v1245 = vadd.f32 %v1237, %v1243
          %v1246 = vadd.f32 %v1238, %v1244
          %s1247 = sld [smem:[#allocation12 + $0x40]]
          %v1248 = vld [vmem:[#allocation6 + $0x7] sm:$0xff]
          %v1249 = vld [vmem:[#allocation6 + $0xf] sm:$0xff]
          %v1250 = vstv %s1247
          %v1251 = vmul.f32 %v1250, %v1248
          %v1252 = vmul.f32 %v1250, %v1249
          %v1253 = vadd.f32 %v1245, %v1251
          %v1254 = vadd.f32 %v1246, %v1252
          %s1255 = sld [smem:[#allocation12 + $0x47]]
          %v1256 = vld [vmem:[#allocation6 + $0x8] sm:$0xff]
          %v1257 = vld [vmem:[#allocation6 + $0x10] sm:$0xff]
          %v1258 = vstv %s1255
          %v1259 = vmul.f32 %v1258, %v1256
          %v1260 = vmul.f32 %v1258, %v1257
          %v1261 = vadd.f32 %v1253, %v1259
          %v1262 = vadd.f32 %v1254, %v1260
          %s1263 = sld [smem:[#allocation12 + $0x4e]]
          %v1264 = vld [vmem:[#allocation6 + $0x9] sm:$0xff]
          %v1265 = vld [vmem:[#allocation6 + $0x11] sm:$0xff]
          %v1266 = vstv %s1263
          %v1267 = vmul.f32 %v1266, %v1264
          %v1268 = vmul.f32 %v1266, %v1265
          %v1269 = vadd.f32 %v1261, %v1267
          %v1270 = vadd.f32 %v1262, %v1268
          %s1271 = sld [smem:[#allocation12 + $0x55]]
          %v1272 = vld [vmem:[#allocation6 + $0xa] sm:$0xff]
          %v1273 = vld [vmem:[#allocation6 + $0x12] sm:$0xff]
          %v1274 = vstv %s1271
          %v1275 = vmul.f32 %v1274, %v1272
          %v1276 = vmul.f32 %v1274, %v1273
          %v1277 = vadd.f32 %v1269, %v1275
          %v1278 = vadd.f32 %v1270, %v1276
          %s1279 = sld [smem:[#allocation12 + $0x5c]]
          %v1280 = vld [vmem:[#allocation6 + $0xb] sm:$0xff]
          %v1281 = vld [vmem:[#allocation6 + $0x13] sm:$0xff]
          %v1282 = vstv %s1279
          %v1283 = vmul.f32 %v1282, %v1280
          %v1284 = vmul.f32 %v1282, %v1281
          %v1285 = vadd.f32 %v1277, %v1283
          %v1286 = vadd.f32 %v1278, %v1284
          %v1287 = vld [vmem:[%s511] sm:$0xff]
          %v1288 = vld [vmem:[%s511 + $0x8] sm:$0xff]
          %v1289 = vld [vmem:[%s511 + $0x10] sm:$0xff]
          %v1290 = vld [vmem:[%s511 + $0x18] sm:$0x7]
          %1291 = vrot.lane.b32.xlu0 %v1287, 1
          %v1292 = vpop.permute.xlu0 %1291
          %1293 = vrot.lane.b32.xlu0 %v1288, 1
          %v1294 = vpop.permute.xlu0 %1293
          %1295 = vrot.lane.b32.xlu0 %v1289, 1
          %v1296 = vpop.permute.xlu0 %1295
          %1297 = vrot.lane.b32.xlu0 %v1290, 1
          %v1298 = vpop.permute.xlu0 %1297
          %1299 = vst [vmem:[#allocation6] sm:$0xff] %v1292
          %1300 = vst [vmem:[#allocation6 + $0x8] sm:$0xff] %v1294
          %1301 = vst [vmem:[#allocation6 + $0x10] sm:$0xff] %v1296
          %1302 = vst [vmem:[#allocation6 + $0x18] sm:$0x7] %v1298
          %s1303 = sld [smem:[#allocation12 + $0x33]]
          %v1304 = vld [vmem:[#allocation6 + $0x5] sm:$0xff]
          %v1305 = vld [vmem:[#allocation6 + $0xd] sm:$0xff]
          %v1306 = vstv %s1303
          %v1307 = vmul.f32 %v1306, %v1304
          %v1308 = vmul.f32 %v1306, %v1305
          %v1309 = vadd.f32 %v1285, %v1307
          %v1310 = vadd.f32 %v1286, %v1308
          %s1311 = sld [smem:[#allocation12 + $0x3a]]
          %v1312 = vld [vmem:[#allocation6 + $0x6] sm:$0xff]
          %v1313 = vld [vmem:[#allocation6 + $0xe] sm:$0xff]
          %v1314 = vstv %s1311
          %v1315 = vmul.f32 %v1314, %v1312
          %v1316 = vmul.f32 %v1314, %v1313
          %v1317 = vadd.f32 %v1309, %v1315
          %v1318 = vadd.f32 %v1310, %v1316
          %s1319 = sld [smem:[#allocation12 + $0x41]]
          %v1320 = vld [vmem:[#allocation6 + $0x7] sm:$0xff]
          %v1321 = vld [vmem:[#allocation6 + $0xf] sm:$0xff]
          %v1322 = vstv %s1319
          %v1323 = vmul.f32 %v1322, %v1320
          %v1324 = vmul.f32 %v1322, %v1321
          %v1325 = vadd.f32 %v1317, %v1323
          %v1326 = vadd.f32 %v1318, %v1324
          %s1327 = sld [smem:[#allocation12 + $0x48]]
          %v1328 = vld [vmem:[#allocation6 + $0x8] sm:$0xff]
          %v1329 = vld [vmem:[#allocation6 + $0x10] sm:$0xff]
          %v1330 = vstv %s1327
          %v1331 = vmul.f32 %v1330, %v1328
          %v1332 = vmul.f32 %v1330, %v1329
          %v1333 = vadd.f32 %v1325, %v1331
          %v1334 = vadd.f32 %v1326, %v1332
          %s1335 = sld [smem:[#allocation12 + $0x4f]]
          %v1336 = vld [vmem:[#allocation6 + $0x9] sm:$0xff]
          %v1337 = vld [vmem:[#allocation6 + $0x11] sm:$0xff]
          %v1338 = vstv %s1335
          %v1339 = vmul.f32 %v1338, %v1336
          %v1340 = vmul.f32 %v1338, %v1337
          %v1341 = vadd.f32 %v1333, %v1339
          %v1342 = vadd.f32 %v1334, %v1340
          %s1343 = sld [smem:[#allocation12 + $0x56]]
          %v1344 = vld [vmem:[#allocation6 + $0xa] sm:$0xff]
          %v1345 = vld [vmem:[#allocation6 + $0x12] sm:$0xff]
          %v1346 = vstv %s1343
          %v1347 = vmul.f32 %v1346, %v1344
          %v1348 = vmul.f32 %v1346, %v1345
          %v1349 = vadd.f32 %v1341, %v1347
          %v1350 = vadd.f32 %v1342, %v1348
          %s1351 = sld [smem:[#allocation12 + $0x5d]]
          %v1352 = vld [vmem:[#allocation6 + $0xb] sm:$0xff]
          %v1353 = vld [vmem:[#allocation6 + $0x13] sm:$0xff]
          %v1354 = vstv %s1351
          %v1355 = vmul.f32 %v1354, %v1352
          %v1356 = vmul.f32 %v1354, %v1353
          %v1357 = vadd.f32 %v1349, %v1355
          %v1358 = vadd.f32 %v1350, %v1356
          %s1359 = sld [smem:[#allocation12 + $0x34]]
          %v1360 = vld [vmem:[%s511 + $0x5] sm:$0xff]
          %v1361 = vld [vmem:[%s511 + $0xd] sm:$0xff]
          %v1362 = vstv %s1359
          %v1363 = vmul.f32 %v1362, %v1360
          %v1364 = vmul.f32 %v1362, %v1361
          %v1365 = vadd.f32 %v1357, %v1363
          %v1366 = vadd.f32 %v1358, %v1364
          %s1367 = sld [smem:[#allocation12 + $0x3b]]
          %v1368 = vld [vmem:[%s511 + $0x6] sm:$0xff]
          %v1369 = vld [vmem:[%s511 + $0xe] sm:$0xff]
          %v1370 = vstv %s1367
          %v1371 = vmul.f32 %v1370, %v1368
          %v1372 = vmul.f32 %v1370, %v1369
          %v1373 = vadd.f32 %v1365, %v1371
          %v1374 = vadd.f32 %v1366, %v1372
          %s1375 = sld [smem:[#allocation12 + $0x42]]
          %v1376 = vld [vmem:[%s511 + $0x7] sm:$0xff]
          %v1377 = vld [vmem:[%s511 + $0xf] sm:$0xff]
          %v1378 = vstv %s1375
          %v1379 = vmul.f32 %v1378, %v1376
          %v1380 = vmul.f32 %v1378, %v1377
          %v1381 = vadd.f32 %v1373, %v1379
          %v1382 = vadd.f32 %v1374, %v1380
          %s1383 = sld [smem:[#allocation12 + $0x49]]
          %v1384 = vld [vmem:[%s511 + $0x8] sm:$0xff]
          %v1385 = vld [vmem:[%s511 + $0x10] sm:$0xff]
          %v1386 = vstv %s1383
          %v1387 = vmul.f32 %v1386, %v1384
          %v1388 = vmul.f32 %v1386, %v1385
          %v1389 = vadd.f32 %v1381, %v1387
          %v1390 = vadd.f32 %v1382, %v1388
          %s1391 = sld [smem:[#allocation12 + $0x50]]
          %v1392 = vld [vmem:[%s511 + $0x9] sm:$0xff]
          %v1393 = vld [vmem:[%s511 + $0x11] sm:$0xff]
          %v1394 = vstv %s1391
          %v1395 = vmul.f32 %v1394, %v1392
          %v1396 = vmul.f32 %v1394, %v1393
          %v1397 = vadd.f32 %v1389, %v1395
          %v1398 = vadd.f32 %v1390, %v1396
          %s1399 = sld [smem:[#allocation12 + $0x57]]
          %v1400 = vld [vmem:[%s511 + $0xa] sm:$0xff]
          %v1401 = vld [vmem:[%s511 + $0x12] sm:$0xff]
          %v1402 = vstv %s1399
          %v1403 = vmul.f32 %v1402, %v1400
          %v1404 = vmul.f32 %v1402, %v1401
          %v1405 = vadd.f32 %v1397, %v1403
          %v1406 = vadd.f32 %v1398, %v1404
          %s1407 = sld [smem:[#allocation12 + $0x5e]]
          %v1408 = vld [vmem:[%s511 + $0xb] sm:$0xff]
          %v1409 = vld [vmem:[%s511 + $0x13] sm:$0xff]
          %v1410 = vstv %s1407
          %v1411 = vmul.f32 %v1410, %v1408
          %v1412 = vmul.f32 %v1410, %v1409
          %v1413 = vadd.f32 %v1405, %v1411
          %v1414 = vadd.f32 %v1406, %v1412
          %v1415 = vld [vmem:[%s511] sm:$0xff]
          %v1416 = vld [vmem:[%s511 + $0x8] sm:$0xff]
          %v1417 = vld [vmem:[%s511 + $0x10] sm:$0xff]
          %v1418 = vld [vmem:[%s511 + $0x18] sm:$0x7]
          %1419 = vrot.lane.b32.xlu0 %v1415, 127
          %v1420 = vpop.permute.xlu0 %1419
          %1421 = vrot.lane.b32.xlu0 %v1416, 127
          %v1422 = vpop.permute.xlu0 %1421
          %1423 = vrot.lane.b32.xlu0 %v1417, 127
          %v1424 = vpop.permute.xlu0 %1423
          %1425 = vrot.lane.b32.xlu0 %v1418, 127
          %v1426 = vpop.permute.xlu0 %1425
          %1427 = vst [vmem:[#allocation6] sm:$0xff] %v1420
          %1428 = vst [vmem:[#allocation6 + $0x8] sm:$0xff] %v1422
          %1429 = vst [vmem:[#allocation6 + $0x10] sm:$0xff] %v1424
          %1430 = vst [vmem:[#allocation6 + $0x18] sm:$0x7] %v1426
          %s1431 = sld [smem:[#allocation12 + $0x35]]
          %v1432 = vld [vmem:[#allocation6 + $0x5] sm:$0xff]
          %v1433 = vld [vmem:[#allocation6 + $0xd] sm:$0xff]
          %v1434 = vstv %s1431
          %v1435 = vmul.f32 %v1434, %v1432
          %v1436 = vmul.f32 %v1434, %v1433
          %v1437 = vadd.f32 %v1413, %v1435
          %v1438 = vadd.f32 %v1414, %v1436
          %s1439 = sld [smem:[#allocation12 + $0x3c]]
          %v1440 = vld [vmem:[#allocation6 + $0x6] sm:$0xff]
          %v1441 = vld [vmem:[#allocation6 + $0xe] sm:$0xff]
          %v1442 = vstv %s1439
          %v1443 = vmul.f32 %v1442, %v1440
          %v1444 = vmul.f32 %v1442, %v1441
          %v1445 = vadd.f32 %v1437, %v1443
          %v1446 = vadd.f32 %v1438, %v1444
          %s1447 = sld [smem:[#allocation12 + $0x43]]
          %v1448 = vld [vmem:[#allocation6 + $0x7] sm:$0xff]
          %v1449 = vld [vmem:[#allocation6 + $0xf] sm:$0xff]
          %v1450 = vstv %s1447
          %v1451 = vmul.f32 %v1450, %v1448
          %v1452 = vmul.f32 %v1450, %v1449
          %v1453 = vadd.f32 %v1445, %v1451
          %v1454 = vadd.f32 %v1446, %v1452
          %s1455 = sld [smem:[#allocation12 + $0x4a]]
          %v1456 = vld [vmem:[#allocation6 + $0x8] sm:$0xff]
          %v1457 = vld [vmem:[#allocation6 + $0x10] sm:$0xff]
          %v1458 = vstv %s1455
          %v1459 = vmul.f32 %v1458, %v1456
          %v1460 = vmul.f32 %v1458, %v1457
          %v1461 = vadd.f32 %v1453, %v1459
          %v1462 = vadd.f32 %v1454, %v1460
          %s1463 = sld [smem:[#allocation12 + $0x51]]
          %v1464 = vld [vmem:[#allocation6 + $0x9] sm:$0xff]
          %v1465 = vld [vmem:[#allocation6 + $0x11] sm:$0xff]
          %v1466 = vstv %s1463
          %v1467 = vmul.f32 %v1466, %v1464
          %v1468 = vmul.f32 %v1466, %v1465
          %v1469 = vadd.f32 %v1461, %v1467
          %v1470 = vadd.f32 %v1462, %v1468
          %s1471 = sld [smem:[#allocation12 + $0x58]]
          %v1472 = vld [vmem:[#allocation6 + $0xa] sm:$0xff]
          %v1473 = vld [vmem:[#allocation6 + $0x12] sm:$0xff]
          %v1474 = vstv %s1471
          %v1475 = vmul.f32 %v1474, %v1472
          %v1476 = vmul.f32 %v1474, %v1473
          %v1477 = vadd.f32 %v1469, %v1475
          %v1478 = vadd.f32 %v1470, %v1476
          %s1479 = sld [smem:[#allocation12 + $0x5f]]
          %v1480 = vld [vmem:[#allocation6 + $0xb] sm:$0xff]
          %v1481 = vld [vmem:[#allocation6 + $0x13] sm:$0xff]
          %v1482 = vstv %s1479
          %v1483 = vmul.f32 %v1482, %v1480
          %v1484 = vmul.f32 %v1482, %v1481
          %v1485 = vadd.f32 %v1477, %v1483
          %v1486 = vadd.f32 %v1478, %v1484
          %v1487 = vld [vmem:[%s511] sm:$0xff]
          %v1488 = vld [vmem:[%s511 + $0x8] sm:$0xff]
          %v1489 = vld [vmem:[%s511 + $0x10] sm:$0xff]
          %v1490 = vld [vmem:[%s511 + $0x18] sm:$0x7]
          %1491 = vrot.lane.b32.xlu0 %v1487, 126
          %v1492 = vpop.permute.xlu0 %1491
          %1493 = vrot.lane.b32.xlu0 %v1488, 126
          %v1494 = vpop.permute.xlu0 %1493
          %1495 = vrot.lane.b32.xlu0 %v1489, 126
          %v1496 = vpop.permute.xlu0 %1495
          %1497 = vrot.lane.b32.xlu0 %v1490, 126
          %v1498 = vpop.permute.xlu0 %1497
          %1499 = vst [vmem:[#allocation6] sm:$0xff] %v1492
          %1500 = vst [vmem:[#allocation6 + $0x8] sm:$0xff] %v1494
          %1501 = vst [vmem:[#allocation6 + $0x10] sm:$0xff] %v1496
          %1502 = vst [vmem:[#allocation6 + $0x18] sm:$0x7] %v1498
          %s1503 = sld [smem:[#allocation12 + $0x36]]
          %v1504 = vld [vmem:[#allocation6 + $0x5] sm:$0xff]
          %v1505 = vld [vmem:[#allocation6 + $0xd] sm:$0xff]
          %v1506 = vstv %s1503
          %v1507 = vmul.f32 %v1506, %v1504
          %v1508 = vmul.f32 %v1506, %v1505
          %v1509 = vadd.f32 %v1485, %v1507
          %v1510 = vadd.f32 %v1486, %v1508
          %s1511 = sld [smem:[#allocation12 + $0x3d]]
          %v1512 = vld [vmem:[#allocation6 + $0x6] sm:$0xff]
          %v1513 = vld [vmem:[#allocation6 + $0xe] sm:$0xff]
          %v1514 = vstv %s1511
          %v1515 = vmul.f32 %v1514, %v1512
          %v1516 = vmul.f32 %v1514, %v1513
          %v1517 = vadd.f32 %v1509, %v1515
          %v1518 = vadd.f32 %v1510, %v1516
          %s1519 = sld [smem:[#allocation12 + $0x44]]
          %v1520 = vld [vmem:[#allocation6 + $0x7] sm:$0xff]
          %v1521 = vld [vmem:[#allocation6 + $0xf] sm:$0xff]
          %v1522 = vstv %s1519
          %v1523 = vmul.f32 %v1522, %v1520
          %v1524 = vmul.f32 %v1522, %v1521
          %v1525 = vadd.f32 %v1517, %v1523
          %v1526 = vadd.f32 %v1518, %v1524
          %s1527 = sld [smem:[#allocation12 + $0x4b]]
          %v1528 = vld [vmem:[#allocation6 + $0x8] sm:$0xff]
          %v1529 = vld [vmem:[#allocation6 + $0x10] sm:$0xff]
          %v1530 = vstv %s1527
          %v1531 = vmul.f32 %v1530, %v1528
          %v1532 = vmul.f32 %v1530, %v1529
          %v1533 = vadd.f32 %v1525, %v1531
          %v1534 = vadd.f32 %v1526, %v1532
          %s1535 = sld [smem:[#allocation12 + $0x52]]
          %v1536 = vld [vmem:[#allocation6 + $0x9] sm:$0xff]
          %v1537 = vld [vmem:[#allocation6 + $0x11] sm:$0xff]
          %v1538 = vstv %s1535
          %v1539 = vmul.f32 %v1538, %v1536
          %v1540 = vmul.f32 %v1538, %v1537
          %v1541 = vadd.f32 %v1533, %v1539
          %v1542 = vadd.f32 %v1534, %v1540
          %s1543 = sld [smem:[#allocation12 + $0x59]]
          %v1544 = vld [vmem:[#allocation6 + $0xa] sm:$0xff]
          %v1545 = vld [vmem:[#allocation6 + $0x12] sm:$0xff]
          %v1546 = vstv %s1543
          %v1547 = vmul.f32 %v1546, %v1544
          %v1548 = vmul.f32 %v1546, %v1545
          %v1549 = vadd.f32 %v1541, %v1547
          %v1550 = vadd.f32 %v1542, %v1548
          %s1551 = sld [smem:[#allocation12 + $0x60]]
          %v1552 = vld [vmem:[#allocation6 + $0xb] sm:$0xff]
          %v1553 = vld [vmem:[#allocation6 + $0x13] sm:$0xff]
          %v1554 = vstv %s1551
          %v1555 = vmul.f32 %v1554, %v1552
          %v1556 = vmul.f32 %v1554, %v1553
          %v1557 = vadd.f32 %v1549, %v1555
          %v1558 = vadd.f32 %v1550, %v1556
          %v1559 = vld [vmem:[%s511] sm:$0xff]
          %v1560 = vld [vmem:[%s511 + $0x8] sm:$0xff]
          %v1561 = vld [vmem:[%s511 + $0x10] sm:$0xff]
          %v1562 = vld [vmem:[%s511 + $0x18] sm:$0x7]
          %1563 = vrot.lane.b32.xlu0 %v1559, 125
          %v1564 = vpop.permute.xlu0 %1563
          %1565 = vrot.lane.b32.xlu0 %v1560, 125
          %v1566 = vpop.permute.xlu0 %1565
          %1567 = vrot.lane.b32.xlu0 %v1561, 125
          %v1568 = vpop.permute.xlu0 %1567
          %1569 = vrot.lane.b32.xlu0 %v1562, 125
          %v1570 = vpop.permute.xlu0 %1569
          %1571 = vst [vmem:[#allocation6] sm:$0xff] %v1564
          %1572 = vst [vmem:[#allocation6 + $0x8] sm:$0xff] %v1566
          %1573 = vst [vmem:[#allocation6 + $0x10] sm:$0xff] %v1568
          %1574 = vst [vmem:[#allocation6 + $0x18] sm:$0x7] %v1570
          %s1575 = sld [smem:[#allocation12 + $0x37]]
          %v1576 = vld [vmem:[#allocation6 + $0x5] sm:$0xff]
          %v1577 = vld [vmem:[#allocation6 + $0xd] sm:$0xff]
          %v1578 = vstv %s1575
          %v1579 = vmul.f32 %v1578, %v1576
          %v1580 = vmul.f32 %v1578, %v1577
          %v1581 = vadd.f32 %v1557, %v1579
          %v1582 = vadd.f32 %v1558, %v1580
          %s1583 = sld [smem:[#allocation12 + $0x3e]]
          %v1584 = vld [vmem:[#allocation6 + $0x6] sm:$0xff]
          %v1585 = vld [vmem:[#allocation6 + $0xe] sm:$0xff]
          %v1586 = vstv %s1583
          %v1587 = vmul.f32 %v1586, %v1584
          %v1588 = vmul.f32 %v1586, %v1585
          %v1589 = vadd.f32 %v1581, %v1587
          %v1590 = vadd.f32 %v1582, %v1588
          %s1591 = sld [smem:[#allocation12 + $0x45]]
          %v1592 = vld [vmem:[#allocation6 + $0x7] sm:$0xff]
          %v1593 = vld [vmem:[#allocation6 + $0xf] sm:$0xff]
          %v1594 = vstv %s1591
          %v1595 = vmul.f32 %v1594, %v1592
          %v1596 = vmul.f32 %v1594, %v1593
          %v1597 = vadd.f32 %v1589, %v1595
          %v1598 = vadd.f32 %v1590, %v1596
          %s1599 = sld [smem:[#allocation12 + $0x4c]]
          %v1600 = vld [vmem:[#allocation6 + $0x8] sm:$0xff]
          %v1601 = vld [vmem:[#allocation6 + $0x10] sm:$0xff]
          %v1602 = vstv %s1599
          %v1603 = vmul.f32 %v1602, %v1600
          %v1604 = vmul.f32 %v1602, %v1601
          %v1605 = vadd.f32 %v1597, %v1603
          %v1606 = vadd.f32 %v1598, %v1604
          %s1607 = sld [smem:[#allocation12 + $0x53]]
          %v1608 = vld [vmem:[#allocation6 + $0x9] sm:$0xff]
          %v1609 = vld [vmem:[#allocation6 + $0x11] sm:$0xff]
          %v1610 = vstv %s1607
          %v1611 = vmul.f32 %v1610, %v1608
          %v1612 = vmul.f32 %v1610, %v1609
          %v1613 = vadd.f32 %v1605, %v1611
          %v1614 = vadd.f32 %v1606, %v1612
          %s1615 = sld [smem:[#allocation12 + $0x5a]]
          %v1616 = vld [vmem:[#allocation6 + $0xa] sm:$0xff]
          %v1617 = vld [vmem:[#allocation6 + $0x12] sm:$0xff]
          %v1618 = vstv %s1615
          %v1619 = vmul.f32 %v1618, %v1616
          %v1620 = vmul.f32 %v1618, %v1617
          %v1621 = vadd.f32 %v1613, %v1619
          %v1622 = vadd.f32 %v1614, %v1620
          %s1623 = sld [smem:[#allocation12 + $0x61]]
          %v1624 = vld [vmem:[#allocation6 + $0xb] sm:$0xff]
          %v1625 = vld [vmem:[#allocation6 + $0x13] sm:$0xff]
          %v1626 = vstv %s1623
          %v1627 = vmul.f32 %v1626, %v1624
          %v1628 = vmul.f32 %v1626, %v1625
          %v1629 = vadd.f32 %v1621, %v1627
          %v1630 = vadd.f32 %v1622, %v1628
          %v1631 = vxor.u32 %v1629, 2147483648
          %v1632 = vxor.u32 %v1630, 2147483648
          %v1633 = vmul.f32 %v1631, 1.442695
          %v1634 = vpow.pop %v1633
          %v1635 = vmul.f32 %v1632, 1.442695
          %v1636 = vpow.pop %v1635
          %v1637 = vadd.f32 %v1634, 1.0
          %v1638 = vadd.f32 %v1636, 1.0
          %v1639 = vrcp.pop %v1637
          %v1640 = vmul.f32 1.0, %v1639
          %v1641 = vrcp.pop %v1638
          %v1642 = vmul.f32 1.0, %v1641
          %vm1643 = vcmask 130048
          %1644 = vst.msk [vmem:[%s217] sm:$0xff] %vm1643, %v1640
          %1645 = vst.msk [vmem:[%s217 + $0x8] sm:$0xff] %vm1643, %v1642
        $region48: #{tpu_custom_call.1} parent=31 // pred_fallthru
          _
        %s1646 = sand.u32 %s112, 1
        %s1647 = scalar_lea.sflag [#allocation10], %s1646
        %s1648 = sand.u32 %s112, 1
        %s1649 = smul.addr %s1648, 16
        %s1650 = scalar_lea.vmem [#allocation13], %s1649
        // Predicated region
        $region49: #{tpu_custom_call.1} parent=31 // pred_check
          %p1651 = pneg %p122
        $region50: #{tpu_custom_call.1} parent=31 // pred_check_branch
          %1653 = sbr.rel (%p1651) target = $region52
        $region51: #{tpu_custom_call.1} parent=31 // pred_region
          %s1655 = ssub.s32 256, 256
          %1656 = vsyncadd %s1647, %s1655
          %s1657 = smul.addr %s26, 2
          %s1658 = smul.addr %s1657, 128
          %s1659 = scalar_lea.hbm %s3, %s1658
          %s1660 = sshll.u32 %s1650, 4
          %s1661 = int_to_ptr.vmem [resolvable:$true] %s1660
          %1666 = dma.vmem_to_hbm [thread:$0]  %s1661, 256, %s1659, %s1647, 128, 128, 8
        $region52: #{tpu_custom_call.1} parent=31 // pred_fallthru
          _
      $region32: #{tpu_custom_call.1} parent=5 // pred_fallthru
        _
      %p1667 = scmp.le.s32.totalorder 2, %s17
      // Predicated region
      $region53: #{tpu_custom_call.1} parent=5 // pred_check
        %p1668 = pneg %p1667
      $region54: #{tpu_custom_call.1} parent=5 // pred_check_branch
        %1670 = sbr.rel (%p1668) target = $region56
      $region55: #{tpu_custom_call.1} parent=5 // pred_region
        %s1671 = ssub.s32 %s17, 2
        // Predicated region
        $region57: #{tpu_custom_call.1} parent=55 // pred_check
          %p1672 = pneg %p128
        $region58: #{tpu_custom_call.1} parent=55 // pred_check_branch
          %1674 = sbr.rel (%p1672) target = $region60
        $region59: #{tpu_custom_call.1} parent=55 // pred_region
          %s1675 = sand.u32 %s113, 1
          %s1676 = scalar_lea.sflag [#allocation10], %s1675
          %s1677 = sand.u32 %s113, 1
          %s1678 = smul.addr %s1677, 16
          %s1679 = scalar_lea.vmem [#allocation13], %s1678
          %1680 = dma.done %s1676, 256
        $region60: #{tpu_custom_call.1} parent=55 // pred_fallthru
          _
      $region56: #{tpu_custom_call.1} parent=5 // pred_fallthru
        _
    $region6: #{tpu_custom_call.1} parent=1 // loop_footer
      %s21 = sadd.s32 1, %s17
    $region7: #{tpu_custom_call.1} parent=1 // loop_footer_branch
      %16 = sbr.rel target = $region3
    $region8: #{tpu_custom_call.1} parent=1 // loop_exit
      _
    %1681 = vsyncpa [#allocation9], 1
    %s1682 = scalar_lea.sflag [#allocation9], 1
    %1683 = vsyncpa %s1682, 1
    %1684 = vsyncpa [#allocation10], 1
    %s1685 = scalar_lea.sflag [#allocation10], 1
    %1686 = vsyncpa %s1685, 1
    %1687 = vsyncpa [#allocation11], 1
    %s1688 = scalar_lea.sflag [#allocation11], 1
    %1689 = vsyncpa %s1688, 1

</llo_original>
